<compile_context>
chip_gen: v7x
topology: tpu7x:2x2x1
jax: 0.10.0
libtpu: 0.0.40
codegen_flags: <defaults>
</compile_context>

<pallas_src>
import jax
import jax.numpy as jnp
from jax.experimental import pallas as pl
from jax.experimental.pallas import tpu as pltpu

# ---- model dims ----
X_DIM = 16     # input feature dim
H = 32         # hidden width of the MLP encoder / decoder
Z_DIM = 2      # latent dim (AE1D default z_dim=2); encoder emits 2*Z_DIM

# ---- batch tiling ----
TB_MAX = 4096  # max rows per grid step (sweep 1024-8192; VMEM stays tiny)
MIN_GRID = 2   # keep >= 2 grid steps so v7x can use both TensorCores


def _pick_batch_tile(b, tb_max=TB_MAX, min_grid=MIN_GRID):
    """Largest tile <= tb_max that still yields >= min_grid grid steps."""
    tb = pl.cdiv(b, min_grid)
    tb = ((tb + 7) // 8) * 8          # sublane alignment (8, 128) rule
    return max(8, min(tb_max, tb))


def ae1d_kernel(x_ref, eps_ref, we1_ref, we2_ref, wd1_ref, wd2_ref, b_ref,
                xhat_ref, z_ref, qm_ref, qlv_ref):
    """One batch tile of the fused AE1D forward (4 exactly-sized outputs)."""
    x = x_ref[...]                          # (TB, X_DIM)
    eps = eps_ref[...]                      # (TB, Z_DIM)

    # packed biases: row0=be1, row1=bd1, row2=be2 (2*Z_DIM), row3=bd2 (X_DIM)
    be1 = b_ref[0:1, :]                     # (1, H)
    bd1 = b_ref[1:2, :]                     # (1, H)
    be2 = b_ref[2:3, 0:2 * Z_DIM]           # (1, 2*Z_DIM)
    bd2 = b_ref[3:4, 0:X_DIM]               # (1, X_DIM)

    # ---- encoder: Linear -> ReLU -> Linear (single fused head) ----
    h = jnp.dot(x, we1_ref[...], preferred_element_type=jnp.float32) + be1
    h = jnp.maximum(h, 0.0)                                             # (TB, H)
    enc = jnp.dot(h, we2_ref[...], preferred_element_type=jnp.float32) + be2
    q_m = enc[:, :Z_DIM]                    # z.view(-1, 2, z_dim)[:, 0, :]
    q_logv = enc[:, Z_DIM:2 * Z_DIM]        # z.view(-1, 2, z_dim)[:, 1, :]

    # ---- reparameterization (ut.sample_gaussian): z = m + exp(0.5*logv)*eps ----
    z = q_m + jnp.exp(0.5 * q_logv) * eps                               # (TB, Z_DIM)

    # ---- decoder layer 1 as VPU broadcast-FMAs (K = Z_DIM = 2 is MXU-hostile) ----
    h2 = bd1
    for j in range(Z_DIM):                  # static unroll, Z_DIM == 2
        h2 = h2 + z[:, j:j + 1] * wd1_ref[j:j + 1, :]
    h2 = jnp.maximum(h2, 0.0)                                           # (TB, H)

    # ---- decoder layer 2 ----
    x_hat = jnp.dot(h2, wd2_ref[...], preferred_element_type=jnp.float32) + bd2

    # exactly-sized stores; no zero padding, no wrapper re-slice
    xhat_ref[...] = x_hat
    z_ref[...] = z
    qm_ref[...] = q_m
    qlv_ref[...] = q_logv


def ae1d_forward(x, params, eps):
    """AE1D forward for an arbitrary batch -> (x_hat, z_given_x, q_m, q_logv)."""
    (we1, be1, we2, be2, wd1, bd1, wd2, bd2) = params
    b = x.shape[0]
    tb = _pick_batch_tile(b)

    # pack the four bias vectors into one (8, H) block (one resident DMA)
    b_all = jnp.zeros((8, H), jnp.float32)
    b_all = b_all.at[0, :H].set(be1.reshape(-1))
    b_all = b_all.at[1, :H].set(bd1.reshape(-1))
    b_all = b_all.at[2, :2 * Z_DIM].set(be2.reshape(-1))
    b_all = b_all.at[3, :X_DIM].set(bd2.reshape(-1))

    x_hat, z, q_m, q_logv = pl.pallas_call(
        ae1d_kernel,
        out_shape=(
            jax.ShapeDtypeStruct((b, X_DIM), jnp.float32),
            jax.ShapeDtypeStruct((b, Z_DIM), jnp.float32),
            jax.ShapeDtypeStruct((b, Z_DIM), jnp.float32),
            jax.ShapeDtypeStruct((b, Z_DIM), jnp.float32),
        ),
        grid=(pl.cdiv(b, tb),),              # ragged last tile handled by Pallas
        in_specs=[
            pl.BlockSpec((tb, X_DIM), lambda i: (i, 0)),        # x       (per-tile)
            pl.BlockSpec((tb, Z_DIM), lambda i: (i, 0)),        # eps     (per-tile)
            pl.BlockSpec((X_DIM, H), lambda i: (0, 0)),         # we1     (resident)
            pl.BlockSpec((H, 2 * Z_DIM), lambda i: (0, 0)),     # we2     (resident)
            pl.BlockSpec((Z_DIM, H), lambda i: (0, 0)),         # wd1     (resident)
            pl.BlockSpec((H, X_DIM), lambda i: (0, 0)),         # wd2     (resident)
            pl.BlockSpec((8, H), lambda i: (0, 0)),             # packed biases
        ],
        out_specs=[
            pl.BlockSpec((tb, X_DIM), lambda i: (i, 0)),        # x_hat
            pl.BlockSpec((tb, Z_DIM), lambda i: (i, 0)),        # z_given_x
            pl.BlockSpec((tb, Z_DIM), lambda i: (i, 0)),        # q_m
            pl.BlockSpec((tb, Z_DIM), lambda i: (i, 0)),        # q_logv
        ],
        compiler_params=pltpu.CompilerParams(
            dimension_semantics=("parallel",)),
    )(x, eps, we1, we2, wd1, wd2, b_all)

    return x_hat, z, q_m, q_logv


def init_params(key):
    """Deterministic synthetic weights for the canonical MLP encoder/decoder."""
    ks = jax.random.split(key, 8)
    s = 0.1
    we1 = s * jax.random.normal(ks[0], (X_DIM, H), jnp.float32)
    be1 = s * jax.random.normal(ks[1], (H,), jnp.float32)
    we2 = s * jax.random.normal(ks[2], (H, 2 * Z_DIM), jnp.float32)
    be2 = s * jax.random.normal(ks[3], (2 * Z_DIM,), jnp.float32)
    wd1 = s * jax.random.normal(ks[4], (Z_DIM, H), jnp.float32)
    bd1 = s * jax.random.normal(ks[5], (H,), jnp.float32)
    wd2 = s * jax.random.normal(ks[6], (H, X_DIM), jnp.float32)
    bd2 = s * jax.random.normal(ks[7], (X_DIM,), jnp.float32)
    return (we1, be1, we2, be2, wd1, bd1, wd2, bd2)


def reference_forward(x, params, eps):
    """Pure-JAX reference of the same forward for the correctness check."""
    (we1, be1, we2, be2, wd1, bd1, wd2, bd2) = params
    h = jnp.maximum(x @ we1 + be1, 0.0)
    enc = h @ we2 + be2
    q_m, q_logv = enc[:, :Z_DIM], enc[:, Z_DIM:]
    z = q_m + jnp.exp(0.5 * q_logv) * eps
    h2 = jnp.maximum(z @ wd1 + bd1, 0.0)
    x_hat = h2 @ wd2 + bd2
    return x_hat, z, q_m, q_logv


if __name__ == "__main__":
    key = jax.random.PRNGKey(0)
    k_x, k_p, k_eps = jax.random.split(key, 3)

    # batch deliberately not a multiple of the tile -> exercises the ragged path
    # (and the >=2-step grid split for v7x's two TensorCores)
    B = 1000
    x = jax.random.normal(k_x, (B, X_DIM), jnp.float32)
    params = init_params(k_p)
    eps = jax.random.normal(k_eps, (B, Z_DIM), jnp.float32)

    fwd = jax.jit(ae1d_forward)
    x_hat, z_given_x, q_m, q_logv = jax.block_until_ready(fwd(x, params, eps))

    # sanity check against pure-JAX reference
    rx, rz, rm, rv = reference_forward(x, params, eps)
    assert x_hat.shape == (B, X_DIM) and z_given_x.shape == (B, Z_DIM)
    assert q_m.shape == (B, Z_DIM) and q_logv.shape == (B, Z_DIM)
    assert jnp.allclose(x_hat, rx, atol=2e-5, rtol=2e-5)
    assert jnp.allclose(z_given_x, rz, atol=2e-5, rtol=2e-5)
    assert jnp.allclose(q_m, rm, atol=2e-5, rtol=2e-5)
    assert jnp.allclose(q_logv, rv, atol=2e-5, rtol=2e-5)

    print("KERNEL_OK")
</pallas_src>

<mosaic_0001>
module attributes {stable_mosaic.version = 11 : i64} {
  func.func @ae1d_kernel(%arg0: i32, %arg1: memref<504x16xf32, #tpu.memory_space<vmem>>, %arg2: memref<504x2xf32, #tpu.memory_space<vmem>>, %arg3: memref<16x32xf32, #tpu.memory_space<vmem>>, %arg4: memref<32x4xf32, #tpu.memory_space<vmem>>, %arg5: memref<2x32xf32, #tpu.memory_space<vmem>>, %arg6: memref<32x16xf32, #tpu.memory_space<vmem>>, %arg7: memref<8x32xf32, #tpu.memory_space<vmem>>, %arg8: memref<504x16xf32, #tpu.memory_space<vmem>>, %arg9: memref<504x2xf32, #tpu.memory_space<vmem>>, %arg10: memref<504x2xf32, #tpu.memory_space<vmem>>, %arg11: memref<504x2xf32, #tpu.memory_space<vmem>>) attributes {dimension_semantics = [#tpu.dimension_semantics<parallel>], iteration_bounds = array<i64: 2>, scalar_prefetch = 0 : i64, scratch_operands = 0 : i64, tpu.core_type = #tpu.core_type<tc>, window_params = [{transform_indices = @transform_0, window_bounds = array<i64: 504, 16>}, {transform_indices = @transform_1, window_bounds = array<i64: 504, 2>}, {pipeline_mode = #tpu.pipeline_mode<synchronous>, transform_indices = @transform_2, window_bounds = array<i64: 16, 32>}, {pipeline_mode = #tpu.pipeline_mode<synchronous>, transform_indices = @transform_3, window_bounds = array<i64: 32, 4>}, {pipeline_mode = #tpu.pipeline_mode<synchronous>, transform_indices = @transform_4, window_bounds = array<i64: 2, 32>}, {pipeline_mode = #tpu.pipeline_mode<synchronous>, transform_indices = @transform_5, window_bounds = array<i64: 32, 16>}, {pipeline_mode = #tpu.pipeline_mode<synchronous>, transform_indices = @transform_6, window_bounds = array<i64: 8, 32>}, {transform_indices = @transform_7, window_bounds = array<i64: 504, 16>}, {transform_indices = @transform_8, window_bounds = array<i64: 504, 2>}, {transform_indices = @transform_9, window_bounds = array<i64: 504, 2>}, {transform_indices = @transform_10, window_bounds = array<i64: 504, 2>}]} {
    %c0 = arith.constant 0 : index
    %c0_0 = arith.constant 0 : index
    %0 = vector.load %arg1[%c0, %c0_0] : memref<504x16xf32, #tpu.memory_space<vmem>>, vector<504x16xf32>
    %c0_1 = arith.constant 0 : index
    %c0_2 = arith.constant 0 : index
    %1 = vector.load %arg2[%c0_1, %c0_2] : memref<504x2xf32, #tpu.memory_space<vmem>>, vector<504x2xf32>
    %c0_3 = arith.constant 0 : index
    %c0_4 = arith.constant 0 : index
    %2 = vector.load %arg7[%c0_3, %c0_4] : memref<8x32xf32, #tpu.memory_space<vmem>>, vector<1x32xf32>
    %c1 = arith.constant 1 : index
    %c0_5 = arith.constant 0 : index
    %3 = vector.load %arg7[%c1, %c0_5] : memref<8x32xf32, #tpu.memory_space<vmem>>, vector<1x32xf32>
    %c2 = arith.constant 2 : index
    %c0_6 = arith.constant 0 : index
    %4 = vector.load %arg7[%c2, %c0_6] : memref<8x32xf32, #tpu.memory_space<vmem>>, vector<1x4xf32>
    %c3 = arith.constant 3 : index
    %c0_7 = arith.constant 0 : index
    %5 = vector.load %arg7[%c3, %c0_7] : memref<8x32xf32, #tpu.memory_space<vmem>>, vector<1x16xf32>
    %c0_8 = arith.constant 0 : index
    %c0_9 = arith.constant 0 : index
    %6 = vector.load %arg3[%c0_8, %c0_9] : memref<16x32xf32, #tpu.memory_space<vmem>>, vector<16x32xf32>
    %cst = arith.constant dense<0.000000e+00> : vector<504x32xf32>
    %7 = tpu.matmul %0, %6, %cst {dimension_numbers = #tpu.dot_dimension_numbers<[1], [0], [0], [1], [0, 0, 1, 1], [], []>} : vector<504x16xf32>, vector<16x32xf32>, vector<504x32xf32> -> vector<504x32xf32>
    %8 = vector.broadcast %2 : vector<1x32xf32> to vector<504x32xf32>
    %9 = arith.addf %7, %8 : vector<504x32xf32>
    %cst_10 = arith.constant 0.000000e+00 : f32
    %10 = vector.broadcast %cst_10 : f32 to vector<504x32xf32>
    %11 = arith.maximumf %9, %10 : vector<504x32xf32>
    %c0_11 = arith.constant 0 : index
    %c0_12 = arith.constant 0 : index
    %12 = vector.load %arg4[%c0_11, %c0_12] : memref<32x4xf32, #tpu.memory_space<vmem>>, vector<32x4xf32>
    %cst_13 = arith.constant dense<0.000000e+00> : vector<504x4xf32>
    %13 = tpu.matmul %11, %12, %cst_13 {dimension_numbers = #tpu.dot_dimension_numbers<[1], [0], [0], [1], [0, 0, 1, 1], [], []>} : vector<504x32xf32>, vector<32x4xf32>, vector<504x4xf32> -> vector<504x4xf32>
    %14 = vector.broadcast %4 : vector<1x4xf32> to vector<504x4xf32>
    %15 = arith.addf %13, %14 : vector<504x4xf32>
    %16 = vector.extract_strided_slice %15 {offsets = [0, 0], sizes = [504, 2], strides = [1, 1]} : vector<504x4xf32> to vector<504x2xf32>
    %17 = vector.extract_strided_slice %15 {offsets = [0, 2], sizes = [504, 2], strides = [1, 1]} : vector<504x4xf32> to vector<504x2xf32>
    %cst_14 = arith.constant 5.000000e-01 : f32
    %18 = vector.broadcast %cst_14 : f32 to vector<504x2xf32>
    %19 = arith.mulf %18, %17 : vector<504x2xf32>
    %20 = math.exp %19 : vector<504x2xf32>
    %21 = arith.mulf %20, %1 : vector<504x2xf32>
    %22 = arith.addf %16, %21 : vector<504x2xf32>
    %23 = vector.extract_strided_slice %22 {offsets = [0, 0], sizes = [504, 1], strides = [1, 1]} : vector<504x2xf32> to vector<504x1xf32>
    %c0_15 = arith.constant 0 : index
    %c0_16 = arith.constant 0 : index
    %24 = vector.load %arg5[%c0_15, %c0_16] : memref<2x32xf32, #tpu.memory_space<vmem>>, vector<1x32xf32>
    %25 = vector.broadcast %23 : vector<504x1xf32> to vector<504x32xf32>
    %26 = vector.broadcast %24 : vector<1x32xf32> to vector<504x32xf32>
    %27 = arith.mulf %25, %26 : vector<504x32xf32>
    %28 = vector.broadcast %3 : vector<1x32xf32> to vector<504x32xf32>
    %29 = arith.addf %28, %27 : vector<504x32xf32>
    %30 = vector.extract_strided_slice %22 {offsets = [0, 1], sizes = [504, 1], strides = [1, 1]} : vector<504x2xf32> to vector<504x1xf32>
    %c1_17 = arith.constant 1 : index
    %c0_18 = arith.constant 0 : index
    %31 = vector.load %arg5[%c1_17, %c0_18] : memref<2x32xf32, #tpu.memory_space<vmem>>, vector<1x32xf32>
    %32 = vector.broadcast %30 : vector<504x1xf32> to vector<504x32xf32>
    %33 = vector.broadcast %31 : vector<1x32xf32> to vector<504x32xf32>
    %34 = arith.mulf %32, %33 : vector<504x32xf32>
    %35 = arith.addf %29, %34 : vector<504x32xf32>
    %cst_19 = arith.constant 0.000000e+00 : f32
    %36 = vector.broadcast %cst_19 : f32 to vector<504x32xf32>
    %37 = arith.maximumf %35, %36 : vector<504x32xf32>
    %c0_20 = arith.constant 0 : index
    %c0_21 = arith.constant 0 : index
    %38 = vector.load %arg6[%c0_20, %c0_21] : memref<32x16xf32, #tpu.memory_space<vmem>>, vector<32x16xf32>
    %cst_22 = arith.constant dense<0.000000e+00> : vector<504x16xf32>
    %39 = tpu.matmul %37, %38, %cst_22 {dimension_numbers = #tpu.dot_dimension_numbers<[1], [0], [0], [1], [0, 0, 1, 1], [], []>} : vector<504x32xf32>, vector<32x16xf32>, vector<504x16xf32> -> vector<504x16xf32>
    %40 = vector.broadcast %5 : vector<1x16xf32> to vector<504x16xf32>
    %41 = arith.addf %39, %40 : vector<504x16xf32>
    %c0_23 = arith.constant 0 : index
    %c0_24 = arith.constant 0 : index
    %42 = vector.load %arg8[%c0_23, %c0_24] : memref<504x16xf32, #tpu.memory_space<vmem>>, vector<504x16xf32>
    tpu.vector_store %arg8[%c0_23, %c0_24], %41 {strides = array<i32>} : memref<504x16xf32, #tpu.memory_space<vmem>>, vector<504x16xf32>,
    %c0_25 = arith.constant 0 : index
    %c0_26 = arith.constant 0 : index
    %43 = vector.load %arg9[%c0_25, %c0_26] : memref<504x2xf32, #tpu.memory_space<vmem>>, vector<504x2xf32>
    tpu.vector_store %arg9[%c0_25, %c0_26], %22 {strides = array<i32>} : memref<504x2xf32, #tpu.memory_space<vmem>>, vector<504x2xf32>,
    %c0_27 = arith.constant 0 : index
    %c0_28 = arith.constant 0 : index
    %44 = vector.load %arg10[%c0_27, %c0_28] : memref<504x2xf32, #tpu.memory_space<vmem>>, vector<504x2xf32>
    tpu.vector_store %arg10[%c0_27, %c0_28], %16 {strides = array<i32>} : memref<504x2xf32, #tpu.memory_space<vmem>>, vector<504x2xf32>,
    %c0_29 = arith.constant 0 : index
    %c0_30 = arith.constant 0 : index
    %45 = vector.load %arg11[%c0_29, %c0_30] : memref<504x2xf32, #tpu.memory_space<vmem>>, vector<504x2xf32>
    tpu.vector_store %arg11[%c0_29, %c0_30], %17 {strides = array<i32>} : memref<504x2xf32, #tpu.memory_space<vmem>>, vector<504x2xf32>,
    return
  }
  func.func @transform_0(%arg0: i32) -> (i32, i32) {
    %c0_i32 = arith.constant 0 : i32
    %c0_i32_0 = arith.constant 0 : i32
    return %arg0, %c0_i32 : i32, i32
  }
  func.func @transform_1(%arg0: i32) -> (i32, i32) {
    %c0_i32 = arith.constant 0 : i32
    %c0_i32_0 = arith.constant 0 : i32
    return %arg0, %c0_i32 : i32, i32
  }
  func.func @transform_2(%arg0: i32) -> (i32, i32) {
    %c0_i32 = arith.constant 0 : i32
    %c0_i32_0 = arith.constant 0 : i32
    %c0_i32_1 = arith.constant 0 : i32
    return %c0_i32, %c0_i32_0 : i32, i32
  }
  func.func @transform_3(%arg0: i32) -> (i32, i32) {
    %c0_i32 = arith.constant 0 : i32
    %c0_i32_0 = arith.constant 0 : i32
    %c0_i32_1 = arith.constant 0 : i32
    return %c0_i32, %c0_i32_0 : i32, i32
  }
  func.func @transform_4(%arg0: i32) -> (i32, i32) {
    %c0_i32 = arith.constant 0 : i32
    %c0_i32_0 = arith.constant 0 : i32
    %c0_i32_1 = arith.constant 0 : i32
    return %c0_i32, %c0_i32_0 : i32, i32
  }
  func.func @transform_5(%arg0: i32) -> (i32, i32) {
    %c0_i32 = arith.constant 0 : i32
    %c0_i32_0 = arith.constant 0 : i32
    %c0_i32_1 = arith.constant 0 : i32
    return %c0_i32, %c0_i32_0 : i32, i32
  }
  func.func @transform_6(%arg0: i32) -> (i32, i32) {
    %c0_i32 = arith.constant 0 : i32
    %c0_i32_0 = arith.constant 0 : i32
    %c0_i32_1 = arith.constant 0 : i32
    return %c0_i32, %c0_i32_0 : i32, i32
  }
  func.func @transform_7(%arg0: i32) -> (i32, i32) {
    %c0_i32 = arith.constant 0 : i32
    %c0_i32_0 = arith.constant 0 : i32
    return %arg0, %c0_i32 : i32, i32
  }
  func.func @transform_8(%arg0: i32) -> (i32, i32) {
    %c0_i32 = arith.constant 0 : i32
    %c0_i32_0 = arith.constant 0 : i32
    return %arg0, %c0_i32 : i32, i32
  }
  func.func @transform_9(%arg0: i32) -> (i32, i32) {
    %c0_i32 = arith.constant 0 : i32
    %c0_i32_0 = arith.constant 0 : i32
    return %arg0, %c0_i32 : i32, i32
  }
  func.func @transform_10(%arg0: i32) -> (i32, i32) {
    %c0_i32 = arith.constant 0 : i32
    %c0_i32_0 = arith.constant 0 : i32
    return %arg0, %c0_i32 : i32, i32
  }
}

</mosaic_0001>

<llo_original>
// kernel: ae1d_forward.1
$region0: #{ae1d_forward.1}
  #allocation0 [shape = 'u32[]', space=smem, size = 0x4, offset = 0x4, fixed_abs, tag = 'smem constant byte address 0x4 - core index']
  #allocation1 [shape = 'u32[144,128]{1,0:T(1,128)}', space=vmem, size = 0x12000, scoped, tag = 'internal scratch']
  %s0 = inlined_call_operand.vmem [shape: f32[1000,16], index: 0, kind: input, shape index: {}]
  %s1 = inlined_call_operand.vmem [shape: f32[1000,2], index: 1, kind: input, shape index: {}]
  %s2 = inlined_call_operand.vmem [shape: f32[16,32], index: 2, kind: input, shape index: {}]
  %s3 = inlined_call_operand.vmem [shape: f32[32,4], index: 3, kind: input, shape index: {}]
  %s4 = inlined_call_operand.vmem [shape: f32[2,32], index: 4, kind: input, shape index: {}]
  %s5 = inlined_call_operand.vmem [shape: f32[32,16], index: 5, kind: input, shape index: {}]
  %s6 = inlined_call_operand.vmem [shape: f32[8,32], index: 6, kind: input, shape index: {}]
  %s7 = inlined_call_operand.vmem [shape: f32[1000,16], index: 7, kind: output, shape index: {0}]
  %s8 = inlined_call_operand.vmem [shape: f32[1000,2], index: 8, kind: output, shape index: {1}]
  %s9 = inlined_call_operand.vmem [shape: f32[1000,2], index: 9, kind: output, shape index: {2}]
  %s10 = inlined_call_operand.vmem [shape: f32[1000,2], index: 10, kind: output, shape index: {3}]
  %11 = xla_tuple %s7, %s8, %s9, %s10
  %s12 = sld [smem:[#allocation0]]
  $region277: #{ae1d_forward.1} parent=0
    _
  %s14 = ssub.s32 1, %s12
  %s15 = scalar_select 0, %s14, %s12
  $region1: #{ae1d_forward.1} parent=0
    #allocation2 [shape = 'u8[516096]{0}', space=vmem, size = 0x7e000, scoped, tag = 'output window, operand 0']
    #allocation3 [shape = 'u8[516096]{0}', space=vmem, size = 0x7e000, scoped, tag = 'output window, operand 1']
    #allocation4 [shape = 'u8[516096]{0}', space=vmem, size = 0x7e000, scoped, tag = 'output window, operand 2']
    #allocation5 [shape = 'u8[516096]{0}', space=vmem, size = 0x7e000, scoped, tag = 'output window, operand 3']
    loop: start=0, step=1, limit=4
    $region2: #{ae1d_forward.1} parent=1 // loop_pre_header
      _
    $region3: #{ae1d_forward.1} parent=1 // loop_header
      %s17 = sphi 0, %s21
      %p18 = scmp.ge.s32.totalorder %s17, 4
      %s27 = sphi 0, %s29
      %s30 = sphi 0, %s27
      %s31 = sphi 0, %s30
      %s47 = sphi 0, %s31
      %s53 = sphi 0, %s55
      %s56 = sphi 0, %s53
      %s57 = sphi 0, %s56
      %s73 = sphi 0, %s57
      %s77 = sphi 0, %s77
      %s79 = sphi 0, %s77
      %s80 = sphi 0, %s79
      %s94 = sphi 0, %s80
      %s98 = sphi 0, %s98
      %s100 = sphi 0, %s98
      %s101 = sphi 0, %s100
      %s115 = sphi 0, %s101
      %s119 = sphi 0, %s119
      %s121 = sphi 0, %s119
      %s122 = sphi 0, %s121
      %s136 = sphi 0, %s122
      %s140 = sphi 0, %s140
      %s142 = sphi 0, %s140
      %s143 = sphi 0, %s142
      %s157 = sphi 0, %s143
      %s161 = sphi 0, %s161
      %s163 = sphi 0, %s161
      %s164 = sphi 0, %s163
      %s178 = sphi 0, %s164
      %s184 = sphi 0, %s186
      %s187 = sphi 0, %s184
      %s188 = sphi 0, %s187
      %s204 = sphi 0, %s188
      %s210 = sphi 0, %s212
      %s213 = sphi 0, %s210
      %s214 = sphi 0, %s213
      %s230 = sphi 0, %s214
      %s236 = sphi 0, %s238
      %s239 = sphi 0, %s236
      %s240 = sphi 0, %s239
      %s256 = sphi 0, %s240
      %s262 = sphi 0, %s264
      %s265 = sphi 0, %s262
      %s266 = sphi 0, %s265
      %s282 = sphi 0, %s266
    $region4: #{ae1d_forward.1} parent=1 // loop_header_branch
      %20 = sbr.rel (%p18) target = $region8
    $region5: #{ae1d_forward.1} parent=1 // loop_body
      %s22 = ssub.s32 %s17, 1
      %s23 = ssub.s32 %s17, 2
      %s24 = sadd.s32 %s17, 1
      %s25 = ssub.s32 %s17, %s24
      %p26 = scmp.eq.s32.totalorder %s25, 0
      %s28 = sadd.s32 %s27, 1
      %s29 = scalar_select %p26, %s27, %s28
      %p32 = pneg %p26
      %p33 = scmp.eq.s32.totalorder %s17, 1
      %p34 = por %p32, %p33
      %p35 = scmp.ne.s32.totalorder %s27, %s30
      %p36 = scmp.eq.s32.totalorder %s17, 0
      %p37 = por %p35, %p36
      %p38 = scmp.ne.s32.totalorder %s27, %s30
      %p39 = scmp.eq.s32.totalorder %s22, 1
      %p40 = por %p38, %p39
      %p41 = scmp.ne.s32.totalorder %s30, %s31
      %p42 = scmp.eq.s32.totalorder %s22, 0
      %p43 = por %p41, %p42
      %p44 = scmp.ne.s32.totalorder %s30, %s31
      %p45 = scmp.eq.s32.totalorder %s23, 1
      %p46 = por %p44, %p45
      %p48 = scmp.ne.s32.totalorder %s31, %s47
      %p49 = scmp.eq.s32.totalorder %s23, 0
      %p50 = por %p48, %p49
      %s51 = ssub.s32 %s17, %s24
      %p52 = scmp.eq.s32.totalorder %s51, 0
      %s54 = sadd.s32 %s53, 1
      %s55 = scalar_select %p52, %s53, %s54
      %p58 = pneg %p52
      %p59 = scmp.eq.s32.totalorder %s17, 1
      %p60 = por %p58, %p59
      %p61 = scmp.ne.s32.totalorder %s53, %s56
      %p62 = scmp.eq.s32.totalorder %s17, 0
      %p63 = por %p61, %p62
      %p64 = scmp.ne.s32.totalorder %s53, %s56
      %p65 = scmp.eq.s32.totalorder %s22, 1
      %p66 = por %p64, %p65
      %p67 = scmp.ne.s32.totalorder %s56, %s57
      %p68 = scmp.eq.s32.totalorder %s22, 0
      %p69 = por %p67, %p68
      %p70 = scmp.ne.s32.totalorder %s56, %s57
      %p71 = scmp.eq.s32.totalorder %s23, 1
      %p72 = por %p70, %p71
      %p74 = scmp.ne.s32.totalorder %s57, %s73
      %p75 = scmp.eq.s32.totalorder %s23, 0
      %p76 = por %p74, %p75
      %s78 = sadd.s32 %s77, 1
      %p81 = scmp.eq.s32.totalorder %s17, 1
      %p82 = scmp.ne.s32.totalorder %s77, %s79
      %p83 = scmp.eq.s32.totalorder %s17, 0
      %p84 = por %p82, %p83
      %p85 = scmp.ne.s32.totalorder %s77, %s79
      %p86 = scmp.eq.s32.totalorder %s22, 1
      %p87 = por %p85, %p86
      %p88 = scmp.ne.s32.totalorder %s79, %s80
      %p89 = scmp.eq.s32.totalorder %s22, 0
      %p90 = por %p88, %p89
      %p91 = scmp.ne.s32.totalorder %s79, %s80
      %p92 = scmp.eq.s32.totalorder %s23, 1
      %p93 = por %p91, %p92
      %p95 = scmp.ne.s32.totalorder %s80, %s94
      %p96 = scmp.eq.s32.totalorder %s23, 0
      %p97 = por %p95, %p96
      %s99 = sadd.s32 %s98, 1
      %p102 = scmp.eq.s32.totalorder %s17, 1
      %p103 = scmp.ne.s32.totalorder %s98, %s100
      %p104 = scmp.eq.s32.totalorder %s17, 0
      %p105 = por %p103, %p104
      %p106 = scmp.ne.s32.totalorder %s98, %s100
      %p107 = scmp.eq.s32.totalorder %s22, 1
      %p108 = por %p106, %p107
      %p109 = scmp.ne.s32.totalorder %s100, %s101
      %p110 = scmp.eq.s32.totalorder %s22, 0
      %p111 = por %p109, %p110
      %p112 = scmp.ne.s32.totalorder %s100, %s101
      %p113 = scmp.eq.s32.totalorder %s23, 1
      %p114 = por %p112, %p113
      %p116 = scmp.ne.s32.totalorder %s101, %s115
      %p117 = scmp.eq.s32.totalorder %s23, 0
      %p118 = por %p116, %p117
      %s120 = sadd.s32 %s119, 1
      %p123 = scmp.eq.s32.totalorder %s17, 1
      %p124 = scmp.ne.s32.totalorder %s119, %s121
      %p125 = scmp.eq.s32.totalorder %s17, 0
      %p126 = por %p124, %p125
      %p127 = scmp.ne.s32.totalorder %s119, %s121
      %p128 = scmp.eq.s32.totalorder %s22, 1
      %p129 = por %p127, %p128
      %p130 = scmp.ne.s32.totalorder %s121, %s122
      %p131 = scmp.eq.s32.totalorder %s22, 0
      %p132 = por %p130, %p131
      %p133 = scmp.ne.s32.totalorder %s121, %s122
      %p134 = scmp.eq.s32.totalorder %s23, 1
      %p135 = por %p133, %p134
      %p137 = scmp.ne.s32.totalorder %s122, %s136
      %p138 = scmp.eq.s32.totalorder %s23, 0
      %p139 = por %p137, %p138
      %s141 = sadd.s32 %s140, 1
      %p144 = scmp.eq.s32.totalorder %s17, 1
      %p145 = scmp.ne.s32.totalorder %s140, %s142
      %p146 = scmp.eq.s32.totalorder %s17, 0
      %p147 = por %p145, %p146
      %p148 = scmp.ne.s32.totalorder %s140, %s142
      %p149 = scmp.eq.s32.totalorder %s22, 1
      %p150 = por %p148, %p149
      %p151 = scmp.ne.s32.totalorder %s142, %s143
      %p152 = scmp.eq.s32.totalorder %s22, 0
      %p153 = por %p151, %p152
      %p154 = scmp.ne.s32.totalorder %s142, %s143
      %p155 = scmp.eq.s32.totalorder %s23, 1
      %p156 = por %p154, %p155
      %p158 = scmp.ne.s32.totalorder %s143, %s157
      %p159 = scmp.eq.s32.totalorder %s23, 0
      %p160 = por %p158, %p159
      %s162 = sadd.s32 %s161, 1
      %p165 = scmp.eq.s32.totalorder %s17, 1
      %p166 = scmp.ne.s32.totalorder %s161, %s163
      %p167 = scmp.eq.s32.totalorder %s17, 0
      %p168 = por %p166, %p167
      %p169 = scmp.ne.s32.totalorder %s161, %s163
      %p170 = scmp.eq.s32.totalorder %s22, 1
      %p171 = por %p169, %p170
      %p172 = scmp.ne.s32.totalorder %s163, %s164
      %p173 = scmp.eq.s32.totalorder %s22, 0
      %p174 = por %p172, %p173
      %p175 = scmp.ne.s32.totalorder %s163, %s164
      %p176 = scmp.eq.s32.totalorder %s23, 1
      %p177 = por %p175, %p176
      %p179 = scmp.ne.s32.totalorder %s164, %s178
      %p180 = scmp.eq.s32.totalorder %s23, 0
      %p181 = por %p179, %p180
      %s182 = ssub.s32 %s17, %s24
      %p183 = scmp.eq.s32.totalorder %s182, 0
      %s185 = sadd.s32 %s184, 1
      %s186 = scalar_select %p183, %s184, %s185
      %p189 = pneg %p183
      %p190 = scmp.eq.s32.totalorder %s17, 1
      %p191 = por %p189, %p190
      %p192 = scmp.ne.s32.totalorder %s184, %s187
      %p193 = scmp.eq.s32.totalorder %s17, 0
      %p194 = por %p192, %p193
      %p195 = scmp.ne.s32.totalorder %s184, %s187
      %p196 = scmp.eq.s32.totalorder %s22, 1
      %p197 = por %p195, %p196
      %p198 = scmp.ne.s32.totalorder %s187, %s188
      %p199 = scmp.eq.s32.totalorder %s22, 0
      %p200 = por %p198, %p199
      %p201 = scmp.ne.s32.totalorder %s187, %s188
      %p202 = scmp.eq.s32.totalorder %s23, 1
      %p203 = por %p201, %p202
      %p205 = scmp.ne.s32.totalorder %s188, %s204
      %p206 = scmp.eq.s32.totalorder %s23, 0
      %p207 = por %p205, %p206
      %s208 = ssub.s32 %s17, %s24
      %p209 = scmp.eq.s32.totalorder %s208, 0
      %s211 = sadd.s32 %s210, 1
      %s212 = scalar_select %p209, %s210, %s211
      %p215 = pneg %p209
      %p216 = scmp.eq.s32.totalorder %s17, 1
      %p217 = por %p215, %p216
      %p218 = scmp.ne.s32.totalorder %s210, %s213
      %p219 = scmp.eq.s32.totalorder %s17, 0
      %p220 = por %p218, %p219
      %p221 = scmp.ne.s32.totalorder %s210, %s213
      %p222 = scmp.eq.s32.totalorder %s22, 1
      %p223 = por %p221, %p222
      %p224 = scmp.ne.s32.totalorder %s213, %s214
      %p225 = scmp.eq.s32.totalorder %s22, 0
      %p226 = por %p224, %p225
      %p227 = scmp.ne.s32.totalorder %s213, %s214
      %p228 = scmp.eq.s32.totalorder %s23, 1
      %p229 = por %p227, %p228
      %p231 = scmp.ne.s32.totalorder %s214, %s230
      %p232 = scmp.eq.s32.totalorder %s23, 0
      %p233 = por %p231, %p232
      %s234 = ssub.s32 %s17, %s24
      %p235 = scmp.eq.s32.totalorder %s234, 0
      %s237 = sadd.s32 %s236, 1
      %s238 = scalar_select %p235, %s236, %s237
      %p241 = pneg %p235
      %p242 = scmp.eq.s32.totalorder %s17, 1
      %p243 = por %p241, %p242
      %p244 = scmp.ne.s32.totalorder %s236, %s239
      %p245 = scmp.eq.s32.totalorder %s17, 0
      %p246 = por %p244, %p245
      %p247 = scmp.ne.s32.totalorder %s236, %s239
      %p248 = scmp.eq.s32.totalorder %s22, 1
      %p249 = por %p247, %p248
      %p250 = scmp.ne.s32.totalorder %s239, %s240
      %p251 = scmp.eq.s32.totalorder %s22, 0
      %p252 = por %p250, %p251
      %p253 = scmp.ne.s32.totalorder %s239, %s240
      %p254 = scmp.eq.s32.totalorder %s23, 1
      %p255 = por %p253, %p254
      %p257 = scmp.ne.s32.totalorder %s240, %s256
      %p258 = scmp.eq.s32.totalorder %s23, 0
      %p259 = por %p257, %p258
      %s260 = ssub.s32 %s17, %s24
      %p261 = scmp.eq.s32.totalorder %s260, 0
      %s263 = sadd.s32 %s262, 1
      %s264 = scalar_select %p261, %s262, %s263
      %p267 = pneg %p261
      %p268 = scmp.eq.s32.totalorder %s17, 1
      %p269 = por %p267, %p268
      %p270 = scmp.ne.s32.totalorder %s262, %s265
      %p271 = scmp.eq.s32.totalorder %s17, 0
      %p272 = por %p270, %p271
      %p273 = scmp.ne.s32.totalorder %s262, %s265
      %p274 = scmp.eq.s32.totalorder %s22, 1
      %p275 = por %p273, %p274
      %p276 = scmp.ne.s32.totalorder %s265, %s266
      %p277 = scmp.eq.s32.totalorder %s22, 0
      %p278 = por %p276, %p277
      %p279 = scmp.ne.s32.totalorder %s265, %s266
      %p280 = scmp.eq.s32.totalorder %s23, 1
      %p281 = por %p279, %p280
      %p283 = scmp.ne.s32.totalorder %s266, %s282
      %p284 = scmp.eq.s32.totalorder %s23, 0
      %p285 = por %p283, %p284
      %p286 = scmp.le.s32.totalorder 1, %s17
      %p287 = scmp.lt.s32.totalorder %s17, 3
      %p288 = pnand %p286, %p287
      %p289 = pneg %p288
      // Predicated region
      $region9: #{ae1d_forward.1} parent=5 // pred_check
        _
      $region10: #{ae1d_forward.1} parent=5 // pred_check_branch
        %291 = sbr.rel (%p288) target = $region12
      $region11: #{ae1d_forward.1} parent=5 // pred_region
        %s292 = ssub.s32 %s17, 1
        // Predicated region
        $region13: #{ae1d_forward.1} parent=11 // pred_check
          %p293 = pneg %p90
        $region14: #{ae1d_forward.1} parent=11 // pred_check_branch
          %295 = sbr.rel (%p293) target = $region16
        $region15: #{ae1d_forward.1} parent=11 // pred_region
          _
        $region16: #{ae1d_forward.1} parent=11 // pred_fallthru
          _
        // Predicated region
        $region17: #{ae1d_forward.1} parent=11 // pred_check
          %p296 = pneg %p111
        $region18: #{ae1d_forward.1} parent=11 // pred_check_branch
          %298 = sbr.rel (%p296) target = $region20
        $region19: #{ae1d_forward.1} parent=11 // pred_region
          _
        $region20: #{ae1d_forward.1} parent=11 // pred_fallthru
          _
        // Predicated region
        $region21: #{ae1d_forward.1} parent=11 // pred_check
          %p299 = pneg %p132
        $region22: #{ae1d_forward.1} parent=11 // pred_check_branch
          %301 = sbr.rel (%p299) target = $region24
        $region23: #{ae1d_forward.1} parent=11 // pred_region
          _
        $region24: #{ae1d_forward.1} parent=11 // pred_fallthru
          _
        // Predicated region
        $region25: #{ae1d_forward.1} parent=11 // pred_check
          %p302 = pneg %p153
        $region26: #{ae1d_forward.1} parent=11 // pred_check_branch
          %304 = sbr.rel (%p302) target = $region28
        $region27: #{ae1d_forward.1} parent=11 // pred_region
          _
        $region28: #{ae1d_forward.1} parent=11 // pred_fallthru
          _
        // Predicated region
        $region29: #{ae1d_forward.1} parent=11 // pred_check
          %p305 = pneg %p174
        $region30: #{ae1d_forward.1} parent=11 // pred_check_branch
          %307 = sbr.rel (%p305) target = $region32
        $region31: #{ae1d_forward.1} parent=11 // pred_region
          _
        $region32: #{ae1d_forward.1} parent=11 // pred_fallthru
          _
      $region12: #{ae1d_forward.1} parent=5 // pred_fallthru
        _
      %p308 = scmp.lt.s32.totalorder %s17, 2
      // Predicated region
      $region33: #{ae1d_forward.1} parent=5 // pred_check
        %p309 = pneg %p308
      $region34: #{ae1d_forward.1} parent=5 // pred_check_branch
        %311 = sbr.rel (%p309) target = $region36
      $region35: #{ae1d_forward.1} parent=5 // pred_region
        // Predicated region
        $region37: #{ae1d_forward.1} parent=35 // pred_check
          %p312 = pneg %p37
        $region38: #{ae1d_forward.1} parent=35 // pred_check_branch
          %314 = sbr.rel (%p312) target = $region40
        $region39: #{ae1d_forward.1} parent=35 // pred_region
          %s315 = smul.u32 63, %s17
          %s316 = ssub.s32 125, %s315
          %p317 = scmp.lt.s32.totalorder %s316, 63
          %s318 = scalar_select %p317, %s316, 63
          %s319 = smul.u32 128, %s318
          %p320 = scmp.lt.s32.totalorder %s315, 124
          %s321 = scalar_select %p320, %s315, 124
          %s322 = smul.addr %s321, 8
          %s323 = scalar_lea.vmem %s0, %s322
          %s324 = smul.u32 63, %s17
          %s325 = ssub.s32 125, %s324
          %p326 = scmp.lt.s32.totalorder %s325, 63
          %s327 = scalar_select %p326, %s325, 63
          %s328 = smul.u32 128, %s327
        $region40: #{ae1d_forward.1} parent=35 // pred_fallthru
          _
        // Predicated region
        $region41: #{ae1d_forward.1} parent=35 // pred_check
          %p329 = pneg %p63
        $region42: #{ae1d_forward.1} parent=35 // pred_check_branch
          %331 = sbr.rel (%p329) target = $region44
        $region43: #{ae1d_forward.1} parent=35 // pred_region
          %s332 = smul.u32 63, %s17
          %s333 = ssub.s32 125, %s332
          %p334 = scmp.lt.s32.totalorder %s333, 63
          %s335 = scalar_select %p334, %s333, 63
          %s336 = smul.u32 128, %s335
          %p337 = scmp.lt.s32.totalorder %s332, 124
          %s338 = scalar_select %p337, %s332, 124
          %s339 = smul.addr %s338, 8
          %s340 = scalar_lea.vmem %s1, %s339
          %s341 = smul.u32 63, %s17
          %s342 = ssub.s32 125, %s341
          %p343 = scmp.lt.s32.totalorder %s342, 63
          %s344 = scalar_select %p343, %s342, 63
          %s345 = smul.u32 128, %s344
        $region44: #{ae1d_forward.1} parent=35 // pred_fallthru
          _
      $region36: #{ae1d_forward.1} parent=5 // pred_fallthru
        _
      %p346 = scmp.le.s32.totalorder 1, %s17
      %p347 = scmp.lt.s32.totalorder %s17, 3
      %p348 = pnand %p346, %p347
      %p349 = pneg %p348
      // Predicated region
      $region45: #{ae1d_forward.1} parent=5 // pred_check
        _
      $region46: #{ae1d_forward.1} parent=5 // pred_check_branch
        %351 = sbr.rel (%p348) target = $region48
      $region47: #{ae1d_forward.1} parent=5 // pred_region
        %s352 = ssub.s32 %s17, 1
        %s353 = smul.u32 63, %s22
        %s354 = ssub.s32 125, %s353
        %p355 = scmp.lt.s32.totalorder %s354, 63
        %s356 = scalar_select %p355, %s354, 63
        %s357 = smul.u32 128, %s356
        %p358 = scmp.lt.s32.totalorder %s353, 124
        %s359 = scalar_select %p358, %s353, 124
        %s360 = smul.addr %s359, 8
        %s361 = scalar_lea.vmem %s0, %s360
        %p362 = pneg %p43
        %p363 = pneg %p40
        %s364 = smul.u32 63, %s22
        %s365 = ssub.s32 125, %s364
        %p366 = scmp.lt.s32.totalorder %s365, 63
        %s367 = scalar_select %p366, %s365, 63
        %s368 = smul.u32 128, %s367
        %p369 = scmp.lt.s32.totalorder %s364, 124
        %s370 = scalar_select %p369, %s364, 124
        %s371 = smul.addr %s370, 8
        %s372 = scalar_lea.vmem %s1, %s371
        %p373 = pneg %p69
        %p374 = pneg %p66
        %p375 = pneg %p90
        %p376 = pneg %p87
        %p377 = pneg %p111
        %p378 = pneg %p108
        %p379 = pneg %p132
        %p380 = pneg %p129
        %p381 = pneg %p153
        %p382 = pneg %p150
        %p383 = pneg %p174
        %p384 = pneg %p171
        %p385 = pneg %p200
        %p386 = pneg %p197
        %s387 = sand.u32 %s187, 1
        %s388 = sand.u32 %s187, 1
        %s389 = smul.addr %s388, 504
        %s390 = scalar_lea.vmem [#allocation2], %s389
        %p391 = pneg %p226
        %p392 = pneg %p223
        %s393 = sand.u32 %s213, 1
        %s394 = sand.u32 %s213, 1
        %s395 = smul.addr %s394, 504
        %s396 = scalar_lea.vmem [#allocation3], %s395
        %p397 = pneg %p252
        %p398 = pneg %p249
        %s399 = sand.u32 %s239, 1
        %s400 = sand.u32 %s239, 1
        %s401 = smul.addr %s400, 504
        %s402 = scalar_lea.vmem [#allocation4], %s401
        %p403 = pneg %p278
        %p404 = pneg %p275
        %s405 = sand.u32 %s265, 1
        %s406 = sand.u32 %s265, 1
        %s407 = smul.addr %s406, 504
        %s408 = scalar_lea.vmem [#allocation5], %s407
        %s409 = smul.u32 63, %s22
        %s410 = ssub.s32 125, %s409
        %p411 = scmp.lt.s32.totalorder %s410, 63
        %s412 = scalar_select %p411, %s410, 63
        %s413 = smul.u32 128, %s412
        %p414 = scmp.lt.s32.totalorder %s409, 124
        %s415 = scalar_select %p414, %s409, 124
        %s416 = smul.addr %s415, 8
        %s417 = scalar_lea.vmem %s0, %s416
        %s418 = smul.u32 63, %s22
        %s419 = ssub.s32 125, %s418
        %p420 = scmp.lt.s32.totalorder %s419, 63
        %s421 = scalar_select %p420, %s419, 63
        %s422 = smul.u32 128, %s421
        %s423 = smul.u32 63, %s22
        %s424 = ssub.s32 125, %s423
        %p425 = scmp.lt.s32.totalorder %s424, 63
        %s426 = scalar_select %p425, %s424, 63
        %s427 = smul.u32 128, %s426
        %p428 = scmp.lt.s32.totalorder %s423, 124
        %s429 = scalar_select %p428, %s423, 124
        %s430 = smul.addr %s429, 8
        %s431 = scalar_lea.vmem %s1, %s430
        %s432 = smul.u32 63, %s22
        %s433 = ssub.s32 125, %s432
        %p434 = scmp.lt.s32.totalorder %s433, 63
        %s435 = scalar_select %p434, %s433, 63
        %s436 = smul.u32 128, %s435
        %s437 = smul.u32 63, %s22
        %s438 = ssub.s32 125, %s437
        %p439 = scmp.lt.s32.totalorder %s438, 63
        %s440 = scalar_select %p439, %s438, 63
        %s441 = smul.u32 128, %s440
        %s442 = smul.u32 63, %s22
        %s443 = ssub.s32 125, %s442
        %p444 = scmp.lt.s32.totalorder %s443, 63
        %s445 = scalar_select %p444, %s443, 63
        %s446 = smul.u32 128, %s445
        %s447 = smul.u32 63, %s22
        %s448 = ssub.s32 125, %s447
        %p449 = scmp.lt.s32.totalorder %s448, 63
        %s450 = scalar_select %p449, %s448, 63
        %s451 = smul.u32 128, %s450
        %s452 = smul.u32 63, %s22
        %s453 = ssub.s32 125, %s452
        %p454 = scmp.lt.s32.totalorder %s453, 63
        %s455 = scalar_select %p454, %s453, 63
        %s456 = smul.u32 128, %s455
        %v457 = vld [vmem:[%s417] sm:$0xff]
        %v458 = vld [vmem:[%s417 + $0x8] sm:$0xff]
        %v459 = vld [vmem:[%s417 + $0x10] sm:$0xff]
        %v460 = vld [vmem:[%s417 + $0x18] sm:$0xff]
        %v461 = vld [vmem:[%s417 + $0x20] sm:$0xff]
        %v462 = vld [vmem:[%s417 + $0x28] sm:$0xff]
        %v463 = vld [vmem:[%s417 + $0x30] sm:$0xff]
        %v464 = vld [vmem:[%s417 + $0x38] sm:$0xff]
        %v465 = vld [vmem:[%s417 + $0x40] sm:$0xff]
        %v466 = vld [vmem:[%s417 + $0x48] sm:$0xff]
        %v467 = vld [vmem:[%s417 + $0x50] sm:$0xff]
        %v468 = vld [vmem:[%s417 + $0x58] sm:$0xff]
        %v469 = vld [vmem:[%s417 + $0x60] sm:$0xff]
        %v470 = vld [vmem:[%s417 + $0x68] sm:$0xff]
        %v471 = vld [vmem:[%s417 + $0x70] sm:$0xff]
        %v472 = vld [vmem:[%s417 + $0x78] sm:$0xff]
        %v473 = vld [vmem:[%s417 + $0x80] sm:$0xff]
        %v474 = vld [vmem:[%s417 + $0x88] sm:$0xff]
        %v475 = vld [vmem:[%s417 + $0x90] sm:$0xff]
        %v476 = vld [vmem:[%s417 + $0x98] sm:$0xff]
        %v477 = vld [vmem:[%s417 + $0xa0] sm:$0xff]
        %v478 = vld [vmem:[%s417 + $0xa8] sm:$0xff]
        %v479 = vld [vmem:[%s417 + $0xb0] sm:$0xff]
        %v480 = vld [vmem:[%s417 + $0xb8] sm:$0xff]
        %v481 = vld [vmem:[%s417 + $0xc0] sm:$0xff]
        %v482 = vld [vmem:[%s417 + $0xc8] sm:$0xff]
        %v483 = vld [vmem:[%s417 + $0xd0] sm:$0xff]
        %v484 = vld [vmem:[%s417 + $0xd8] sm:$0xff]
        %v485 = vld [vmem:[%s417 + $0xe0] sm:$0xff]
        %v486 = vld [vmem:[%s417 + $0xe8] sm:$0xff]
        %v487 = vld [vmem:[%s417 + $0xf0] sm:$0xff]
        %v488 = vld [vmem:[%s417 + $0xf8] sm:$0xff]
        %v489 = vld [vmem:[%s417 + $0x100] sm:$0xff]
        %v490 = vld [vmem:[%s417 + $0x108] sm:$0xff]
        %v491 = vld [vmem:[%s417 + $0x110] sm:$0xff]
        %v492 = vld [vmem:[%s417 + $0x118] sm:$0xff]
        %v493 = vld [vmem:[%s417 + $0x120] sm:$0xff]
        %v494 = vld [vmem:[%s417 + $0x128] sm:$0xff]
        %v495 = vld [vmem:[%s417 + $0x130] sm:$0xff]
        %v496 = vld [vmem:[%s417 + $0x138] sm:$0xff]
        %v497 = vld [vmem:[%s417 + $0x140] sm:$0xff]
        %v498 = vld [vmem:[%s417 + $0x148] sm:$0xff]
        %v499 = vld [vmem:[%s417 + $0x150] sm:$0xff]
        %v500 = vld [vmem:[%s417 + $0x158] sm:$0xff]
        %v501 = vld [vmem:[%s417 + $0x160] sm:$0xff]
        %v502 = vld [vmem:[%s417 + $0x168] sm:$0xff]
        %v503 = vld [vmem:[%s417 + $0x170] sm:$0xff]
        %v504 = vld [vmem:[%s417 + $0x178] sm:$0xff]
        %v505 = vld [vmem:[%s417 + $0x180] sm:$0xff]
        %v506 = vld [vmem:[%s417 + $0x188] sm:$0xff]
        %v507 = vld [vmem:[%s417 + $0x190] sm:$0xff]
        %v508 = vld [vmem:[%s417 + $0x198] sm:$0xff]
        %v509 = vld [vmem:[%s417 + $0x1a0] sm:$0xff]
        %v510 = vld [vmem:[%s417 + $0x1a8] sm:$0xff]
        %v511 = vld [vmem:[%s417 + $0x1b0] sm:$0xff]
        %v512 = vld [vmem:[%s417 + $0x1b8] sm:$0xff]
        %v513 = vld [vmem:[%s417 + $0x1c0] sm:$0xff]
        %v514 = vld [vmem:[%s417 + $0x1c8] sm:$0xff]
        %v515 = vld [vmem:[%s417 + $0x1d0] sm:$0xff]
        %v516 = vld [vmem:[%s417 + $0x1d8] sm:$0xff]
        %v517 = vld [vmem:[%s417 + $0x1e0] sm:$0xff]
        %v518 = vld [vmem:[%s417 + $0x1e8] sm:$0xff]
        %v519 = vld [vmem:[%s417 + $0x1f0] sm:$0xff]
        %v520 = vld [vmem:[%s431] sm:$0xff]
        %v521 = vld [vmem:[%s431 + $0x8] sm:$0xff]
        %v522 = vld [vmem:[%s431 + $0x10] sm:$0xff]
        %v523 = vld [vmem:[%s431 + $0x18] sm:$0xff]
        %v524 = vld [vmem:[%s431 + $0x20] sm:$0xff]
        %v525 = vld [vmem:[%s431 + $0x28] sm:$0xff]
        %v526 = vld [vmem:[%s431 + $0x30] sm:$0xff]
        %v527 = vld [vmem:[%s431 + $0x38] sm:$0xff]
        %v528 = vld [vmem:[%s431 + $0x40] sm:$0xff]
        %v529 = vld [vmem:[%s431 + $0x48] sm:$0xff]
        %v530 = vld [vmem:[%s431 + $0x50] sm:$0xff]
        %v531 = vld [vmem:[%s431 + $0x58] sm:$0xff]
        %v532 = vld [vmem:[%s431 + $0x60] sm:$0xff]
        %v533 = vld [vmem:[%s431 + $0x68] sm:$0xff]
        %v534 = vld [vmem:[%s431 + $0x70] sm:$0xff]
        %v535 = vld [vmem:[%s431 + $0x78] sm:$0xff]
        %v536 = vld [vmem:[%s431 + $0x80] sm:$0xff]
        %v537 = vld [vmem:[%s431 + $0x88] sm:$0xff]
        %v538 = vld [vmem:[%s431 + $0x90] sm:$0xff]
        %v539 = vld [vmem:[%s431 + $0x98] sm:$0xff]
        %v540 = vld [vmem:[%s431 + $0xa0] sm:$0xff]
        %v541 = vld [vmem:[%s431 + $0xa8] sm:$0xff]
        %v542 = vld [vmem:[%s431 + $0xb0] sm:$0xff]
        %v543 = vld [vmem:[%s431 + $0xb8] sm:$0xff]
        %v544 = vld [vmem:[%s431 + $0xc0] sm:$0xff]
        %v545 = vld [vmem:[%s431 + $0xc8] sm:$0xff]
        %v546 = vld [vmem:[%s431 + $0xd0] sm:$0xff]
        %v547 = vld [vmem:[%s431 + $0xd8] sm:$0xff]
        %v548 = vld [vmem:[%s431 + $0xe0] sm:$0xff]
        %v549 = vld [vmem:[%s431 + $0xe8] sm:$0xff]
        %v550 = vld [vmem:[%s431 + $0xf0] sm:$0xff]
        %v551 = vld [vmem:[%s431 + $0xf8] sm:$0xff]
        %v552 = vld [vmem:[%s431 + $0x100] sm:$0xff]
        %v553 = vld [vmem:[%s431 + $0x108] sm:$0xff]
        %v554 = vld [vmem:[%s431 + $0x110] sm:$0xff]
        %v555 = vld [vmem:[%s431 + $0x118] sm:$0xff]
        %v556 = vld [vmem:[%s431 + $0x120] sm:$0xff]
        %v557 = vld [vmem:[%s431 + $0x128] sm:$0xff]
        %v558 = vld [vmem:[%s431 + $0x130] sm:$0xff]
        %v559 = vld [vmem:[%s431 + $0x138] sm:$0xff]
        %v560 = vld [vmem:[%s431 + $0x140] sm:$0xff]
        %v561 = vld [vmem:[%s431 + $0x148] sm:$0xff]
        %v562 = vld [vmem:[%s431 + $0x150] sm:$0xff]
        %v563 = vld [vmem:[%s431 + $0x158] sm:$0xff]
        %v564 = vld [vmem:[%s431 + $0x160] sm:$0xff]
        %v565 = vld [vmem:[%s431 + $0x168] sm:$0xff]
        %v566 = vld [vmem:[%s431 + $0x170] sm:$0xff]
        %v567 = vld [vmem:[%s431 + $0x178] sm:$0xff]
        %v568 = vld [vmem:[%s431 + $0x180] sm:$0xff]
        %v569 = vld [vmem:[%s431 + $0x188] sm:$0xff]
        %v570 = vld [vmem:[%s431 + $0x190] sm:$0xff]
        %v571 = vld [vmem:[%s431 + $0x198] sm:$0xff]
        %v572 = vld [vmem:[%s431 + $0x1a0] sm:$0xff]
        %v573 = vld [vmem:[%s431 + $0x1a8] sm:$0xff]
        %v574 = vld [vmem:[%s431 + $0x1b0] sm:$0xff]
        %v575 = vld [vmem:[%s431 + $0x1b8] sm:$0xff]
        %v576 = vld [vmem:[%s431 + $0x1c0] sm:$0xff]
        %v577 = vld [vmem:[%s431 + $0x1c8] sm:$0xff]
        %v578 = vld [vmem:[%s431 + $0x1d0] sm:$0xff]
        %v579 = vld [vmem:[%s431 + $0x1d8] sm:$0xff]
        %v580 = vld [vmem:[%s431 + $0x1e0] sm:$0xff]
        %v581 = vld [vmem:[%s431 + $0x1e8] sm:$0xff]
        %v582 = vld [vmem:[%s431 + $0x1f0] sm:$0xff]
        %v583 = vld [vmem:[%s6] sm:$0x1]
        %v584 = vld [vmem:[%s6 + $0x1] sm:$0x1]
        %v585 = vld [vmem:[%s6 + $0x2] sm:$0x1]
        %v586 = vld [vmem:[%s6 + $0x3] sm:$0x1]
        %v587 = vld [vmem:[%s2] sm:$0xff]
        %v588 = vld [vmem:[%s2 + $0x8] sm:$0xff]
        %v589 = vlaneseq
        %v590 = vshrl.u32 %v589, 7
        %v591 = vsub.s32 0, %v590
        %v592 = vrot.slane %v583, %v591
        %vm593 = vcmask 130048
        %v595 = vsel %vm593, %v457, 0
        %v598 = vsel %vm593, %v458, 0
        %v601 = vsel %vm593, %v459, 0
        %v604 = vsel %vm593, %v460, 0
        %v607 = vsel %vm593, %v461, 0
        %v610 = vsel %vm593, %v462, 0
        %v613 = vsel %vm593, %v463, 0
        %v616 = vsel %vm593, %v464, 0
        %v619 = vsel %vm593, %v465, 0
        %v622 = vsel %vm593, %v466, 0
        %v625 = vsel %vm593, %v467, 0
        %v628 = vsel %vm593, %v468, 0
        %v631 = vsel %vm593, %v469, 0
        %v634 = vsel %vm593, %v470, 0
        %v637 = vsel %vm593, %v471, 0
        %v640 = vsel %vm593, %v472, 0
        %v643 = vsel %vm593, %v473, 0
        %v646 = vsel %vm593, %v474, 0
        %v649 = vsel %vm593, %v475, 0
        %v652 = vsel %vm593, %v476, 0
        %v655 = vsel %vm593, %v477, 0
        %v658 = vsel %vm593, %v478, 0
        %v661 = vsel %vm593, %v479, 0
        %v664 = vsel %vm593, %v480, 0
        %v667 = vsel %vm593, %v481, 0
        %v670 = vsel %vm593, %v482, 0
        %v673 = vsel %vm593, %v483, 0
        %v676 = vsel %vm593, %v484, 0
        %v679 = vsel %vm593, %v485, 0
        %v682 = vsel %vm593, %v486, 0
        %v685 = vsel %vm593, %v487, 0
        %v688 = vsel %vm593, %v488, 0
        %v691 = vsel %vm593, %v489, 0
        %v694 = vsel %vm593, %v490, 0
        %v697 = vsel %vm593, %v491, 0
        %v700 = vsel %vm593, %v492, 0
        %v703 = vsel %vm593, %v493, 0
        %v706 = vsel %vm593, %v494, 0
        %v709 = vsel %vm593, %v495, 0
        %v712 = vsel %vm593, %v496, 0
        %v715 = vsel %vm593, %v497, 0
        %v718 = vsel %vm593, %v498, 0
        %v721 = vsel %vm593, %v499, 0
        %v724 = vsel %vm593, %v500, 0
        %v727 = vsel %vm593, %v501, 0
        %v730 = vsel %vm593, %v502, 0
        %v733 = vsel %vm593, %v503, 0
        %v736 = vsel %vm593, %v504, 0
        %v739 = vsel %vm593, %v505, 0
        %v742 = vsel %vm593, %v506, 0
        %v745 = vsel %vm593, %v507, 0
        %v748 = vsel %vm593, %v508, 0
        %v751 = vsel %vm593, %v509, 0
        %v754 = vsel %vm593, %v510, 0
        %v757 = vsel %vm593, %v511, 0
        %v760 = vsel %vm593, %v512, 0
        %v763 = vsel %vm593, %v513, 0
        %v766 = vsel %vm593, %v514, 0
        %v769 = vsel %vm593, %v515, 0
        %v772 = vsel %vm593, %v516, 0
        %v775 = vsel %vm593, %v517, 0
        %v778 = vsel %vm593, %v518, 0
        %v781 = vsel %vm593, %v519, 0
        %783 = vmatprep.subr.mxu0 0.0
        %784 = vmatpush1.msra.mxu0 %v587
        %785 = vmatprep.subr.mxu0 0.0
        %786 = vmatpush1.msra.mxu0 %v588
        %787 = vmatprep.subr.mxu0 0.0
        %788 = vmatpush1.msra.mxu0 0.0
        %789 = vmatprep.subr.mxu0 0.0
        %790 = vmatpush1.msra.mxu0 0.0
        %791 = vmatprep.subr.mxu0 0.0
        %792 = vmatpush1.msra.mxu0 0.0
        %793 = vmatprep.subr.mxu0 0.0
        %794 = vmatpush1.msra.mxu0 0.0
        %795 = vmatprep.subr.mxu0 0.0
        %796 = vmatpush1.msra.mxu0 0.0
        %797 = vmatprep.subr.mxu0 0.0
        %798 = vmatpush1.msra.mxu0 0.0
        %799 = vmatprep.subr.mxu0 0.0
        %800 = vmatpush1.msra.mxu0 0.0
        %801 = vmatprep.subr.mxu0 0.0
        %802 = vmatpush1.msra.mxu0 0.0
        %803 = vmatprep.subr.mxu0 0.0
        %804 = vmatpush1.msra.mxu0 0.0
        %805 = vmatprep.subr.mxu0 0.0
        %806 = vmatpush1.msra.mxu0 0.0
        %807 = vmatprep.subr.mxu0 0.0
        %808 = vmatpush1.msra.mxu0 0.0
        %809 = vmatprep.subr.mxu0 0.0
        %810 = vmatpush1.msra.mxu0 0.0
        %811 = vmatprep.subr.mxu0 0.0
        %812 = vmatpush1.msra.mxu0 0.0
        %813 = vmatprep.subr.mxu0 0.0
        %814 = vmatpush1.msra.mxu0 0.0
        %815 = vmatprep.subr.mxu0 0.0
        %816 = vmatpush1.msra.mxu0 0.0
        %817 = vmatprep.subr.mxu0 0.0
        %818 = vmatpush1.msra.mxu0 0.0
        %819 = vmatprep.subr.mxu0 0.0
        %820 = vmatpush1.msra.mxu0 0.0
        %821 = vmatprep.subr.mxu0 0.0
        %822 = vmatpush1.msra.mxu0 0.0
        %823 = vmatprep.subr.mxu0 0.0
        %824 = vmatpush1.msra.mxu0 0.0
        %825 = vmatprep.subr.mxu0 0.0
        %826 = vmatpush1.msra.mxu0 0.0
        %827 = vmatprep.subr.mxu0 0.0
        %828 = vmatpush1.msra.mxu0 0.0
        %829 = vmatprep.subr.mxu0 0.0
        %830 = vmatpush1.msra.mxu0 0.0
        %831 = vmatprep.subr.mxu0 0.0
        %832 = vmatpush1.msra.mxu0 0.0
        %833 = vmatprep.subr.mxu0 0.0
        %834 = vmatpush1.msra.mxu0 0.0
        %835 = vmatprep.subr.mxu0 0.0
        %836 = vmatpush1.msra.mxu0 0.0
        %837 = vmatprep.subr.mxu0 0.0
        %838 = vmatpush1.msra.mxu0 0.0
        %839 = vmatprep.subr.mxu0 0.0
        %840 = vmatpush1.msra.mxu0 0.0
        %841 = vmatprep.subr.mxu0 0.0
        %842 = vmatpush1.msra.mxu0 0.0
        %843 = vmatprep.subr.mxu0 0.0
        %844 = vmatpush1.msra.mxu0 0.0
        %845 = vmatprep.subr.mxu0 0.0
        %846 = vmatpush1.msra.mxu0 0.0
        %847 = vmatprep.mubr.f32.mxu0 0.0
        %848 = vmatmul.mubr.f32.gmra.mrb[0].mxu0 %v595
        %v849 = vpop.f32.mrb[0].mxu0
        %v850 = vadd.f32 %v592, %v849
        %v851 = vpop.f32.mrb[0].mxu0
        %852 = vmatprep.mubr.f32.mxu0 0.0
        %853 = vmatmul.mubr.f32.gmra.mrb[0].mxu0 %v598
        %v854 = vpop.f32.mrb[0].mxu0
        %v855 = vadd.f32 %v592, %v854
        %v856 = vpop.f32.mrb[0].mxu0
        %857 = vmatprep.mubr.f32.mxu0 0.0
        %858 = vmatmul.mubr.f32.gmra.mrb[0].mxu0 %v601
        %v859 = vpop.f32.mrb[0].mxu0
        %v860 = vadd.f32 %v592, %v859
        %v861 = vpop.f32.mrb[0].mxu0
        %862 = vmatprep.mubr.f32.mxu0 0.0
        %863 = vmatmul.mubr.f32.gmra.mrb[0].mxu0 %v604
        %v864 = vpop.f32.mrb[0].mxu0
        %v865 = vadd.f32 %v592, %v864
        %v866 = vpop.f32.mrb[0].mxu0
        %867 = vmatprep.mubr.f32.mxu0 0.0
        %868 = vmatmul.mubr.f32.gmra.mrb[0].mxu0 %v607
        %v869 = vpop.f32.mrb[0].mxu0
        %v870 = vadd.f32 %v592, %v869
        %v871 = vpop.f32.mrb[0].mxu0
        %872 = vmatprep.mubr.f32.mxu0 0.0
        %873 = vmatmul.mubr.f32.gmra.mrb[0].mxu0 %v610
        %v874 = vpop.f32.mrb[0].mxu0
        %v875 = vadd.f32 %v592, %v874
        %v876 = vpop.f32.mrb[0].mxu0
        %877 = vmatprep.mubr.f32.mxu0 0.0
        %878 = vmatmul.mubr.f32.gmra.mrb[0].mxu0 %v613
        %v879 = vpop.f32.mrb[0].mxu0
        %v880 = vadd.f32 %v592, %v879
        %v881 = vpop.f32.mrb[0].mxu0
        %882 = vmatprep.mubr.f32.mxu0 0.0
        %883 = vmatmul.mubr.f32.gmra.mrb[0].mxu0 %v616
        %v884 = vpop.f32.mrb[0].mxu0
        %v885 = vadd.f32 %v592, %v884
        %v886 = vpop.f32.mrb[0].mxu0
        %887 = vmatprep.mubr.f32.mxu0 0.0
        %888 = vmatmul.mubr.f32.gmra.mrb[0].mxu0 %v619
        %v889 = vpop.f32.mrb[0].mxu0
        %v890 = vadd.f32 %v592, %v889
        %v891 = vpop.f32.mrb[0].mxu0
        %892 = vmatprep.mubr.f32.mxu0 0.0
        %893 = vmatmul.mubr.f32.gmra.mrb[0].mxu0 %v622
        %v894 = vpop.f32.mrb[0].mxu0
        %v895 = vadd.f32 %v592, %v894
        %v896 = vpop.f32.mrb[0].mxu0
        %897 = vmatprep.mubr.f32.mxu0 0.0
        %898 = vmatmul.mubr.f32.gmra.mrb[0].mxu0 %v625
        %v899 = vpop.f32.mrb[0].mxu0
        %v900 = vadd.f32 %v592, %v899
        %v901 = vpop.f32.mrb[0].mxu0
        %902 = vmatprep.mubr.f32.mxu0 0.0
        %903 = vmatmul.mubr.f32.gmra.mrb[0].mxu0 %v628
        %v904 = vpop.f32.mrb[0].mxu0
        %v905 = vadd.f32 %v592, %v904
        %v906 = vpop.f32.mrb[0].mxu0
        %907 = vmatprep.mubr.f32.mxu0 0.0
        %908 = vmatmul.mubr.f32.gmra.mrb[0].mxu0 %v631
        %v909 = vpop.f32.mrb[0].mxu0
        %v910 = vadd.f32 %v592, %v909
        %v911 = vpop.f32.mrb[0].mxu0
        %912 = vmatprep.mubr.f32.mxu0 0.0
        %913 = vmatmul.mubr.f32.gmra.mrb[0].mxu0 %v634
        %v914 = vpop.f32.mrb[0].mxu0
        %v915 = vadd.f32 %v592, %v914
        %v916 = vpop.f32.mrb[0].mxu0
        %917 = vmatprep.mubr.f32.mxu0 0.0
        %918 = vmatmul.mubr.f32.gmra.mrb[0].mxu0 %v637
        %v919 = vpop.f32.mrb[0].mxu0
        %v920 = vadd.f32 %v592, %v919
        %v921 = vpop.f32.mrb[0].mxu0
        %922 = vmatprep.mubr.f32.mxu0 0.0
        %923 = vmatmul.mubr.f32.gmra.mrb[0].mxu0 %v640
        %v924 = vpop.f32.mrb[0].mxu0
        %v925 = vadd.f32 %v592, %v924
        %v926 = vpop.f32.mrb[0].mxu0
        %927 = vmatprep.mubr.f32.mxu0 0.0
        %928 = vmatmul.mubr.f32.gmra.mrb[0].mxu0 %v643
        %v929 = vpop.f32.mrb[0].mxu0
        %v930 = vadd.f32 %v592, %v929
        %v931 = vpop.f32.mrb[0].mxu0
        %932 = vmatprep.mubr.f32.mxu0 0.0
        %933 = vmatmul.mubr.f32.gmra.mrb[0].mxu0 %v646
        %v934 = vpop.f32.mrb[0].mxu0
        %v935 = vadd.f32 %v592, %v934
        %v936 = vpop.f32.mrb[0].mxu0
        %937 = vmatprep.mubr.f32.mxu0 0.0
        %938 = vmatmul.mubr.f32.gmra.mrb[0].mxu0 %v649
        %v939 = vpop.f32.mrb[0].mxu0
        %v940 = vadd.f32 %v592, %v939
        %v941 = vpop.f32.mrb[0].mxu0
        %942 = vmatprep.mubr.f32.mxu0 0.0
        %943 = vmatmul.mubr.f32.gmra.mrb[0].mxu0 %v652
        %v944 = vpop.f32.mrb[0].mxu0
        %v945 = vadd.f32 %v592, %v944
        %v946 = vpop.f32.mrb[0].mxu0
        %947 = vmatprep.mubr.f32.mxu0 0.0
        %948 = vmatmul.mubr.f32.gmra.mrb[0].mxu0 %v655
        %v949 = vpop.f32.mrb[0].mxu0
        %v950 = vadd.f32 %v592, %v949
        %v951 = vpop.f32.mrb[0].mxu0
        %952 = vmatprep.mubr.f32.mxu0 0.0
        %953 = vmatmul.mubr.f32.gmra.mrb[0].mxu0 %v658
        %v954 = vpop.f32.mrb[0].mxu0
        %v955 = vadd.f32 %v592, %v954
        %v956 = vpop.f32.mrb[0].mxu0
        %957 = vmatprep.mubr.f32.mxu0 0.0
        %958 = vmatmul.mubr.f32.gmra.mrb[0].mxu0 %v661
        %v959 = vpop.f32.mrb[0].mxu0
        %v960 = vadd.f32 %v592, %v959
        %v961 = vpop.f32.mrb[0].mxu0
        %962 = vmatprep.mubr.f32.mxu0 0.0
        %963 = vmatmul.mubr.f32.gmra.mrb[0].mxu0 %v664
        %v964 = vpop.f32.mrb[0].mxu0
        %v965 = vadd.f32 %v592, %v964
        %v966 = vpop.f32.mrb[0].mxu0
        %967 = vmatprep.mubr.f32.mxu0 0.0
        %968 = vmatmul.mubr.f32.gmra.mrb[0].mxu0 %v667
        %v969 = vpop.f32.mrb[0].mxu0
        %v970 = vadd.f32 %v592, %v969
        %v971 = vpop.f32.mrb[0].mxu0
        %972 = vmatprep.mubr.f32.mxu0 0.0
        %973 = vmatmul.mubr.f32.gmra.mrb[0].mxu0 %v670
        %v974 = vpop.f32.mrb[0].mxu0
        %v975 = vadd.f32 %v592, %v974
        %v976 = vpop.f32.mrb[0].mxu0
        %977 = vmatprep.mubr.f32.mxu0 0.0
        %978 = vmatmul.mubr.f32.gmra.mrb[0].mxu0 %v673
        %v979 = vpop.f32.mrb[0].mxu0
        %v980 = vadd.f32 %v592, %v979
        %v981 = vpop.f32.mrb[0].mxu0
        %982 = vmatprep.mubr.f32.mxu0 0.0
        %983 = vmatmul.mubr.f32.gmra.mrb[0].mxu0 %v676
        %v984 = vpop.f32.mrb[0].mxu0
        %v985 = vadd.f32 %v592, %v984
        %v986 = vpop.f32.mrb[0].mxu0
        %987 = vmatprep.mubr.f32.mxu0 0.0
        %988 = vmatmul.mubr.f32.gmra.mrb[0].mxu0 %v679
        %v989 = vpop.f32.mrb[0].mxu0
        %v990 = vadd.f32 %v592, %v989
        %v991 = vpop.f32.mrb[0].mxu0
        %992 = vmatprep.mubr.f32.mxu0 0.0
        %993 = vmatmul.mubr.f32.gmra.mrb[0].mxu0 %v682
        %v994 = vpop.f32.mrb[0].mxu0
        %v995 = vadd.f32 %v592, %v994
        %v996 = vpop.f32.mrb[0].mxu0
        %997 = vmatprep.mubr.f32.mxu0 0.0
        %998 = vmatmul.mubr.f32.gmra.mrb[0].mxu0 %v685
        %v999 = vpop.f32.mrb[0].mxu0
        %v1000 = vadd.f32 %v592, %v999
        %v1001 = vpop.f32.mrb[0].mxu0
        %1002 = vmatprep.mubr.f32.mxu0 0.0
        %1003 = vmatmul.mubr.f32.gmra.mrb[0].mxu0 %v688
        %v1004 = vpop.f32.mrb[0].mxu0
        %v1005 = vadd.f32 %v592, %v1004
        %v1006 = vpop.f32.mrb[0].mxu0
        %1007 = vmatprep.mubr.f32.mxu0 0.0
        %1008 = vmatmul.mubr.f32.gmra.mrb[0].mxu0 %v691
        %v1009 = vpop.f32.mrb[0].mxu0
        %v1010 = vadd.f32 %v592, %v1009
        %v1011 = vpop.f32.mrb[0].mxu0
        %1012 = vmatprep.mubr.f32.mxu0 0.0
        %1013 = vmatmul.mubr.f32.gmra.mrb[0].mxu0 %v694
        %v1014 = vpop.f32.mrb[0].mxu0
        %v1015 = vadd.f32 %v592, %v1014
        %v1016 = vpop.f32.mrb[0].mxu0
        %1017 = vmatprep.mubr.f32.mxu0 0.0
        %1018 = vmatmul.mubr.f32.gmra.mrb[0].mxu0 %v697
        %v1019 = vpop.f32.mrb[0].mxu0
        %v1020 = vadd.f32 %v592, %v1019
        %v1021 = vpop.f32.mrb[0].mxu0
        %1022 = vmatprep.mubr.f32.mxu0 0.0
        %1023 = vmatmul.mubr.f32.gmra.mrb[0].mxu0 %v700
        %v1024 = vpop.f32.mrb[0].mxu0
        %v1025 = vadd.f32 %v592, %v1024
        %v1026 = vpop.f32.mrb[0].mxu0
        %1027 = vmatprep.mubr.f32.mxu0 0.0
        %1028 = vmatmul.mubr.f32.gmra.mrb[0].mxu0 %v703
        %v1029 = vpop.f32.mrb[0].mxu0
        %v1030 = vadd.f32 %v592, %v1029
        %v1031 = vpop.f32.mrb[0].mxu0
        %1032 = vmatprep.mubr.f32.mxu0 0.0
        %1033 = vmatmul.mubr.f32.gmra.mrb[0].mxu0 %v706
        %v1034 = vpop.f32.mrb[0].mxu0
        %v1035 = vadd.f32 %v592, %v1034
        %v1036 = vpop.f32.mrb[0].mxu0
        %1037 = vmatprep.mubr.f32.mxu0 0.0
        %1038 = vmatmul.mubr.f32.gmra.mrb[0].mxu0 %v709
        %v1039 = vpop.f32.mrb[0].mxu0
        %v1040 = vadd.f32 %v592, %v1039
        %v1041 = vpop.f32.mrb[0].mxu0
        %1042 = vmatprep.mubr.f32.mxu0 0.0
        %1043 = vmatmul.mubr.f32.gmra.mrb[0].mxu0 %v712
        %v1044 = vpop.f32.mrb[0].mxu0
        %v1045 = vadd.f32 %v592, %v1044
        %v1046 = vpop.f32.mrb[0].mxu0
        %1047 = vmatprep.mubr.f32.mxu0 0.0
        %1048 = vmatmul.mubr.f32.gmra.mrb[0].mxu0 %v715
        %v1049 = vpop.f32.mrb[0].mxu0
        %v1050 = vadd.f32 %v592, %v1049
        %v1051 = vpop.f32.mrb[0].mxu0
        %1052 = vmatprep.mubr.f32.mxu0 0.0
        %1053 = vmatmul.mubr.f32.gmra.mrb[0].mxu0 %v718
        %v1054 = vpop.f32.mrb[0].mxu0
        %v1055 = vadd.f32 %v592, %v1054
        %v1056 = vpop.f32.mrb[0].mxu0
        %1057 = vmatprep.mubr.f32.mxu0 0.0
        %1058 = vmatmul.mubr.f32.gmra.mrb[0].mxu0 %v721
        %v1059 = vpop.f32.mrb[0].mxu0
        %v1060 = vadd.f32 %v592, %v1059
        %v1061 = vpop.f32.mrb[0].mxu0
        %1062 = vmatprep.mubr.f32.mxu0 0.0
        %1063 = vmatmul.mubr.f32.gmra.mrb[0].mxu0 %v724
        %v1064 = vpop.f32.mrb[0].mxu0
        %v1065 = vadd.f32 %v592, %v1064
        %v1066 = vpop.f32.mrb[0].mxu0
        %1067 = vmatprep.mubr.f32.mxu0 0.0
        %1068 = vmatmul.mubr.f32.gmra.mrb[0].mxu0 %v727
        %v1069 = vpop.f32.mrb[0].mxu0
        %v1070 = vadd.f32 %v592, %v1069
        %v1071 = vpop.f32.mrb[0].mxu0
        %1072 = vmatprep.mubr.f32.mxu0 0.0
        %1073 = vmatmul.mubr.f32.gmra.mrb[0].mxu0 %v730
        %v1074 = vpop.f32.mrb[0].mxu0
        %v1075 = vadd.f32 %v592, %v1074
        %v1076 = vpop.f32.mrb[0].mxu0
        %1077 = vmatprep.mubr.f32.mxu0 0.0
        %1078 = vmatmul.mubr.f32.gmra.mrb[0].mxu0 %v733
        %v1079 = vpop.f32.mrb[0].mxu0
        %v1080 = vadd.f32 %v592, %v1079
        %v1081 = vpop.f32.mrb[0].mxu0
        %1082 = vmatprep.mubr.f32.mxu0 0.0
        %1083 = vmatmul.mubr.f32.gmra.mrb[0].mxu0 %v736
        %v1084 = vpop.f32.mrb[0].mxu0
        %v1085 = vadd.f32 %v592, %v1084
        %v1086 = vpop.f32.mrb[0].mxu0
        %1087 = vmatprep.mubr.f32.mxu0 0.0
        %1088 = vmatmul.mubr.f32.gmra.mrb[0].mxu0 %v739
        %v1089 = vpop.f32.mrb[0].mxu0
        %v1090 = vadd.f32 %v592, %v1089
        %v1091 = vpop.f32.mrb[0].mxu0
        %1092 = vmatprep.mubr.f32.mxu0 0.0
        %1093 = vmatmul.mubr.f32.gmra.mrb[0].mxu0 %v742
        %v1094 = vpop.f32.mrb[0].mxu0
        %v1095 = vadd.f32 %v592, %v1094
        %v1096 = vpop.f32.mrb[0].mxu0
        %1097 = vmatprep.mubr.f32.mxu0 0.0
        %1098 = vmatmul.mubr.f32.gmra.mrb[0].mxu0 %v745
        %v1099 = vpop.f32.mrb[0].mxu0
        %v1100 = vadd.f32 %v592, %v1099
        %v1101 = vpop.f32.mrb[0].mxu0
        %1102 = vmatprep.mubr.f32.mxu0 0.0
        %1103 = vmatmul.mubr.f32.gmra.mrb[0].mxu0 %v748
        %v1104 = vpop.f32.mrb[0].mxu0
        %v1105 = vadd.f32 %v592, %v1104
        %v1106 = vpop.f32.mrb[0].mxu0
        %1107 = vmatprep.mubr.f32.mxu0 0.0
        %1108 = vmatmul.mubr.f32.gmra.mrb[0].mxu0 %v751
        %v1109 = vpop.f32.mrb[0].mxu0
        %v1110 = vadd.f32 %v592, %v1109
        %v1111 = vpop.f32.mrb[0].mxu0
        %1112 = vmatprep.mubr.f32.mxu0 0.0
        %1113 = vmatmul.mubr.f32.gmra.mrb[0].mxu0 %v754
        %v1114 = vpop.f32.mrb[0].mxu0
        %v1115 = vadd.f32 %v592, %v1114
        %v1116 = vpop.f32.mrb[0].mxu0
        %1117 = vmatprep.mubr.f32.mxu0 0.0
        %1118 = vmatmul.mubr.f32.gmra.mrb[0].mxu0 %v757
        %v1119 = vpop.f32.mrb[0].mxu0
        %v1120 = vadd.f32 %v592, %v1119
        %v1121 = vpop.f32.mrb[0].mxu0
        %1122 = vmatprep.mubr.f32.mxu0 0.0
        %1123 = vmatmul.mubr.f32.gmra.mrb[0].mxu0 %v760
        %v1124 = vpop.f32.mrb[0].mxu0
        %v1125 = vadd.f32 %v592, %v1124
        %v1126 = vpop.f32.mrb[0].mxu0
        %1127 = vmatprep.mubr.f32.mxu0 0.0
        %1128 = vmatmul.mubr.f32.gmra.mrb[0].mxu0 %v763
        %v1129 = vpop.f32.mrb[0].mxu0
        %v1130 = vadd.f32 %v592, %v1129
        %v1131 = vpop.f32.mrb[0].mxu0
        %1132 = vmatprep.mubr.f32.mxu0 0.0
        %1133 = vmatmul.mubr.f32.gmra.mrb[0].mxu0 %v766
        %v1134 = vpop.f32.mrb[0].mxu0
        %v1135 = vadd.f32 %v592, %v1134
        %v1136 = vpop.f32.mrb[0].mxu0
        %1137 = vmatprep.mubr.f32.mxu0 0.0
        %1138 = vmatmul.mubr.f32.gmra.mrb[0].mxu0 %v769
        %v1139 = vpop.f32.mrb[0].mxu0
        %v1140 = vadd.f32 %v592, %v1139
        %v1141 = vpop.f32.mrb[0].mxu0
        %1142 = vmatprep.mubr.f32.mxu0 0.0
        %1143 = vmatmul.mubr.f32.gmra.mrb[0].mxu0 %v772
        %v1144 = vpop.f32.mrb[0].mxu0
        %v1145 = vadd.f32 %v592, %v1144
        %v1146 = vpop.f32.mrb[0].mxu0
        %1147 = vmatprep.mubr.f32.mxu0 0.0
        %1148 = vmatmul.mubr.f32.gmra.mrb[0].mxu0 %v775
        %v1149 = vpop.f32.mrb[0].mxu0
        %v1150 = vadd.f32 %v592, %v1149
        %v1151 = vpop.f32.mrb[0].mxu0
        %1152 = vmatprep.mubr.f32.mxu0 0.0
        %1153 = vmatmul.mubr.f32.gmra.mrb[0].mxu0 %v778
        %v1154 = vpop.f32.mrb[0].mxu0
        %v1155 = vadd.f32 %v592, %v1154
        %v1156 = vpop.f32.mrb[0].mxu0
        %1157 = vmatprep.mubr.f32.mxu0 0.0
        %1158 = vmatmul.mubr.f32.gmra.mrb[0].mxu0 %v781
        %v1159 = vpop.f32.mrb[0].mxu0
        %v1160 = vadd.f32 %v592, %v1159
        %v1161 = vpop.f32.mrb[0].mxu0
        %1162 = vdwg.mxu0
        %v1163 = vmax.f32 %v850, 0.0
        %v1164 = vmax.f32 %v855, 0.0
        %v1165 = vmax.f32 %v860, 0.0
        %v1166 = vmax.f32 %v865, 0.0
        %v1167 = vmax.f32 %v870, 0.0
        %v1168 = vmax.f32 %v875, 0.0
        %v1169 = vmax.f32 %v880, 0.0
        %v1170 = vmax.f32 %v885, 0.0
        %v1171 = vmax.f32 %v890, 0.0
        %v1172 = vmax.f32 %v895, 0.0
        %v1173 = vmax.f32 %v900, 0.0
        %v1174 = vmax.f32 %v905, 0.0
        %v1175 = vmax.f32 %v910, 0.0
        %v1176 = vmax.f32 %v915, 0.0
        %v1177 = vmax.f32 %v920, 0.0
        %v1178 = vmax.f32 %v925, 0.0
        %v1179 = vmax.f32 %v930, 0.0
        %v1180 = vmax.f32 %v935, 0.0
        %v1181 = vmax.f32 %v940, 0.0
        %v1182 = vmax.f32 %v945, 0.0
        %v1183 = vmax.f32 %v950, 0.0
        %v1184 = vmax.f32 %v955, 0.0
        %v1185 = vmax.f32 %v960, 0.0
        %v1186 = vmax.f32 %v965, 0.0
        %v1187 = vmax.f32 %v970, 0.0
        %v1188 = vmax.f32 %v975, 0.0
        %v1189 = vmax.f32 %v980, 0.0
        %v1190 = vmax.f32 %v985, 0.0
        %v1191 = vmax.f32 %v990, 0.0
        %v1192 = vmax.f32 %v995, 0.0
        %v1193 = vmax.f32 %v1000, 0.0
        %v1194 = vmax.f32 %v1005, 0.0
        %v1195 = vmax.f32 %v1010, 0.0
        %v1196 = vmax.f32 %v1015, 0.0
        %v1197 = vmax.f32 %v1020, 0.0
        %v1198 = vmax.f32 %v1025, 0.0
        %v1199 = vmax.f32 %v1030, 0.0
        %v1200 = vmax.f32 %v1035, 0.0
        %v1201 = vmax.f32 %v1040, 0.0
        %v1202 = vmax.f32 %v1045, 0.0
        %v1203 = vmax.f32 %v1050, 0.0
        %v1204 = vmax.f32 %v1055, 0.0
        %v1205 = vmax.f32 %v1060, 0.0
        %v1206 = vmax.f32 %v1065, 0.0
        %v1207 = vmax.f32 %v1070, 0.0
        %v1208 = vmax.f32 %v1075, 0.0
        %v1209 = vmax.f32 %v1080, 0.0
        %v1210 = vmax.f32 %v1085, 0.0
        %v1211 = vmax.f32 %v1090, 0.0
        %v1212 = vmax.f32 %v1095, 0.0
        %v1213 = vmax.f32 %v1100, 0.0
        %v1214 = vmax.f32 %v1105, 0.0
        %v1215 = vmax.f32 %v1110, 0.0
        %v1216 = vmax.f32 %v1115, 0.0
        %v1217 = vmax.f32 %v1120, 0.0
        %v1218 = vmax.f32 %v1125, 0.0
        %v1219 = vmax.f32 %v1130, 0.0
        %v1220 = vmax.f32 %v1135, 0.0
        %v1221 = vmax.f32 %v1140, 0.0
        %v1222 = vmax.f32 %v1145, 0.0
        %v1223 = vmax.f32 %v1150, 0.0
        %v1224 = vmax.f32 %v1155, 0.0
        %v1225 = vmax.f32 %v1160, 0.0
        %v1226 = vld [vmem:[%s3] sm:$0xff]
        %v1227 = vld [vmem:[%s3 + $0x8] sm:$0xff]
        %v1228 = vld [vmem:[%s3 + $0x10] sm:$0xff]
        %v1229 = vld [vmem:[%s3 + $0x18] sm:$0xff]
        %v1230 = vlaneseq
        %v1231 = vshrl.u32 %v1230, 7
        %v1232 = vsub.s32 0, %v1231
        %v1233 = vrot.slane %v585, %v1232
        %vm1234 = vcmask 261120
        %v1236 = vsel %vm1234, %v1163, 0
        %v1239 = vsel %vm1234, %v1164, 0
        %v1242 = vsel %vm1234, %v1165, 0
        %v1245 = vsel %vm1234, %v1166, 0
        %v1248 = vsel %vm1234, %v1167, 0
        %v1251 = vsel %vm1234, %v1168, 0
        %v1254 = vsel %vm1234, %v1169, 0
        %v1257 = vsel %vm1234, %v1170, 0
        %v1260 = vsel %vm1234, %v1171, 0
        %v1263 = vsel %vm1234, %v1172, 0
        %v1266 = vsel %vm1234, %v1173, 0
        %v1269 = vsel %vm1234, %v1174, 0
        %v1272 = vsel %vm1234, %v1175, 0
        %v1275 = vsel %vm1234, %v1176, 0
        %v1278 = vsel %vm1234, %v1177, 0
        %v1281 = vsel %vm1234, %v1178, 0
        %v1284 = vsel %vm1234, %v1179, 0
        %v1287 = vsel %vm1234, %v1180, 0
        %v1290 = vsel %vm1234, %v1181, 0
        %v1293 = vsel %vm1234, %v1182, 0
        %v1296 = vsel %vm1234, %v1183, 0
        %v1299 = vsel %vm1234, %v1184, 0
        %v1302 = vsel %vm1234, %v1185, 0
        %v1305 = vsel %vm1234, %v1186, 0
        %v1308 = vsel %vm1234, %v1187, 0
        %v1311 = vsel %vm1234, %v1188, 0
        %v1314 = vsel %vm1234, %v1189, 0
        %v1317 = vsel %vm1234, %v1190, 0
        %v1320 = vsel %vm1234, %v1191, 0
        %v1323 = vsel %vm1234, %v1192, 0
        %v1326 = vsel %vm1234, %v1193, 0
        %v1329 = vsel %vm1234, %v1194, 0
        %v1332 = vsel %vm1234, %v1195, 0
        %v1335 = vsel %vm1234, %v1196, 0
        %v1338 = vsel %vm1234, %v1197, 0
        %v1341 = vsel %vm1234, %v1198, 0
        %v1344 = vsel %vm1234, %v1199, 0
        %v1347 = vsel %vm1234, %v1200, 0
        %v1350 = vsel %vm1234, %v1201, 0
        %v1353 = vsel %vm1234, %v1202, 0
        %v1356 = vsel %vm1234, %v1203, 0
        %v1359 = vsel %vm1234, %v1204, 0
        %v1362 = vsel %vm1234, %v1205, 0
        %v1365 = vsel %vm1234, %v1206, 0
        %v1368 = vsel %vm1234, %v1207, 0
        %v1371 = vsel %vm1234, %v1208, 0
        %v1374 = vsel %vm1234, %v1209, 0
        %v1377 = vsel %vm1234, %v1210, 0
        %v1380 = vsel %vm1234, %v1211, 0
        %v1383 = vsel %vm1234, %v1212, 0
        %v1386 = vsel %vm1234, %v1213, 0
        %v1389 = vsel %vm1234, %v1214, 0
        %v1392 = vsel %vm1234, %v1215, 0
        %v1395 = vsel %vm1234, %v1216, 0
        %v1398 = vsel %vm1234, %v1217, 0
        %v1401 = vsel %vm1234, %v1218, 0
        %v1404 = vsel %vm1234, %v1219, 0
        %v1407 = vsel %vm1234, %v1220, 0
        %v1410 = vsel %vm1234, %v1221, 0
        %v1413 = vsel %vm1234, %v1222, 0
        %v1416 = vsel %vm1234, %v1223, 0
        %v1419 = vsel %vm1234, %v1224, 0
        %v1422 = vsel %vm1234, %v1225, 0
        %1424 = vmatprep.subr.mxu0 0.0
        %1425 = vmatpush1.msra.mxu0 %v1226
        %1426 = vmatprep.subr.mxu0 0.0
        %1427 = vmatpush1.msra.mxu0 %v1227
        %1428 = vmatprep.subr.mxu0 0.0
        %1429 = vmatpush1.msra.mxu0 %v1228
        %1430 = vmatprep.subr.mxu0 0.0
        %1431 = vmatpush1.msra.mxu0 %v1229
        %1432 = vmatprep.subr.mxu0 0.0
        %1433 = vmatpush1.msra.mxu0 0.0
        %1434 = vmatprep.subr.mxu0 0.0
        %1435 = vmatpush1.msra.mxu0 0.0
        %1436 = vmatprep.subr.mxu0 0.0
        %1437 = vmatpush1.msra.mxu0 0.0
        %1438 = vmatprep.subr.mxu0 0.0
        %1439 = vmatpush1.msra.mxu0 0.0
        %1440 = vmatprep.subr.mxu0 0.0
        %1441 = vmatpush1.msra.mxu0 0.0
        %1442 = vmatprep.subr.mxu0 0.0
        %1443 = vmatpush1.msra.mxu0 0.0
        %1444 = vmatprep.subr.mxu0 0.0
        %1445 = vmatpush1.msra.mxu0 0.0
        %1446 = vmatprep.subr.mxu0 0.0
        %1447 = vmatpush1.msra.mxu0 0.0
        %1448 = vmatprep.subr.mxu0 0.0
        %1449 = vmatpush1.msra.mxu0 0.0
        %1450 = vmatprep.subr.mxu0 0.0
        %1451 = vmatpush1.msra.mxu0 0.0
        %1452 = vmatprep.subr.mxu0 0.0
        %1453 = vmatpush1.msra.mxu0 0.0
        %1454 = vmatprep.subr.mxu0 0.0
        %1455 = vmatpush1.msra.mxu0 0.0
        %1456 = vmatprep.subr.mxu0 0.0
        %1457 = vmatpush1.msra.mxu0 0.0
        %1458 = vmatprep.subr.mxu0 0.0
        %1459 = vmatpush1.msra.mxu0 0.0
        %1460 = vmatprep.subr.mxu0 0.0
        %1461 = vmatpush1.msra.mxu0 0.0
        %1462 = vmatprep.subr.mxu0 0.0
        %1463 = vmatpush1.msra.mxu0 0.0
        %1464 = vmatprep.subr.mxu0 0.0
        %1465 = vmatpush1.msra.mxu0 0.0
        %1466 = vmatprep.subr.mxu0 0.0
        %1467 = vmatpush1.msra.mxu0 0.0
        %1468 = vmatprep.subr.mxu0 0.0
        %1469 = vmatpush1.msra.mxu0 0.0
        %1470 = vmatprep.subr.mxu0 0.0
        %1471 = vmatpush1.msra.mxu0 0.0
        %1472 = vmatprep.subr.mxu0 0.0
        %1473 = vmatpush1.msra.mxu0 0.0
        %1474 = vmatprep.subr.mxu0 0.0
        %1475 = vmatpush1.msra.mxu0 0.0
        %1476 = vmatprep.subr.mxu0 0.0
        %1477 = vmatpush1.msra.mxu0 0.0
        %1478 = vmatprep.subr.mxu0 0.0
        %1479 = vmatpush1.msra.mxu0 0.0
        %1480 = vmatprep.subr.mxu0 0.0
        %1481 = vmatpush1.msra.mxu0 0.0
        %1482 = vmatprep.subr.mxu0 0.0
        %1483 = vmatpush1.msra.mxu0 0.0
        %1484 = vmatprep.subr.mxu0 0.0
        %1485 = vmatpush1.msra.mxu0 0.0
        %1486 = vmatprep.subr.mxu0 0.0
        %1487 = vmatpush1.msra.mxu0 0.0
        %1488 = vmatprep.mubr.f32.mxu0 0.0
        %1489 = vmatmul.mubr.f32.gmra.mrb[0].mxu0 %v1236
        %v1490 = vpop.f32.mrb[0].mxu0
        %v1491 = vadd.f32 %v1233, %v1490
        %v1492 = vpop.f32.mrb[0].mxu0
        %1493 = vmatprep.mubr.f32.mxu0 0.0
        %1494 = vmatmul.mubr.f32.gmra.mrb[0].mxu0 %v1239
        %v1495 = vpop.f32.mrb[0].mxu0
        %v1496 = vadd.f32 %v1233, %v1495
        %v1497 = vpop.f32.mrb[0].mxu0
        %1498 = vmatprep.mubr.f32.mxu0 0.0
        %1499 = vmatmul.mubr.f32.gmra.mrb[0].mxu0 %v1242
        %v1500 = vpop.f32.mrb[0].mxu0
        %v1501 = vadd.f32 %v1233, %v1500
        %v1502 = vpop.f32.mrb[0].mxu0
        %1503 = vmatprep.mubr.f32.mxu0 0.0
        %1504 = vmatmul.mubr.f32.gmra.mrb[0].mxu0 %v1245
        %v1505 = vpop.f32.mrb[0].mxu0
        %v1506 = vadd.f32 %v1233, %v1505
        %v1507 = vpop.f32.mrb[0].mxu0
        %1508 = vmatprep.mubr.f32.mxu0 0.0
        %1509 = vmatmul.mubr.f32.gmra.mrb[0].mxu0 %v1248
        %v1510 = vpop.f32.mrb[0].mxu0
        %v1511 = vadd.f32 %v1233, %v1510
        %v1512 = vpop.f32.mrb[0].mxu0
        %1513 = vmatprep.mubr.f32.mxu0 0.0
        %1514 = vmatmul.mubr.f32.gmra.mrb[0].mxu0 %v1251
        %v1515 = vpop.f32.mrb[0].mxu0
        %v1516 = vadd.f32 %v1233, %v1515
        %v1517 = vpop.f32.mrb[0].mxu0
        %1518 = vmatprep.mubr.f32.mxu0 0.0
        %1519 = vmatmul.mubr.f32.gmra.mrb[0].mxu0 %v1254
        %v1520 = vpop.f32.mrb[0].mxu0
        %v1521 = vadd.f32 %v1233, %v1520
        %v1522 = vpop.f32.mrb[0].mxu0
        %1523 = vmatprep.mubr.f32.mxu0 0.0
        %1524 = vmatmul.mubr.f32.gmra.mrb[0].mxu0 %v1257
        %v1525 = vpop.f32.mrb[0].mxu0
        %v1526 = vadd.f32 %v1233, %v1525
        %v1527 = vpop.f32.mrb[0].mxu0
        %1528 = vmatprep.mubr.f32.mxu0 0.0
        %1529 = vmatmul.mubr.f32.gmra.mrb[0].mxu0 %v1260
        %v1530 = vpop.f32.mrb[0].mxu0
        %v1531 = vadd.f32 %v1233, %v1530
        %v1532 = vpop.f32.mrb[0].mxu0
        %1533 = vmatprep.mubr.f32.mxu0 0.0
        %1534 = vmatmul.mubr.f32.gmra.mrb[0].mxu0 %v1263
        %v1535 = vpop.f32.mrb[0].mxu0
        %v1536 = vadd.f32 %v1233, %v1535
        %v1537 = vpop.f32.mrb[0].mxu0
        %1538 = vmatprep.mubr.f32.mxu0 0.0
        %1539 = vmatmul.mubr.f32.gmra.mrb[0].mxu0 %v1266
        %v1540 = vpop.f32.mrb[0].mxu0
        %v1541 = vadd.f32 %v1233, %v1540
        %v1542 = vpop.f32.mrb[0].mxu0
        %1543 = vmatprep.mubr.f32.mxu0 0.0
        %1544 = vmatmul.mubr.f32.gmra.mrb[0].mxu0 %v1269
        %v1545 = vpop.f32.mrb[0].mxu0
        %v1546 = vadd.f32 %v1233, %v1545
        %v1547 = vpop.f32.mrb[0].mxu0
        %1548 = vmatprep.mubr.f32.mxu0 0.0
        %1549 = vmatmul.mubr.f32.gmra.mrb[0].mxu0 %v1272
        %v1550 = vpop.f32.mrb[0].mxu0
        %v1551 = vadd.f32 %v1233, %v1550
        %v1552 = vpop.f32.mrb[0].mxu0
        %1553 = vmatprep.mubr.f32.mxu0 0.0
        %1554 = vmatmul.mubr.f32.gmra.mrb[0].mxu0 %v1275
        %v1555 = vpop.f32.mrb[0].mxu0
        %v1556 = vadd.f32 %v1233, %v1555
        %v1557 = vpop.f32.mrb[0].mxu0
        %1558 = vmatprep.mubr.f32.mxu0 0.0
        %1559 = vmatmul.mubr.f32.gmra.mrb[0].mxu0 %v1278
        %v1560 = vpop.f32.mrb[0].mxu0
        %v1561 = vadd.f32 %v1233, %v1560
        %v1562 = vpop.f32.mrb[0].mxu0
        %1563 = vmatprep.mubr.f32.mxu0 0.0
        %1564 = vmatmul.mubr.f32.gmra.mrb[0].mxu0 %v1281
        %v1565 = vpop.f32.mrb[0].mxu0
        %v1566 = vadd.f32 %v1233, %v1565
        %v1567 = vpop.f32.mrb[0].mxu0
        %1568 = vmatprep.mubr.f32.mxu0 0.0
        %1569 = vmatmul.mubr.f32.gmra.mrb[0].mxu0 %v1284
        %v1570 = vpop.f32.mrb[0].mxu0
        %v1571 = vadd.f32 %v1233, %v1570
        %v1572 = vpop.f32.mrb[0].mxu0
        %1573 = vmatprep.mubr.f32.mxu0 0.0
        %1574 = vmatmul.mubr.f32.gmra.mrb[0].mxu0 %v1287
        %v1575 = vpop.f32.mrb[0].mxu0
        %v1576 = vadd.f32 %v1233, %v1575
        %v1577 = vpop.f32.mrb[0].mxu0
        %1578 = vmatprep.mubr.f32.mxu0 0.0
        %1579 = vmatmul.mubr.f32.gmra.mrb[0].mxu0 %v1290
        %v1580 = vpop.f32.mrb[0].mxu0
        %v1581 = vadd.f32 %v1233, %v1580
        %v1582 = vpop.f32.mrb[0].mxu0
        %1583 = vmatprep.mubr.f32.mxu0 0.0
        %1584 = vmatmul.mubr.f32.gmra.mrb[0].mxu0 %v1293
        %v1585 = vpop.f32.mrb[0].mxu0
        %v1586 = vadd.f32 %v1233, %v1585
        %v1587 = vpop.f32.mrb[0].mxu0
        %1588 = vmatprep.mubr.f32.mxu0 0.0
        %1589 = vmatmul.mubr.f32.gmra.mrb[0].mxu0 %v1296
        %v1590 = vpop.f32.mrb[0].mxu0
        %v1591 = vadd.f32 %v1233, %v1590
        %v1592 = vpop.f32.mrb[0].mxu0
        %1593 = vmatprep.mubr.f32.mxu0 0.0
        %1594 = vmatmul.mubr.f32.gmra.mrb[0].mxu0 %v1299
        %v1595 = vpop.f32.mrb[0].mxu0
        %v1596 = vadd.f32 %v1233, %v1595
        %v1597 = vpop.f32.mrb[0].mxu0
        %1598 = vmatprep.mubr.f32.mxu0 0.0
        %1599 = vmatmul.mubr.f32.gmra.mrb[0].mxu0 %v1302
        %v1600 = vpop.f32.mrb[0].mxu0
        %v1601 = vadd.f32 %v1233, %v1600
        %v1602 = vpop.f32.mrb[0].mxu0
        %1603 = vmatprep.mubr.f32.mxu0 0.0
        %1604 = vmatmul.mubr.f32.gmra.mrb[0].mxu0 %v1305
        %v1605 = vpop.f32.mrb[0].mxu0
        %v1606 = vadd.f32 %v1233, %v1605
        %v1607 = vpop.f32.mrb[0].mxu0
        %1608 = vmatprep.mubr.f32.mxu0 0.0
        %1609 = vmatmul.mubr.f32.gmra.mrb[0].mxu0 %v1308
        %v1610 = vpop.f32.mrb[0].mxu0
        %v1611 = vadd.f32 %v1233, %v1610
        %v1612 = vpop.f32.mrb[0].mxu0
        %1613 = vmatprep.mubr.f32.mxu0 0.0
        %1614 = vmatmul.mubr.f32.gmra.mrb[0].mxu0 %v1311
        %v1615 = vpop.f32.mrb[0].mxu0
        %v1616 = vadd.f32 %v1233, %v1615
        %v1617 = vpop.f32.mrb[0].mxu0
        %1618 = vmatprep.mubr.f32.mxu0 0.0
        %1619 = vmatmul.mubr.f32.gmra.mrb[0].mxu0 %v1314
        %v1620 = vpop.f32.mrb[0].mxu0
        %v1621 = vadd.f32 %v1233, %v1620
        %v1622 = vpop.f32.mrb[0].mxu0
        %1623 = vmatprep.mubr.f32.mxu0 0.0
        %1624 = vmatmul.mubr.f32.gmra.mrb[0].mxu0 %v1317
        %v1625 = vpop.f32.mrb[0].mxu0
        %v1626 = vadd.f32 %v1233, %v1625
        %v1627 = vpop.f32.mrb[0].mxu0
        %1628 = vmatprep.mubr.f32.mxu0 0.0
        %1629 = vmatmul.mubr.f32.gmra.mrb[0].mxu0 %v1320
        %v1630 = vpop.f32.mrb[0].mxu0
        %v1631 = vadd.f32 %v1233, %v1630
        %v1632 = vpop.f32.mrb[0].mxu0
        %1633 = vmatprep.mubr.f32.mxu0 0.0
        %1634 = vmatmul.mubr.f32.gmra.mrb[0].mxu0 %v1323
        %v1635 = vpop.f32.mrb[0].mxu0
        %v1636 = vadd.f32 %v1233, %v1635
        %v1637 = vpop.f32.mrb[0].mxu0
        %1638 = vmatprep.mubr.f32.mxu0 0.0
        %1639 = vmatmul.mubr.f32.gmra.mrb[0].mxu0 %v1326
        %v1640 = vpop.f32.mrb[0].mxu0
        %v1641 = vadd.f32 %v1233, %v1640
        %v1642 = vpop.f32.mrb[0].mxu0
        %1643 = vmatprep.mubr.f32.mxu0 0.0
        %1644 = vmatmul.mubr.f32.gmra.mrb[0].mxu0 %v1329
        %v1645 = vpop.f32.mrb[0].mxu0
        %v1646 = vadd.f32 %v1233, %v1645
        %v1647 = vpop.f32.mrb[0].mxu0
        %1648 = vmatprep.mubr.f32.mxu0 0.0
        %1649 = vmatmul.mubr.f32.gmra.mrb[0].mxu0 %v1332
        %v1650 = vpop.f32.mrb[0].mxu0
        %v1651 = vadd.f32 %v1233, %v1650
        %v1652 = vpop.f32.mrb[0].mxu0
        %1653 = vmatprep.mubr.f32.mxu0 0.0
        %1654 = vmatmul.mubr.f32.gmra.mrb[0].mxu0 %v1335
        %v1655 = vpop.f32.mrb[0].mxu0
        %v1656 = vadd.f32 %v1233, %v1655
        %v1657 = vpop.f32.mrb[0].mxu0
        %1658 = vmatprep.mubr.f32.mxu0 0.0
        %1659 = vmatmul.mubr.f32.gmra.mrb[0].mxu0 %v1338
        %v1660 = vpop.f32.mrb[0].mxu0
        %v1661 = vadd.f32 %v1233, %v1660
        %v1662 = vpop.f32.mrb[0].mxu0
        %1663 = vmatprep.mubr.f32.mxu0 0.0
        %1664 = vmatmul.mubr.f32.gmra.mrb[0].mxu0 %v1341
        %v1665 = vpop.f32.mrb[0].mxu0
        %v1666 = vadd.f32 %v1233, %v1665
        %v1667 = vpop.f32.mrb[0].mxu0
        %1668 = vmatprep.mubr.f32.mxu0 0.0
        %1669 = vmatmul.mubr.f32.gmra.mrb[0].mxu0 %v1344
        %v1670 = vpop.f32.mrb[0].mxu0
        %v1671 = vadd.f32 %v1233, %v1670
        %v1672 = vpop.f32.mrb[0].mxu0
        %1673 = vmatprep.mubr.f32.mxu0 0.0
        %1674 = vmatmul.mubr.f32.gmra.mrb[0].mxu0 %v1347
        %v1675 = vpop.f32.mrb[0].mxu0
        %v1676 = vadd.f32 %v1233, %v1675
        %v1677 = vpop.f32.mrb[0].mxu0
        %1678 = vmatprep.mubr.f32.mxu0 0.0
        %1679 = vmatmul.mubr.f32.gmra.mrb[0].mxu0 %v1350
        %v1680 = vpop.f32.mrb[0].mxu0
        %v1681 = vadd.f32 %v1233, %v1680
        %v1682 = vpop.f32.mrb[0].mxu0
        %1683 = vmatprep.mubr.f32.mxu0 0.0
        %1684 = vmatmul.mubr.f32.gmra.mrb[0].mxu0 %v1353
        %v1685 = vpop.f32.mrb[0].mxu0
        %v1686 = vadd.f32 %v1233, %v1685
        %v1687 = vpop.f32.mrb[0].mxu0
        %1688 = vmatprep.mubr.f32.mxu0 0.0
        %1689 = vmatmul.mubr.f32.gmra.mrb[0].mxu0 %v1356
        %v1690 = vpop.f32.mrb[0].mxu0
        %v1691 = vadd.f32 %v1233, %v1690
        %v1692 = vpop.f32.mrb[0].mxu0
        %1693 = vmatprep.mubr.f32.mxu0 0.0
        %1694 = vmatmul.mubr.f32.gmra.mrb[0].mxu0 %v1359
        %v1695 = vpop.f32.mrb[0].mxu0
        %v1696 = vadd.f32 %v1233, %v1695
        %v1697 = vpop.f32.mrb[0].mxu0
        %1698 = vmatprep.mubr.f32.mxu0 0.0
        %1699 = vmatmul.mubr.f32.gmra.mrb[0].mxu0 %v1362
        %v1700 = vpop.f32.mrb[0].mxu0
        %v1701 = vadd.f32 %v1233, %v1700
        %v1702 = vpop.f32.mrb[0].mxu0
        %1703 = vmatprep.mubr.f32.mxu0 0.0
        %1704 = vmatmul.mubr.f32.gmra.mrb[0].mxu0 %v1365
        %v1705 = vpop.f32.mrb[0].mxu0
        %v1706 = vadd.f32 %v1233, %v1705
        %v1707 = vpop.f32.mrb[0].mxu0
        %1708 = vmatprep.mubr.f32.mxu0 0.0
        %1709 = vmatmul.mubr.f32.gmra.mrb[0].mxu0 %v1368
        %v1710 = vpop.f32.mrb[0].mxu0
        %v1711 = vadd.f32 %v1233, %v1710
        %v1712 = vpop.f32.mrb[0].mxu0
        %1713 = vmatprep.mubr.f32.mxu0 0.0
        %1714 = vmatmul.mubr.f32.gmra.mrb[0].mxu0 %v1371
        %v1715 = vpop.f32.mrb[0].mxu0
        %v1716 = vadd.f32 %v1233, %v1715
        %v1717 = vpop.f32.mrb[0].mxu0
        %1718 = vmatprep.mubr.f32.mxu0 0.0
        %1719 = vmatmul.mubr.f32.gmra.mrb[0].mxu0 %v1374
        %v1720 = vpop.f32.mrb[0].mxu0
        %v1721 = vadd.f32 %v1233, %v1720
        %v1722 = vpop.f32.mrb[0].mxu0
        %1723 = vmatprep.mubr.f32.mxu0 0.0
        %1724 = vmatmul.mubr.f32.gmra.mrb[0].mxu0 %v1377
        %v1725 = vpop.f32.mrb[0].mxu0
        %v1726 = vadd.f32 %v1233, %v1725
        %v1727 = vpop.f32.mrb[0].mxu0
        %1728 = vmatprep.mubr.f32.mxu0 0.0
        %1729 = vmatmul.mubr.f32.gmra.mrb[0].mxu0 %v1380
        %v1730 = vpop.f32.mrb[0].mxu0
        %v1731 = vadd.f32 %v1233, %v1730
        %v1732 = vpop.f32.mrb[0].mxu0
        %1733 = vmatprep.mubr.f32.mxu0 0.0
        %1734 = vmatmul.mubr.f32.gmra.mrb[0].mxu0 %v1383
        %v1735 = vpop.f32.mrb[0].mxu0
        %v1736 = vadd.f32 %v1233, %v1735
        %v1737 = vpop.f32.mrb[0].mxu0
        %1738 = vmatprep.mubr.f32.mxu0 0.0
        %1739 = vmatmul.mubr.f32.gmra.mrb[0].mxu0 %v1386
        %v1740 = vpop.f32.mrb[0].mxu0
        %v1741 = vadd.f32 %v1233, %v1740
        %v1742 = vpop.f32.mrb[0].mxu0
        %1743 = vmatprep.mubr.f32.mxu0 0.0
        %1744 = vmatmul.mubr.f32.gmra.mrb[0].mxu0 %v1389
        %v1745 = vpop.f32.mrb[0].mxu0
        %v1746 = vadd.f32 %v1233, %v1745
        %v1747 = vpop.f32.mrb[0].mxu0
        %1748 = vmatprep.mubr.f32.mxu0 0.0
        %1749 = vmatmul.mubr.f32.gmra.mrb[0].mxu0 %v1392
        %v1750 = vpop.f32.mrb[0].mxu0
        %v1751 = vadd.f32 %v1233, %v1750
        %v1752 = vpop.f32.mrb[0].mxu0
        %1753 = vmatprep.mubr.f32.mxu0 0.0
        %1754 = vmatmul.mubr.f32.gmra.mrb[0].mxu0 %v1395
        %v1755 = vpop.f32.mrb[0].mxu0
        %v1756 = vadd.f32 %v1233, %v1755
        %v1757 = vpop.f32.mrb[0].mxu0
        %1758 = vmatprep.mubr.f32.mxu0 0.0
        %1759 = vmatmul.mubr.f32.gmra.mrb[0].mxu0 %v1398
        %v1760 = vpop.f32.mrb[0].mxu0
        %v1761 = vadd.f32 %v1233, %v1760
        %v1762 = vpop.f32.mrb[0].mxu0
        %1763 = vmatprep.mubr.f32.mxu0 0.0
        %1764 = vmatmul.mubr.f32.gmra.mrb[0].mxu0 %v1401
        %v1765 = vpop.f32.mrb[0].mxu0
        %v1766 = vadd.f32 %v1233, %v1765
        %v1767 = vpop.f32.mrb[0].mxu0
        %1768 = vmatprep.mubr.f32.mxu0 0.0
        %1769 = vmatmul.mubr.f32.gmra.mrb[0].mxu0 %v1404
        %v1770 = vpop.f32.mrb[0].mxu0
        %v1771 = vadd.f32 %v1233, %v1770
        %v1772 = vpop.f32.mrb[0].mxu0
        %1773 = vmatprep.mubr.f32.mxu0 0.0
        %1774 = vmatmul.mubr.f32.gmra.mrb[0].mxu0 %v1407
        %v1775 = vpop.f32.mrb[0].mxu0
        %v1776 = vadd.f32 %v1233, %v1775
        %v1777 = vpop.f32.mrb[0].mxu0
        %1778 = vmatprep.mubr.f32.mxu0 0.0
        %1779 = vmatmul.mubr.f32.gmra.mrb[0].mxu0 %v1410
        %v1780 = vpop.f32.mrb[0].mxu0
        %v1781 = vadd.f32 %v1233, %v1780
        %v1782 = vpop.f32.mrb[0].mxu0
        %1783 = vmatprep.mubr.f32.mxu0 0.0
        %1784 = vmatmul.mubr.f32.gmra.mrb[0].mxu0 %v1413
        %v1785 = vpop.f32.mrb[0].mxu0
        %v1786 = vadd.f32 %v1233, %v1785
        %v1787 = vpop.f32.mrb[0].mxu0
        %1788 = vmatprep.mubr.f32.mxu0 0.0
        %1789 = vmatmul.mubr.f32.gmra.mrb[0].mxu0 %v1416
        %v1790 = vpop.f32.mrb[0].mxu0
        %v1791 = vadd.f32 %v1233, %v1790
        %v1792 = vpop.f32.mrb[0].mxu0
        %1793 = vmatprep.mubr.f32.mxu0 0.0
        %1794 = vmatmul.mubr.f32.gmra.mrb[0].mxu0 %v1419
        %v1795 = vpop.f32.mrb[0].mxu0
        %v1796 = vadd.f32 %v1233, %v1795
        %v1797 = vpop.f32.mrb[0].mxu0
        %1798 = vmatprep.mubr.f32.mxu0 0.0
        %1799 = vmatmul.mubr.f32.gmra.mrb[0].mxu0 %v1422
        %v1800 = vpop.f32.mrb[0].mxu0
        %v1801 = vadd.f32 %v1233, %v1800
        %v1802 = vpop.f32.mrb[0].mxu0
        %1803 = vdwg.mxu0
        %v1804 = vmul.f32 %v1491, 0.5
        %v1805 = vmul.f32 %v1496, 0.5
        %v1806 = vmul.f32 %v1501, 0.5
        %v1807 = vmul.f32 %v1506, 0.5
        %v1808 = vmul.f32 %v1511, 0.5
        %v1809 = vmul.f32 %v1516, 0.5
        %v1810 = vmul.f32 %v1521, 0.5
        %v1811 = vmul.f32 %v1526, 0.5
        %v1812 = vmul.f32 %v1531, 0.5
        %v1813 = vmul.f32 %v1536, 0.5
        %v1814 = vmul.f32 %v1541, 0.5
        %v1815 = vmul.f32 %v1546, 0.5
        %v1816 = vmul.f32 %v1551, 0.5
        %v1817 = vmul.f32 %v1556, 0.5
        %v1818 = vmul.f32 %v1561, 0.5
        %v1819 = vmul.f32 %v1566, 0.5
        %v1820 = vmul.f32 %v1571, 0.5
        %v1821 = vmul.f32 %v1576, 0.5
        %v1822 = vmul.f32 %v1581, 0.5
        %v1823 = vmul.f32 %v1586, 0.5
        %v1824 = vmul.f32 %v1591, 0.5
        %v1825 = vmul.f32 %v1596, 0.5
        %v1826 = vmul.f32 %v1601, 0.5
        %v1827 = vmul.f32 %v1606, 0.5
        %v1828 = vmul.f32 %v1611, 0.5
        %v1829 = vmul.f32 %v1616, 0.5
        %v1830 = vmul.f32 %v1621, 0.5
        %v1831 = vmul.f32 %v1626, 0.5
        %v1832 = vmul.f32 %v1631, 0.5
        %v1833 = vmul.f32 %v1636, 0.5
        %v1834 = vmul.f32 %v1641, 0.5
        %v1835 = vmul.f32 %v1646, 0.5
        %v1836 = vmul.f32 %v1651, 0.5
        %v1837 = vmul.f32 %v1656, 0.5
        %v1838 = vmul.f32 %v1661, 0.5
        %v1839 = vmul.f32 %v1666, 0.5
        %v1840 = vmul.f32 %v1671, 0.5
        %v1841 = vmul.f32 %v1676, 0.5
        %v1842 = vmul.f32 %v1681, 0.5
        %v1843 = vmul.f32 %v1686, 0.5
        %v1844 = vmul.f32 %v1691, 0.5
        %v1845 = vmul.f32 %v1696, 0.5
        %v1846 = vmul.f32 %v1701, 0.5
        %v1847 = vmul.f32 %v1706, 0.5
        %v1848 = vmul.f32 %v1711, 0.5
        %v1849 = vmul.f32 %v1716, 0.5
        %v1850 = vmul.f32 %v1721, 0.5
        %v1851 = vmul.f32 %v1726, 0.5
        %v1852 = vmul.f32 %v1731, 0.5
        %v1853 = vmul.f32 %v1736, 0.5
        %v1854 = vmul.f32 %v1741, 0.5
        %v1855 = vmul.f32 %v1746, 0.5
        %v1856 = vmul.f32 %v1751, 0.5
        %v1857 = vmul.f32 %v1756, 0.5
        %v1858 = vmul.f32 %v1761, 0.5
        %v1859 = vmul.f32 %v1766, 0.5
        %v1860 = vmul.f32 %v1771, 0.5
        %v1861 = vmul.f32 %v1776, 0.5
        %v1862 = vmul.f32 %v1781, 0.5
        %v1863 = vmul.f32 %v1786, 0.5
        %v1864 = vmul.f32 %v1791, 0.5
        %v1865 = vmul.f32 %v1796, 0.5
        %v1866 = vmul.f32 %v1801, 0.5
        %v1867 = vmul.f32 %v1804, 1.442695
        %v1868 = vpow.pop %v1867
        %v1869 = vmul.f32 %v1805, 1.442695
        %v1870 = vpow.pop %v1869
        %v1871 = vmul.f32 %v1806, 1.442695
        %v1872 = vpow.pop %v1871
        %v1873 = vmul.f32 %v1807, 1.442695
        %v1874 = vpow.pop %v1873
        %v1875 = vmul.f32 %v1808, 1.442695
        %v1876 = vpow.pop %v1875
        %v1877 = vmul.f32 %v1809, 1.442695
        %v1878 = vpow.pop %v1877
        %v1879 = vmul.f32 %v1810, 1.442695
        %v1880 = vpow.pop %v1879
        %v1881 = vmul.f32 %v1811, 1.442695
        %v1882 = vpow.pop %v1881
        %v1883 = vmul.f32 %v1812, 1.442695
        %v1884 = vpow.pop %v1883
        %v1885 = vmul.f32 %v1813, 1.442695
        %v1886 = vpow.pop %v1885
        %v1887 = vmul.f32 %v1814, 1.442695
        %v1888 = vpow.pop %v1887
        %v1889 = vmul.f32 %v1815, 1.442695
        %v1890 = vpow.pop %v1889
        %v1891 = vmul.f32 %v1816, 1.442695
        %v1892 = vpow.pop %v1891
        %v1893 = vmul.f32 %v1817, 1.442695
        %v1894 = vpow.pop %v1893
        %v1895 = vmul.f32 %v1818, 1.442695
        %v1896 = vpow.pop %v1895
        %v1897 = vmul.f32 %v1819, 1.442695
        %v1898 = vpow.pop %v1897
        %v1899 = vmul.f32 %v1820, 1.442695
        %v1900 = vpow.pop %v1899
        %v1901 = vmul.f32 %v1821, 1.442695
        %v1902 = vpow.pop %v1901
        %v1903 = vmul.f32 %v1822, 1.442695
        %v1904 = vpow.pop %v1903
        %v1905 = vmul.f32 %v1823, 1.442695
        %v1906 = vpow.pop %v1905
        %v1907 = vmul.f32 %v1824, 1.442695
        %v1908 = vpow.pop %v1907
        %v1909 = vmul.f32 %v1825, 1.442695
        %v1910 = vpow.pop %v1909
        %v1911 = vmul.f32 %v1826, 1.442695
        %v1912 = vpow.pop %v1911
        %v1913 = vmul.f32 %v1827, 1.442695
        %v1914 = vpow.pop %v1913
        %v1915 = vmul.f32 %v1828, 1.442695
        %v1916 = vpow.pop %v1915
        %v1917 = vmul.f32 %v1829, 1.442695
        %v1918 = vpow.pop %v1917
        %v1919 = vmul.f32 %v1830, 1.442695
        %v1920 = vpow.pop %v1919
        %v1921 = vmul.f32 %v1831, 1.442695
        %v1922 = vpow.pop %v1921
        %v1923 = vmul.f32 %v1832, 1.442695
        %v1924 = vpow.pop %v1923
        %v1925 = vmul.f32 %v1833, 1.442695
        %v1926 = vpow.pop %v1925
        %v1927 = vmul.f32 %v1834, 1.442695
        %v1928 = vpow.pop %v1927
        %v1929 = vmul.f32 %v1835, 1.442695
        %v1930 = vpow.pop %v1929
        %v1931 = vmul.f32 %v1836, 1.442695
        %v1932 = vpow.pop %v1931
        %v1933 = vmul.f32 %v1837, 1.442695
        %v1934 = vpow.pop %v1933
        %v1935 = vmul.f32 %v1838, 1.442695
        %v1936 = vpow.pop %v1935
        %v1937 = vmul.f32 %v1839, 1.442695
        %v1938 = vpow.pop %v1937
        %v1939 = vmul.f32 %v1840, 1.442695
        %v1940 = vpow.pop %v1939
        %v1941 = vmul.f32 %v1841, 1.442695
        %v1942 = vpow.pop %v1941
        %v1943 = vmul.f32 %v1842, 1.442695
        %v1944 = vpow.pop %v1943
        %v1945 = vmul.f32 %v1843, 1.442695
        %v1946 = vpow.pop %v1945
        %v1947 = vmul.f32 %v1844, 1.442695
        %v1948 = vpow.pop %v1947
        %v1949 = vmul.f32 %v1845, 1.442695
        %v1950 = vpow.pop %v1949
        %v1951 = vmul.f32 %v1846, 1.442695
        %v1952 = vpow.pop %v1951
        %v1953 = vmul.f32 %v1847, 1.442695
        %v1954 = vpow.pop %v1953
        %v1955 = vmul.f32 %v1848, 1.442695
        %v1956 = vpow.pop %v1955
        %v1957 = vmul.f32 %v1849, 1.442695
        %v1958 = vpow.pop %v1957
        %v1959 = vmul.f32 %v1850, 1.442695
        %v1960 = vpow.pop %v1959
        %v1961 = vmul.f32 %v1851, 1.442695
        %v1962 = vpow.pop %v1961
        %v1963 = vmul.f32 %v1852, 1.442695
        %v1964 = vpow.pop %v1963
        %v1965 = vmul.f32 %v1853, 1.442695
        %v1966 = vpow.pop %v1965
        %v1967 = vmul.f32 %v1854, 1.442695
        %v1968 = vpow.pop %v1967
        %v1969 = vmul.f32 %v1855, 1.442695
        %v1970 = vpow.pop %v1969
        %v1971 = vmul.f32 %v1856, 1.442695
        %v1972 = vpow.pop %v1971
        %v1973 = vmul.f32 %v1857, 1.442695
        %v1974 = vpow.pop %v1973
        %v1975 = vmul.f32 %v1858, 1.442695
        %v1976 = vpow.pop %v1975
        %v1977 = vmul.f32 %v1859, 1.442695
        %v1978 = vpow.pop %v1977
        %v1979 = vmul.f32 %v1860, 1.442695
        %v1980 = vpow.pop %v1979
        %v1981 = vmul.f32 %v1861, 1.442695
        %v1982 = vpow.pop %v1981
        %v1983 = vmul.f32 %v1862, 1.442695
        %v1984 = vpow.pop %v1983
        %v1985 = vmul.f32 %v1863, 1.442695
        %v1986 = vpow.pop %v1985
        %v1987 = vmul.f32 %v1864, 1.442695
        %v1988 = vpow.pop %v1987
        %v1989 = vmul.f32 %v1865, 1.442695
        %v1990 = vpow.pop %v1989
        %v1991 = vmul.f32 %v1866, 1.442695
        %v1992 = vpow.pop %v1991
        %2056 = vrot.lane.b32.xlu0 %v520, 2
        %v2057 = vpop.permute.xlu0 %2056
        %2058 = vrot.lane.b32.xlu0 %v521, 2
        %v2059 = vpop.permute.xlu0 %2058
        %2060 = vrot.lane.b32.xlu0 %v522, 2
        %v2061 = vpop.permute.xlu0 %2060
        %2062 = vrot.lane.b32.xlu0 %v523, 2
        %v2063 = vpop.permute.xlu0 %2062
        %2064 = vrot.lane.b32.xlu0 %v524, 2
        %v2065 = vpop.permute.xlu0 %2064
        %2066 = vrot.lane.b32.xlu0 %v525, 2
        %v2067 = vpop.permute.xlu0 %2066
        %2068 = vrot.lane.b32.xlu0 %v526, 2
        %v2069 = vpop.permute.xlu0 %2068
        %2070 = vrot.lane.b32.xlu0 %v527, 2
        %v2071 = vpop.permute.xlu0 %2070
        %2072 = vrot.lane.b32.xlu0 %v528, 2
        %v2073 = vpop.permute.xlu0 %2072
        %2074 = vrot.lane.b32.xlu0 %v529, 2
        %v2075 = vpop.permute.xlu0 %2074
        %2076 = vrot.lane.b32.xlu0 %v530, 2
        %v2077 = vpop.permute.xlu0 %2076
        %2078 = vrot.lane.b32.xlu0 %v531, 2
        %v2079 = vpop.permute.xlu0 %2078
        %2080 = vrot.lane.b32.xlu0 %v532, 2
        %v2081 = vpop.permute.xlu0 %2080
        %2082 = vrot.lane.b32.xlu0 %v533, 2
        %v2083 = vpop.permute.xlu0 %2082
        %2084 = vrot.lane.b32.xlu0 %v534, 2
        %v2085 = vpop.permute.xlu0 %2084
        %2086 = vrot.lane.b32.xlu0 %v535, 2
        %v2087 = vpop.permute.xlu0 %2086
        %2088 = vrot.lane.b32.xlu0 %v536, 2
        %v2089 = vpop.permute.xlu0 %2088
        %2090 = vrot.lane.b32.xlu0 %v537, 2
        %v2091 = vpop.permute.xlu0 %2090
        %2092 = vrot.lane.b32.xlu0 %v538, 2
        %v2093 = vpop.permute.xlu0 %2092
        %2094 = vrot.lane.b32.xlu0 %v539, 2
        %v2095 = vpop.permute.xlu0 %2094
        %2096 = vrot.lane.b32.xlu0 %v540, 2
        %v2097 = vpop.permute.xlu0 %2096
        %2098 = vrot.lane.b32.xlu0 %v541, 2
        %v2099 = vpop.permute.xlu0 %2098
        %2100 = vrot.lane.b32.xlu0 %v542, 2
        %v2101 = vpop.permute.xlu0 %2100
        %2102 = vrot.lane.b32.xlu0 %v543, 2
        %v2103 = vpop.permute.xlu0 %2102
        %2104 = vrot.lane.b32.xlu0 %v544, 2
        %v2105 = vpop.permute.xlu0 %2104
        %2106 = vrot.lane.b32.xlu0 %v545, 2
        %v2107 = vpop.permute.xlu0 %2106
        %2108 = vrot.lane.b32.xlu0 %v546, 2
        %v2109 = vpop.permute.xlu0 %2108
        %2110 = vrot.lane.b32.xlu0 %v547, 2
        %v2111 = vpop.permute.xlu0 %2110
        %2112 = vrot.lane.b32.xlu0 %v548, 2
        %v2113 = vpop.permute.xlu0 %2112
        %2114 = vrot.lane.b32.xlu0 %v549, 2
        %v2115 = vpop.permute.xlu0 %2114
        %2116 = vrot.lane.b32.xlu0 %v550, 2
        %v2117 = vpop.permute.xlu0 %2116
        %2118 = vrot.lane.b32.xlu0 %v551, 2
        %v2119 = vpop.permute.xlu0 %2118
        %2120 = vrot.lane.b32.xlu0 %v552, 2
        %v2121 = vpop.permute.xlu0 %2120
        %2122 = vrot.lane.b32.xlu0 %v553, 2
        %v2123 = vpop.permute.xlu0 %2122
        %2124 = vrot.lane.b32.xlu0 %v554, 2
        %v2125 = vpop.permute.xlu0 %2124
        %2126 = vrot.lane.b32.xlu0 %v555, 2
        %v2127 = vpop.permute.xlu0 %2126
        %2128 = vrot.lane.b32.xlu0 %v556, 2
        %v2129 = vpop.permute.xlu0 %2128
        %2130 = vrot.lane.b32.xlu0 %v557, 2
        %v2131 = vpop.permute.xlu0 %2130
        %2132 = vrot.lane.b32.xlu0 %v558, 2
        %v2133 = vpop.permute.xlu0 %2132
        %2134 = vrot.lane.b32.xlu0 %v559, 2
        %v2135 = vpop.permute.xlu0 %2134
        %2136 = vrot.lane.b32.xlu0 %v560, 2
        %v2137 = vpop.permute.xlu0 %2136
        %2138 = vrot.lane.b32.xlu0 %v561, 2
        %v2139 = vpop.permute.xlu0 %2138
        %2140 = vrot.lane.b32.xlu0 %v562, 2
        %v2141 = vpop.permute.xlu0 %2140
        %2142 = vrot.lane.b32.xlu0 %v563, 2
        %v2143 = vpop.permute.xlu0 %2142
        %2144 = vrot.lane.b32.xlu0 %v564, 2
        %v2145 = vpop.permute.xlu0 %2144
        %2146 = vrot.lane.b32.xlu0 %v565, 2
        %v2147 = vpop.permute.xlu0 %2146
        %2148 = vrot.lane.b32.xlu0 %v566, 2
        %v2149 = vpop.permute.xlu0 %2148
        %2150 = vrot.lane.b32.xlu0 %v567, 2
        %v2151 = vpop.permute.xlu0 %2150
        %2152 = vrot.lane.b32.xlu0 %v568, 2
        %v2153 = vpop.permute.xlu0 %2152
        %2154 = vrot.lane.b32.xlu0 %v569, 2
        %v2155 = vpop.permute.xlu0 %2154
        %2156 = vrot.lane.b32.xlu0 %v570, 2
        %v2157 = vpop.permute.xlu0 %2156
        %2158 = vrot.lane.b32.xlu0 %v571, 2
        %v2159 = vpop.permute.xlu0 %2158
        %2160 = vrot.lane.b32.xlu0 %v572, 2
        %v2161 = vpop.permute.xlu0 %2160
        %2162 = vrot.lane.b32.xlu0 %v573, 2
        %v2163 = vpop.permute.xlu0 %2162
        %2164 = vrot.lane.b32.xlu0 %v574, 2
        %v2165 = vpop.permute.xlu0 %2164
        %2166 = vrot.lane.b32.xlu0 %v575, 2
        %v2167 = vpop.permute.xlu0 %2166
        %2168 = vrot.lane.b32.xlu0 %v576, 2
        %v2169 = vpop.permute.xlu0 %2168
        %2170 = vrot.lane.b32.xlu0 %v577, 2
        %v2171 = vpop.permute.xlu0 %2170
        %2172 = vrot.lane.b32.xlu0 %v578, 2
        %v2173 = vpop.permute.xlu0 %2172
        %2174 = vrot.lane.b32.xlu0 %v579, 2
        %v2175 = vpop.permute.xlu0 %2174
        %2176 = vrot.lane.b32.xlu0 %v580, 2
        %v2177 = vpop.permute.xlu0 %2176
        %2178 = vrot.lane.b32.xlu0 %v581, 2
        %v2179 = vpop.permute.xlu0 %2178
        %2180 = vrot.lane.b32.xlu0 %v582, 2
        %v2181 = vpop.permute.xlu0 %2180
        %v2245 = vmul.f32 %v1868, %v2057
        %v2246 = vmul.f32 %v1870, %v2059
        %v2247 = vmul.f32 %v1872, %v2061
        %v2248 = vmul.f32 %v1874, %v2063
        %v2249 = vmul.f32 %v1876, %v2065
        %v2250 = vmul.f32 %v1878, %v2067
        %v2251 = vmul.f32 %v1880, %v2069
        %v2252 = vmul.f32 %v1882, %v2071
        %v2253 = vmul.f32 %v1884, %v2073
        %v2254 = vmul.f32 %v1886, %v2075
        %v2255 = vmul.f32 %v1888, %v2077
        %v2256 = vmul.f32 %v1890, %v2079
        %v2257 = vmul.f32 %v1892, %v2081
        %v2258 = vmul.f32 %v1894, %v2083
        %v2259 = vmul.f32 %v1896, %v2085
        %v2260 = vmul.f32 %v1898, %v2087
        %v2261 = vmul.f32 %v1900, %v2089
        %v2262 = vmul.f32 %v1902, %v2091
        %v2263 = vmul.f32 %v1904, %v2093
        %v2264 = vmul.f32 %v1906, %v2095
        %v2265 = vmul.f32 %v1908, %v2097
        %v2266 = vmul.f32 %v1910, %v2099
        %v2267 = vmul.f32 %v1912, %v2101
        %v2268 = vmul.f32 %v1914, %v2103
        %v2269 = vmul.f32 %v1916, %v2105
        %v2270 = vmul.f32 %v1918, %v2107
        %v2271 = vmul.f32 %v1920, %v2109
        %v2272 = vmul.f32 %v1922, %v2111
        %v2273 = vmul.f32 %v1924, %v2113
        %v2274 = vmul.f32 %v1926, %v2115
        %v2275 = vmul.f32 %v1928, %v2117
        %v2276 = vmul.f32 %v1930, %v2119
        %v2277 = vmul.f32 %v1932, %v2121
        %v2278 = vmul.f32 %v1934, %v2123
        %v2279 = vmul.f32 %v1936, %v2125
        %v2280 = vmul.f32 %v1938, %v2127
        %v2281 = vmul.f32 %v1940, %v2129
        %v2282 = vmul.f32 %v1942, %v2131
        %v2283 = vmul.f32 %v1944, %v2133
        %v2284 = vmul.f32 %v1946, %v2135
        %v2285 = vmul.f32 %v1948, %v2137
        %v2286 = vmul.f32 %v1950, %v2139
        %v2287 = vmul.f32 %v1952, %v2141
        %v2288 = vmul.f32 %v1954, %v2143
        %v2289 = vmul.f32 %v1956, %v2145
        %v2290 = vmul.f32 %v1958, %v2147
        %v2291 = vmul.f32 %v1960, %v2149
        %v2292 = vmul.f32 %v1962, %v2151
        %v2293 = vmul.f32 %v1964, %v2153
        %v2294 = vmul.f32 %v1966, %v2155
        %v2295 = vmul.f32 %v1968, %v2157
        %v2296 = vmul.f32 %v1970, %v2159
        %v2297 = vmul.f32 %v1972, %v2161
        %v2298 = vmul.f32 %v1974, %v2163
        %v2299 = vmul.f32 %v1976, %v2165
        %v2300 = vmul.f32 %v1978, %v2167
        %v2301 = vmul.f32 %v1980, %v2169
        %v2302 = vmul.f32 %v1982, %v2171
        %v2303 = vmul.f32 %v1984, %v2173
        %v2304 = vmul.f32 %v1986, %v2175
        %v2305 = vmul.f32 %v1988, %v2177
        %v2306 = vmul.f32 %v1990, %v2179
        %v2307 = vmul.f32 %v1992, %v2181
        %2371 = vrot.lane.b32.xlu0 %v2245, 126
        %v2372 = vpop.permute.xlu0 %2371
        %2373 = vrot.lane.b32.xlu0 %v2246, 126
        %v2374 = vpop.permute.xlu0 %2373
        %2375 = vrot.lane.b32.xlu0 %v2247, 126
        %v2376 = vpop.permute.xlu0 %2375
        %2377 = vrot.lane.b32.xlu0 %v2248, 126
        %v2378 = vpop.permute.xlu0 %2377
        %2379 = vrot.lane.b32.xlu0 %v2249, 126
        %v2380 = vpop.permute.xlu0 %2379
        %2381 = vrot.lane.b32.xlu0 %v2250, 126
        %v2382 = vpop.permute.xlu0 %2381
        %2383 = vrot.lane.b32.xlu0 %v2251, 126
        %v2384 = vpop.permute.xlu0 %2383
        %2385 = vrot.lane.b32.xlu0 %v2252, 126
        %v2386 = vpop.permute.xlu0 %2385
        %2387 = vrot.lane.b32.xlu0 %v2253, 126
        %v2388 = vpop.permute.xlu0 %2387
        %2389 = vrot.lane.b32.xlu0 %v2254, 126
        %v2390 = vpop.permute.xlu0 %2389
        %2391 = vrot.lane.b32.xlu0 %v2255, 126
        %v2392 = vpop.permute.xlu0 %2391
        %2393 = vrot.lane.b32.xlu0 %v2256, 126
        %v2394 = vpop.permute.xlu0 %2393
        %2395 = vrot.lane.b32.xlu0 %v2257, 126
        %v2396 = vpop.permute.xlu0 %2395
        %2397 = vrot.lane.b32.xlu0 %v2258, 126
        %v2398 = vpop.permute.xlu0 %2397
        %2399 = vrot.lane.b32.xlu0 %v2259, 126
        %v2400 = vpop.permute.xlu0 %2399
        %2401 = vrot.lane.b32.xlu0 %v2260, 126
        %v2402 = vpop.permute.xlu0 %2401
        %2403 = vrot.lane.b32.xlu0 %v2261, 126
        %v2404 = vpop.permute.xlu0 %2403
        %2405 = vrot.lane.b32.xlu0 %v2262, 126
        %v2406 = vpop.permute.xlu0 %2405
        %2407 = vrot.lane.b32.xlu0 %v2263, 126
        %v2408 = vpop.permute.xlu0 %2407
        %2409 = vrot.lane.b32.xlu0 %v2264, 126
        %v2410 = vpop.permute.xlu0 %2409
        %2411 = vrot.lane.b32.xlu0 %v2265, 126
        %v2412 = vpop.permute.xlu0 %2411
        %2413 = vrot.lane.b32.xlu0 %v2266, 126
        %v2414 = vpop.permute.xlu0 %2413
        %2415 = vrot.lane.b32.xlu0 %v2267, 126
        %v2416 = vpop.permute.xlu0 %2415
        %2417 = vrot.lane.b32.xlu0 %v2268, 126
        %v2418 = vpop.permute.xlu0 %2417
        %2419 = vrot.lane.b32.xlu0 %v2269, 126
        %v2420 = vpop.permute.xlu0 %2419
        %2421 = vrot.lane.b32.xlu0 %v2270, 126
        %v2422 = vpop.permute.xlu0 %2421
        %2423 = vrot.lane.b32.xlu0 %v2271, 126
        %v2424 = vpop.permute.xlu0 %2423
        %2425 = vrot.lane.b32.xlu0 %v2272, 126
        %v2426 = vpop.permute.xlu0 %2425
        %2427 = vrot.lane.b32.xlu0 %v2273, 126
        %v2428 = vpop.permute.xlu0 %2427
        %2429 = vrot.lane.b32.xlu0 %v2274, 126
        %v2430 = vpop.permute.xlu0 %2429
        %2431 = vrot.lane.b32.xlu0 %v2275, 126
        %v2432 = vpop.permute.xlu0 %2431
        %2433 = vrot.lane.b32.xlu0 %v2276, 126
        %v2434 = vpop.permute.xlu0 %2433
        %2435 = vrot.lane.b32.xlu0 %v2277, 126
        %v2436 = vpop.permute.xlu0 %2435
        %2437 = vrot.lane.b32.xlu0 %v2278, 126
        %v2438 = vpop.permute.xlu0 %2437
        %2439 = vrot.lane.b32.xlu0 %v2279, 126
        %v2440 = vpop.permute.xlu0 %2439
        %2441 = vrot.lane.b32.xlu0 %v2280, 126
        %v2442 = vpop.permute.xlu0 %2441
        %2443 = vrot.lane.b32.xlu0 %v2281, 126
        %v2444 = vpop.permute.xlu0 %2443
        %2445 = vrot.lane.b32.xlu0 %v2282, 126
        %v2446 = vpop.permute.xlu0 %2445
        %2447 = vrot.lane.b32.xlu0 %v2283, 126
        %v2448 = vpop.permute.xlu0 %2447
        %2449 = vrot.lane.b32.xlu0 %v2284, 126
        %v2450 = vpop.permute.xlu0 %2449
        %2451 = vrot.lane.b32.xlu0 %v2285, 126
        %v2452 = vpop.permute.xlu0 %2451
        %2453 = vrot.lane.b32.xlu0 %v2286, 126
        %v2454 = vpop.permute.xlu0 %2453
        %2455 = vrot.lane.b32.xlu0 %v2287, 126
        %v2456 = vpop.permute.xlu0 %2455
        %2457 = vrot.lane.b32.xlu0 %v2288, 126
        %v2458 = vpop.permute.xlu0 %2457
        %2459 = vrot.lane.b32.xlu0 %v2289, 126
        %v2460 = vpop.permute.xlu0 %2459
        %2461 = vrot.lane.b32.xlu0 %v2290, 126
        %v2462 = vpop.permute.xlu0 %2461
        %2463 = vrot.lane.b32.xlu0 %v2291, 126
        %v2464 = vpop.permute.xlu0 %2463
        %2465 = vrot.lane.b32.xlu0 %v2292, 126
        %v2466 = vpop.permute.xlu0 %2465
        %2467 = vrot.lane.b32.xlu0 %v2293, 126
        %v2468 = vpop.permute.xlu0 %2467
        %2469 = vrot.lane.b32.xlu0 %v2294, 126
        %v2470 = vpop.permute.xlu0 %2469
        %2471 = vrot.lane.b32.xlu0 %v2295, 126
        %v2472 = vpop.permute.xlu0 %2471
        %2473 = vrot.lane.b32.xlu0 %v2296, 126
        %v2474 = vpop.permute.xlu0 %2473
        %2475 = vrot.lane.b32.xlu0 %v2297, 126
        %v2476 = vpop.permute.xlu0 %2475
        %2477 = vrot.lane.b32.xlu0 %v2298, 126
        %v2478 = vpop.permute.xlu0 %2477
        %2479 = vrot.lane.b32.xlu0 %v2299, 126
        %v2480 = vpop.permute.xlu0 %2479
        %2481 = vrot.lane.b32.xlu0 %v2300, 126
        %v2482 = vpop.permute.xlu0 %2481
        %2483 = vrot.lane.b32.xlu0 %v2301, 126
        %v2484 = vpop.permute.xlu0 %2483
        %2485 = vrot.lane.b32.xlu0 %v2302, 126
        %v2486 = vpop.permute.xlu0 %2485
        %2487 = vrot.lane.b32.xlu0 %v2303, 126
        %v2488 = vpop.permute.xlu0 %2487
        %2489 = vrot.lane.b32.xlu0 %v2304, 126
        %v2490 = vpop.permute.xlu0 %2489
        %2491 = vrot.lane.b32.xlu0 %v2305, 126
        %v2492 = vpop.permute.xlu0 %2491
        %2493 = vrot.lane.b32.xlu0 %v2306, 126
        %v2494 = vpop.permute.xlu0 %2493
        %2495 = vrot.lane.b32.xlu0 %v2307, 126
        %v2496 = vpop.permute.xlu0 %2495
        %v2560 = vadd.f32 %v1491, %v2372
        %v2561 = vadd.f32 %v1496, %v2374
        %v2562 = vadd.f32 %v1501, %v2376
        %v2563 = vadd.f32 %v1506, %v2378
        %v2564 = vadd.f32 %v1511, %v2380
        %v2565 = vadd.f32 %v1516, %v2382
        %v2566 = vadd.f32 %v1521, %v2384
        %v2567 = vadd.f32 %v1526, %v2386
        %v2568 = vadd.f32 %v1531, %v2388
        %v2569 = vadd.f32 %v1536, %v2390
        %v2570 = vadd.f32 %v1541, %v2392
        %v2571 = vadd.f32 %v1546, %v2394
        %v2572 = vadd.f32 %v1551, %v2396
        %v2573 = vadd.f32 %v1556, %v2398
        %v2574 = vadd.f32 %v1561, %v2400
        %v2575 = vadd.f32 %v1566, %v2402
        %v2576 = vadd.f32 %v1571, %v2404
        %v2577 = vadd.f32 %v1576, %v2406
        %v2578 = vadd.f32 %v1581, %v2408
        %v2579 = vadd.f32 %v1586, %v2410
        %v2580 = vadd.f32 %v1591, %v2412
        %v2581 = vadd.f32 %v1596, %v2414
        %v2582 = vadd.f32 %v1601, %v2416
        %v2583 = vadd.f32 %v1606, %v2418
        %v2584 = vadd.f32 %v1611, %v2420
        %v2585 = vadd.f32 %v1616, %v2422
        %v2586 = vadd.f32 %v1621, %v2424
        %v2587 = vadd.f32 %v1626, %v2426
        %v2588 = vadd.f32 %v1631, %v2428
        %v2589 = vadd.f32 %v1636, %v2430
        %v2590 = vadd.f32 %v1641, %v2432
        %v2591 = vadd.f32 %v1646, %v2434
        %v2592 = vadd.f32 %v1651, %v2436
        %v2593 = vadd.f32 %v1656, %v2438
        %v2594 = vadd.f32 %v1661, %v2440
        %v2595 = vadd.f32 %v1666, %v2442
        %v2596 = vadd.f32 %v1671, %v2444
        %v2597 = vadd.f32 %v1676, %v2446
        %v2598 = vadd.f32 %v1681, %v2448
        %v2599 = vadd.f32 %v1686, %v2450
        %v2600 = vadd.f32 %v1691, %v2452
        %v2601 = vadd.f32 %v1696, %v2454
        %v2602 = vadd.f32 %v1701, %v2456
        %v2603 = vadd.f32 %v1706, %v2458
        %v2604 = vadd.f32 %v1711, %v2460
        %v2605 = vadd.f32 %v1716, %v2462
        %v2606 = vadd.f32 %v1721, %v2464
        %v2607 = vadd.f32 %v1726, %v2466
        %v2608 = vadd.f32 %v1731, %v2468
        %v2609 = vadd.f32 %v1736, %v2470
        %v2610 = vadd.f32 %v1741, %v2472
        %v2611 = vadd.f32 %v1746, %v2474
        %v2612 = vadd.f32 %v1751, %v2476
        %v2613 = vadd.f32 %v1756, %v2478
        %v2614 = vadd.f32 %v1761, %v2480
        %v2615 = vadd.f32 %v1766, %v2482
        %v2616 = vadd.f32 %v1771, %v2484
        %v2617 = vadd.f32 %v1776, %v2486
        %v2618 = vadd.f32 %v1781, %v2488
        %v2619 = vadd.f32 %v1786, %v2490
        %v2620 = vadd.f32 %v1791, %v2492
        %v2621 = vadd.f32 %v1796, %v2494
        %v2622 = vadd.f32 %v1801, %v2496
        %v2623 = vld [vmem:[%s4] sm:$0x1]
        %2625 = vset.pattern.permute.xlu0 0
        %2626 = vperm.xlu0 %2625, %v2560
        %v2627 = vpop.permute.xlu0 %2626
        %2630 = vset.pattern.permute.xlu0 0
        %2631 = vperm.xlu0 %2630, %v2561
        %v2632 = vpop.permute.xlu0 %2631
        %2635 = vset.pattern.permute.xlu0 0
        %2636 = vperm.xlu0 %2635, %v2562
        %v2637 = vpop.permute.xlu0 %2636
        %2640 = vset.pattern.permute.xlu0 0
        %2641 = vperm.xlu0 %2640, %v2563
        %v2642 = vpop.permute.xlu0 %2641
        %2645 = vset.pattern.permute.xlu0 0
        %2646 = vperm.xlu0 %2645, %v2564
        %v2647 = vpop.permute.xlu0 %2646
        %2650 = vset.pattern.permute.xlu0 0
        %2651 = vperm.xlu0 %2650, %v2565
        %v2652 = vpop.permute.xlu0 %2651
        %2655 = vset.pattern.permute.xlu0 0
        %2656 = vperm.xlu0 %2655, %v2566
        %v2657 = vpop.permute.xlu0 %2656
        %2660 = vset.pattern.permute.xlu0 0
        %2661 = vperm.xlu0 %2660, %v2567
        %v2662 = vpop.permute.xlu0 %2661
        %2665 = vset.pattern.permute.xlu0 0
        %2666 = vperm.xlu0 %2665, %v2568
        %v2667 = vpop.permute.xlu0 %2666
        %2670 = vset.pattern.permute.xlu0 0
        %2671 = vperm.xlu0 %2670, %v2569
        %v2672 = vpop.permute.xlu0 %2671
        %2675 = vset.pattern.permute.xlu0 0
        %2676 = vperm.xlu0 %2675, %v2570
        %v2677 = vpop.permute.xlu0 %2676
        %2680 = vset.pattern.permute.xlu0 0
        %2681 = vperm.xlu0 %2680, %v2571
        %v2682 = vpop.permute.xlu0 %2681
        %2685 = vset.pattern.permute.xlu0 0
        %2686 = vperm.xlu0 %2685, %v2572
        %v2687 = vpop.permute.xlu0 %2686
        %2690 = vset.pattern.permute.xlu0 0
        %2691 = vperm.xlu0 %2690, %v2573
        %v2692 = vpop.permute.xlu0 %2691
        %2695 = vset.pattern.permute.xlu0 0
        %2696 = vperm.xlu0 %2695, %v2574
        %v2697 = vpop.permute.xlu0 %2696
        %2700 = vset.pattern.permute.xlu0 0
        %2701 = vperm.xlu0 %2700, %v2575
        %v2702 = vpop.permute.xlu0 %2701
        %2705 = vset.pattern.permute.xlu0 0
        %2706 = vperm.xlu0 %2705, %v2576
        %v2707 = vpop.permute.xlu0 %2706
        %2710 = vset.pattern.permute.xlu0 0
        %2711 = vperm.xlu0 %2710, %v2577
        %v2712 = vpop.permute.xlu0 %2711
        %2715 = vset.pattern.permute.xlu0 0
        %2716 = vperm.xlu0 %2715, %v2578
        %v2717 = vpop.permute.xlu0 %2716
        %2720 = vset.pattern.permute.xlu0 0
        %2721 = vperm.xlu0 %2720, %v2579
        %v2722 = vpop.permute.xlu0 %2721
        %2725 = vset.pattern.permute.xlu0 0
        %2726 = vperm.xlu0 %2725, %v2580
        %v2727 = vpop.permute.xlu0 %2726
        %2730 = vset.pattern.permute.xlu0 0
        %2731 = vperm.xlu0 %2730, %v2581
        %v2732 = vpop.permute.xlu0 %2731
        %2735 = vset.pattern.permute.xlu0 0
        %2736 = vperm.xlu0 %2735, %v2582
        %v2737 = vpop.permute.xlu0 %2736
        %2740 = vset.pattern.permute.xlu0 0
        %2741 = vperm.xlu0 %2740, %v2583
        %v2742 = vpop.permute.xlu0 %2741
        %2745 = vset.pattern.permute.xlu0 0
        %2746 = vperm.xlu0 %2745, %v2584
        %v2747 = vpop.permute.xlu0 %2746
        %2750 = vset.pattern.permute.xlu0 0
        %2751 = vperm.xlu0 %2750, %v2585
        %v2752 = vpop.permute.xlu0 %2751
        %2755 = vset.pattern.permute.xlu0 0
        %2756 = vperm.xlu0 %2755, %v2586
        %v2757 = vpop.permute.xlu0 %2756
        %2760 = vset.pattern.permute.xlu0 0
        %2761 = vperm.xlu0 %2760, %v2587
        %v2762 = vpop.permute.xlu0 %2761
        %2765 = vset.pattern.permute.xlu0 0
        %2766 = vperm.xlu0 %2765, %v2588
        %v2767 = vpop.permute.xlu0 %2766
        %2770 = vset.pattern.permute.xlu0 0
        %2771 = vperm.xlu0 %2770, %v2589
        %v2772 = vpop.permute.xlu0 %2771
        %2775 = vset.pattern.permute.xlu0 0
        %2776 = vperm.xlu0 %2775, %v2590
        %v2777 = vpop.permute.xlu0 %2776
        %2780 = vset.pattern.permute.xlu0 0
        %2781 = vperm.xlu0 %2780, %v2591
        %v2782 = vpop.permute.xlu0 %2781
        %2785 = vset.pattern.permute.xlu0 0
        %2786 = vperm.xlu0 %2785, %v2592
        %v2787 = vpop.permute.xlu0 %2786
        %2790 = vset.pattern.permute.xlu0 0
        %2791 = vperm.xlu0 %2790, %v2593
        %v2792 = vpop.permute.xlu0 %2791
        %2795 = vset.pattern.permute.xlu0 0
        %2796 = vperm.xlu0 %2795, %v2594
        %v2797 = vpop.permute.xlu0 %2796
        %2800 = vset.pattern.permute.xlu0 0
        %2801 = vperm.xlu0 %2800, %v2595
        %v2802 = vpop.permute.xlu0 %2801
        %2805 = vset.pattern.permute.xlu0 0
        %2806 = vperm.xlu0 %2805, %v2596
        %v2807 = vpop.permute.xlu0 %2806
        %2810 = vset.pattern.permute.xlu0 0
        %2811 = vperm.xlu0 %2810, %v2597
        %v2812 = vpop.permute.xlu0 %2811
        %2815 = vset.pattern.permute.xlu0 0
        %2816 = vperm.xlu0 %2815, %v2598
        %v2817 = vpop.permute.xlu0 %2816
        %2820 = vset.pattern.permute.xlu0 0
        %2821 = vperm.xlu0 %2820, %v2599
        %v2822 = vpop.permute.xlu0 %2821
        %2825 = vset.pattern.permute.xlu0 0
        %2826 = vperm.xlu0 %2825, %v2600
        %v2827 = vpop.permute.xlu0 %2826
        %2830 = vset.pattern.permute.xlu0 0
        %2831 = vperm.xlu0 %2830, %v2601
        %v2832 = vpop.permute.xlu0 %2831
        %2835 = vset.pattern.permute.xlu0 0
        %2836 = vperm.xlu0 %2835, %v2602
        %v2837 = vpop.permute.xlu0 %2836
        %2840 = vset.pattern.permute.xlu0 0
        %2841 = vperm.xlu0 %2840, %v2603
        %v2842 = vpop.permute.xlu0 %2841
        %2845 = vset.pattern.permute.xlu0 0
        %2846 = vperm.xlu0 %2845, %v2604
        %v2847 = vpop.permute.xlu0 %2846
        %2850 = vset.pattern.permute.xlu0 0
        %2851 = vperm.xlu0 %2850, %v2605
        %v2852 = vpop.permute.xlu0 %2851
        %2855 = vset.pattern.permute.xlu0 0
        %2856 = vperm.xlu0 %2855, %v2606
        %v2857 = vpop.permute.xlu0 %2856
        %2860 = vset.pattern.permute.xlu0 0
        %2861 = vperm.xlu0 %2860, %v2607
        %v2862 = vpop.permute.xlu0 %2861
        %2865 = vset.pattern.permute.xlu0 0
        %2866 = vperm.xlu0 %2865, %v2608
        %v2867 = vpop.permute.xlu0 %2866
        %2870 = vset.pattern.permute.xlu0 0
        %2871 = vperm.xlu0 %2870, %v2609
        %v2872 = vpop.permute.xlu0 %2871
        %2875 = vset.pattern.permute.xlu0 0
        %2876 = vperm.xlu0 %2875, %v2610
        %v2877 = vpop.permute.xlu0 %2876
        %2880 = vset.pattern.permute.xlu0 0
        %2881 = vperm.xlu0 %2880, %v2611
        %v2882 = vpop.permute.xlu0 %2881
        %2885 = vset.pattern.permute.xlu0 0
        %2886 = vperm.xlu0 %2885, %v2612
        %v2887 = vpop.permute.xlu0 %2886
        %2890 = vset.pattern.permute.xlu0 0
        %2891 = vperm.xlu0 %2890, %v2613
        %v2892 = vpop.permute.xlu0 %2891
        %2895 = vset.pattern.permute.xlu0 0
        %2896 = vperm.xlu0 %2895, %v2614
        %v2897 = vpop.permute.xlu0 %2896
        %2900 = vset.pattern.permute.xlu0 0
        %2901 = vperm.xlu0 %2900, %v2615
        %v2902 = vpop.permute.xlu0 %2901
        %2905 = vset.pattern.permute.xlu0 0
        %2906 = vperm.xlu0 %2905, %v2616
        %v2907 = vpop.permute.xlu0 %2906
        %2910 = vset.pattern.permute.xlu0 0
        %2911 = vperm.xlu0 %2910, %v2617
        %v2912 = vpop.permute.xlu0 %2911
        %2915 = vset.pattern.permute.xlu0 0
        %2916 = vperm.xlu0 %2915, %v2618
        %v2917 = vpop.permute.xlu0 %2916
        %2920 = vset.pattern.permute.xlu0 0
        %2921 = vperm.xlu0 %2920, %v2619
        %v2922 = vpop.permute.xlu0 %2921
        %2925 = vset.pattern.permute.xlu0 0
        %2926 = vperm.xlu0 %2925, %v2620
        %v2927 = vpop.permute.xlu0 %2926
        %2930 = vset.pattern.permute.xlu0 0
        %2931 = vperm.xlu0 %2930, %v2621
        %v2932 = vpop.permute.xlu0 %2931
        %2935 = vset.pattern.permute.xlu0 0
        %2936 = vperm.xlu0 %2935, %v2622
        %v2937 = vpop.permute.xlu0 %2936
        %v2939 = vlaneseq
        %v2940 = vshrl.u32 %v2939, 7
        %v2941 = vsub.s32 0, %v2940
        %v2942 = vrot.slane %v2623, %v2941
        %v2943 = vmul.f32 %v2627, %v2942
        %v2944 = vmul.f32 %v2632, %v2942
        %v2945 = vmul.f32 %v2637, %v2942
        %v2946 = vmul.f32 %v2642, %v2942
        %v2947 = vmul.f32 %v2647, %v2942
        %v2948 = vmul.f32 %v2652, %v2942
        %v2949 = vmul.f32 %v2657, %v2942
        %v2950 = vmul.f32 %v2662, %v2942
        %v2951 = vmul.f32 %v2667, %v2942
        %v2952 = vmul.f32 %v2672, %v2942
        %v2953 = vmul.f32 %v2677, %v2942
        %v2954 = vmul.f32 %v2682, %v2942
        %v2955 = vmul.f32 %v2687, %v2942
        %v2956 = vmul.f32 %v2692, %v2942
        %v2957 = vmul.f32 %v2697, %v2942
        %v2958 = vmul.f32 %v2702, %v2942
        %v2959 = vmul.f32 %v2707, %v2942
        %v2960 = vmul.f32 %v2712, %v2942
        %v2961 = vmul.f32 %v2717, %v2942
        %v2962 = vmul.f32 %v2722, %v2942
        %v2963 = vmul.f32 %v2727, %v2942
        %v2964 = vmul.f32 %v2732, %v2942
        %v2965 = vmul.f32 %v2737, %v2942
        %v2966 = vmul.f32 %v2742, %v2942
        %v2967 = vmul.f32 %v2747, %v2942
        %v2968 = vmul.f32 %v2752, %v2942
        %v2969 = vmul.f32 %v2757, %v2942
        %v2970 = vmul.f32 %v2762, %v2942
        %v2971 = vmul.f32 %v2767, %v2942
        %v2972 = vmul.f32 %v2772, %v2942
        %v2973 = vmul.f32 %v2777, %v2942
        %v2974 = vmul.f32 %v2782, %v2942
        %v2975 = vmul.f32 %v2787, %v2942
        %v2976 = vmul.f32 %v2792, %v2942
        %v2977 = vmul.f32 %v2797, %v2942
        %v2978 = vmul.f32 %v2802, %v2942
        %v2979 = vmul.f32 %v2807, %v2942
        %v2980 = vmul.f32 %v2812, %v2942
        %v2981 = vmul.f32 %v2817, %v2942
        %v2982 = vmul.f32 %v2822, %v2942
        %v2983 = vmul.f32 %v2827, %v2942
        %v2984 = vmul.f32 %v2832, %v2942
        %v2985 = vmul.f32 %v2837, %v2942
        %v2986 = vmul.f32 %v2842, %v2942
        %v2987 = vmul.f32 %v2847, %v2942
        %v2988 = vmul.f32 %v2852, %v2942
        %v2989 = vmul.f32 %v2857, %v2942
        %v2990 = vmul.f32 %v2862, %v2942
        %v2991 = vmul.f32 %v2867, %v2942
        %v2992 = vmul.f32 %v2872, %v2942
        %v2993 = vmul.f32 %v2877, %v2942
        %v2994 = vmul.f32 %v2882, %v2942
        %v2995 = vmul.f32 %v2887, %v2942
        %v2996 = vmul.f32 %v2892, %v2942
        %v2997 = vmul.f32 %v2897, %v2942
        %v2998 = vmul.f32 %v2902, %v2942
        %v2999 = vmul.f32 %v2907, %v2942
        %v3000 = vmul.f32 %v2912, %v2942
        %v3001 = vmul.f32 %v2917, %v2942
        %v3002 = vmul.f32 %v2922, %v2942
        %v3003 = vmul.f32 %v2927, %v2942
        %v3004 = vmul.f32 %v2932, %v2942
        %v3005 = vmul.f32 %v2937, %v2942
        %v3006 = vlaneseq
        %v3007 = vshrl.u32 %v3006, 7
        %v3008 = vsub.s32 0, %v3007
        %v3009 = vrot.slane %v584, %v3008
        %v3010 = vadd.f32 %v3009, %v2943
        %v3011 = vadd.f32 %v3009, %v2944
        %v3012 = vadd.f32 %v3009, %v2945
        %v3013 = vadd.f32 %v3009, %v2946
        %v3014 = vadd.f32 %v3009, %v2947
        %v3015 = vadd.f32 %v3009, %v2948
        %v3016 = vadd.f32 %v3009, %v2949
        %v3017 = vadd.f32 %v3009, %v2950
        %v3018 = vadd.f32 %v3009, %v2951
        %v3019 = vadd.f32 %v3009, %v2952
        %v3020 = vadd.f32 %v3009, %v2953
        %v3021 = vadd.f32 %v3009, %v2954
        %v3022 = vadd.f32 %v3009, %v2955
        %v3023 = vadd.f32 %v3009, %v2956
        %v3024 = vadd.f32 %v3009, %v2957
        %v3025 = vadd.f32 %v3009, %v2958
        %v3026 = vadd.f32 %v3009, %v2959
        %v3027 = vadd.f32 %v3009, %v2960
        %v3028 = vadd.f32 %v3009, %v2961
        %v3029 = vadd.f32 %v3009, %v2962
        %v3030 = vadd.f32 %v3009, %v2963
        %v3031 = vadd.f32 %v3009, %v2964
        %v3032 = vadd.f32 %v3009, %v2965
        %v3033 = vadd.f32 %v3009, %v2966
        %v3034 = vadd.f32 %v3009, %v2967
        %v3035 = vadd.f32 %v3009, %v2968
        %v3036 = vadd.f32 %v3009, %v2969
        %v3037 = vadd.f32 %v3009, %v2970
        %v3038 = vadd.f32 %v3009, %v2971
        %v3039 = vadd.f32 %v3009, %v2972
        %v3040 = vadd.f32 %v3009, %v2973
        %v3041 = vadd.f32 %v3009, %v2974
        %v3042 = vadd.f32 %v3009, %v2975
        %v3043 = vadd.f32 %v3009, %v2976
        %v3044 = vadd.f32 %v3009, %v2977
        %v3045 = vadd.f32 %v3009, %v2978
        %v3046 = vadd.f32 %v3009, %v2979
        %v3047 = vadd.f32 %v3009, %v2980
        %v3048 = vadd.f32 %v3009, %v2981
        %v3049 = vadd.f32 %v3009, %v2982
        %v3050 = vadd.f32 %v3009, %v2983
        %v3051 = vadd.f32 %v3009, %v2984
        %v3052 = vadd.f32 %v3009, %v2985
        %v3053 = vadd.f32 %v3009, %v2986
        %v3054 = vadd.f32 %v3009, %v2987
        %v3055 = vadd.f32 %v3009, %v2988
        %v3056 = vadd.f32 %v3009, %v2989
        %v3057 = vadd.f32 %v3009, %v2990
        %v3058 = vadd.f32 %v3009, %v2991
        %v3059 = vadd.f32 %v3009, %v2992
        %v3060 = vadd.f32 %v3009, %v2993
        %v3061 = vadd.f32 %v3009, %v2994
        %v3062 = vadd.f32 %v3009, %v2995
        %v3063 = vadd.f32 %v3009, %v2996
        %v3064 = vadd.f32 %v3009, %v2997
        %v3065 = vadd.f32 %v3009, %v2998
        %v3066 = vadd.f32 %v3009, %v2999
        %v3067 = vadd.f32 %v3009, %v3000
        %v3068 = vadd.f32 %v3009, %v3001
        %v3069 = vadd.f32 %v3009, %v3002
        %v3070 = vadd.f32 %v3009, %v3003
        %v3071 = vadd.f32 %v3009, %v3004
        %v3072 = vadd.f32 %v3009, %v3005
        %v3073 = vld [vmem:[%s4 + $0x1] sm:$0x1]
        %3074 = vset.pattern.permute.xlu0 1
        %3075 = vperm.xlu0 %3074, %v2560
        %v3076 = vpop.permute.xlu0 %3075
        %3078 = vset.pattern.permute.xlu0 1
        %3079 = vperm.xlu0 %3078, %v2561
        %v3080 = vpop.permute.xlu0 %3079
        %3082 = vset.pattern.permute.xlu0 1
        %3083 = vperm.xlu0 %3082, %v2562
        %v3084 = vpop.permute.xlu0 %3083
        %3086 = vset.pattern.permute.xlu0 1
        %3087 = vperm.xlu0 %3086, %v2563
        %v3088 = vpop.permute.xlu0 %3087
        %3090 = vset.pattern.permute.xlu0 1
        %3091 = vperm.xlu0 %3090, %v2564
        %v3092 = vpop.permute.xlu0 %3091
        %3094 = vset.pattern.permute.xlu0 1
        %3095 = vperm.xlu0 %3094, %v2565
        %v3096 = vpop.permute.xlu0 %3095
        %3098 = vset.pattern.permute.xlu0 1
        %3099 = vperm.xlu0 %3098, %v2566
        %v3100 = vpop.permute.xlu0 %3099
        %3102 = vset.pattern.permute.xlu0 1
        %3103 = vperm.xlu0 %3102, %v2567
        %v3104 = vpop.permute.xlu0 %3103
        %3106 = vset.pattern.permute.xlu0 1
        %3107 = vperm.xlu0 %3106, %v2568
        %v3108 = vpop.permute.xlu0 %3107
        %3110 = vset.pattern.permute.xlu0 1
        %3111 = vperm.xlu0 %3110, %v2569
        %v3112 = vpop.permute.xlu0 %3111
        %3114 = vset.pattern.permute.xlu0 1
        %3115 = vperm.xlu0 %3114, %v2570
        %v3116 = vpop.permute.xlu0 %3115
        %3118 = vset.pattern.permute.xlu0 1
        %3119 = vperm.xlu0 %3118, %v2571
        %v3120 = vpop.permute.xlu0 %3119
        %3122 = vset.pattern.permute.xlu0 1
        %3123 = vperm.xlu0 %3122, %v2572
        %v3124 = vpop.permute.xlu0 %3123
        %3126 = vset.pattern.permute.xlu0 1
        %3127 = vperm.xlu0 %3126, %v2573
        %v3128 = vpop.permute.xlu0 %3127
        %3130 = vset.pattern.permute.xlu0 1
        %3131 = vperm.xlu0 %3130, %v2574
        %v3132 = vpop.permute.xlu0 %3131
        %3134 = vset.pattern.permute.xlu0 1
        %3135 = vperm.xlu0 %3134, %v2575
        %v3136 = vpop.permute.xlu0 %3135
        %3138 = vset.pattern.permute.xlu0 1
        %3139 = vperm.xlu0 %3138, %v2576
        %v3140 = vpop.permute.xlu0 %3139
        %3142 = vset.pattern.permute.xlu0 1
        %3143 = vperm.xlu0 %3142, %v2577
        %v3144 = vpop.permute.xlu0 %3143
        %3146 = vset.pattern.permute.xlu0 1
        %3147 = vperm.xlu0 %3146, %v2578
        %v3148 = vpop.permute.xlu0 %3147
        %3150 = vset.pattern.permute.xlu0 1
        %3151 = vperm.xlu0 %3150, %v2579
        %v3152 = vpop.permute.xlu0 %3151
        %3154 = vset.pattern.permute.xlu0 1
        %3155 = vperm.xlu0 %3154, %v2580
        %v3156 = vpop.permute.xlu0 %3155
        %3158 = vset.pattern.permute.xlu0 1
        %3159 = vperm.xlu0 %3158, %v2581
        %v3160 = vpop.permute.xlu0 %3159
        %3162 = vset.pattern.permute.xlu0 1
        %3163 = vperm.xlu0 %3162, %v2582
        %v3164 = vpop.permute.xlu0 %3163
        %3166 = vset.pattern.permute.xlu0 1
        %3167 = vperm.xlu0 %3166, %v2583
        %v3168 = vpop.permute.xlu0 %3167
        %3170 = vset.pattern.permute.xlu0 1
        %3171 = vperm.xlu0 %3170, %v2584
        %v3172 = vpop.permute.xlu0 %3171
        %3174 = vset.pattern.permute.xlu0 1
        %3175 = vperm.xlu0 %3174, %v2585
        %v3176 = vpop.permute.xlu0 %3175
        %3178 = vset.pattern.permute.xlu0 1
        %3179 = vperm.xlu0 %3178, %v2586
        %v3180 = vpop.permute.xlu0 %3179
        %3182 = vset.pattern.permute.xlu0 1
        %3183 = vperm.xlu0 %3182, %v2587
        %v3184 = vpop.permute.xlu0 %3183
        %3186 = vset.pattern.permute.xlu0 1
        %3187 = vperm.xlu0 %3186, %v2588
        %v3188 = vpop.permute.xlu0 %3187
        %3190 = vset.pattern.permute.xlu0 1
        %3191 = vperm.xlu0 %3190, %v2589
        %v3192 = vpop.permute.xlu0 %3191
        %3194 = vset.pattern.permute.xlu0 1
        %3195 = vperm.xlu0 %3194, %v2590
        %v3196 = vpop.permute.xlu0 %3195
        %3198 = vset.pattern.permute.xlu0 1
        %3199 = vperm.xlu0 %3198, %v2591
        %v3200 = vpop.permute.xlu0 %3199
        %3202 = vset.pattern.permute.xlu0 1
        %3203 = vperm.xlu0 %3202, %v2592
        %v3204 = vpop.permute.xlu0 %3203
        %3206 = vset.pattern.permute.xlu0 1
        %3207 = vperm.xlu0 %3206, %v2593
        %v3208 = vpop.permute.xlu0 %3207
        %3210 = vset.pattern.permute.xlu0 1
        %3211 = vperm.xlu0 %3210, %v2594
        %v3212 = vpop.permute.xlu0 %3211
        %3214 = vset.pattern.permute.xlu0 1
        %3215 = vperm.xlu0 %3214, %v2595
        %v3216 = vpop.permute.xlu0 %3215
        %3218 = vset.pattern.permute.xlu0 1
        %3219 = vperm.xlu0 %3218, %v2596
        %v3220 = vpop.permute.xlu0 %3219
        %3222 = vset.pattern.permute.xlu0 1
        %3223 = vperm.xlu0 %3222, %v2597
        %v3224 = vpop.permute.xlu0 %3223
        %3226 = vset.pattern.permute.xlu0 1
        %3227 = vperm.xlu0 %3226, %v2598
        %v3228 = vpop.permute.xlu0 %3227
        %3230 = vset.pattern.permute.xlu0 1
        %3231 = vperm.xlu0 %3230, %v2599
        %v3232 = vpop.permute.xlu0 %3231
        %3234 = vset.pattern.permute.xlu0 1
        %3235 = vperm.xlu0 %3234, %v2600
        %v3236 = vpop.permute.xlu0 %3235
        %3238 = vset.pattern.permute.xlu0 1
        %3239 = vperm.xlu0 %3238, %v2601
        %v3240 = vpop.permute.xlu0 %3239
        %3242 = vset.pattern.permute.xlu0 1
        %3243 = vperm.xlu0 %3242, %v2602
        %v3244 = vpop.permute.xlu0 %3243
        %3246 = vset.pattern.permute.xlu0 1
        %3247 = vperm.xlu0 %3246, %v2603
        %v3248 = vpop.permute.xlu0 %3247
        %3250 = vset.pattern.permute.xlu0 1
        %3251 = vperm.xlu0 %3250, %v2604
        %v3252 = vpop.permute.xlu0 %3251
        %3254 = vset.pattern.permute.xlu0 1
        %3255 = vperm.xlu0 %3254, %v2605
        %v3256 = vpop.permute.xlu0 %3255
        %3258 = vset.pattern.permute.xlu0 1
        %3259 = vperm.xlu0 %3258, %v2606
        %v3260 = vpop.permute.xlu0 %3259
        %3262 = vset.pattern.permute.xlu0 1
        %3263 = vperm.xlu0 %3262, %v2607
        %v3264 = vpop.permute.xlu0 %3263
        %3266 = vset.pattern.permute.xlu0 1
        %3267 = vperm.xlu0 %3266, %v2608
        %v3268 = vpop.permute.xlu0 %3267
        %3270 = vset.pattern.permute.xlu0 1
        %3271 = vperm.xlu0 %3270, %v2609
        %v3272 = vpop.permute.xlu0 %3271
        %3274 = vset.pattern.permute.xlu0 1
        %3275 = vperm.xlu0 %3274, %v2610
        %v3276 = vpop.permute.xlu0 %3275
        %3278 = vset.pattern.permute.xlu0 1
        %3279 = vperm.xlu0 %3278, %v2611
        %v3280 = vpop.permute.xlu0 %3279
        %3282 = vset.pattern.permute.xlu0 1
        %3283 = vperm.xlu0 %3282, %v2612
        %v3284 = vpop.permute.xlu0 %3283
        %3286 = vset.pattern.permute.xlu0 1
        %3287 = vperm.xlu0 %3286, %v2613
        %v3288 = vpop.permute.xlu0 %3287
        %3290 = vset.pattern.permute.xlu0 1
        %3291 = vperm.xlu0 %3290, %v2614
        %v3292 = vpop.permute.xlu0 %3291
        %3294 = vset.pattern.permute.xlu0 1
        %3295 = vperm.xlu0 %3294, %v2615
        %v3296 = vpop.permute.xlu0 %3295
        %3298 = vset.pattern.permute.xlu0 1
        %3299 = vperm.xlu0 %3298, %v2616
        %v3300 = vpop.permute.xlu0 %3299
        %3302 = vset.pattern.permute.xlu0 1
        %3303 = vperm.xlu0 %3302, %v2617
        %v3304 = vpop.permute.xlu0 %3303
        %3306 = vset.pattern.permute.xlu0 1
        %3307 = vperm.xlu0 %3306, %v2618
        %v3308 = vpop.permute.xlu0 %3307
        %3310 = vset.pattern.permute.xlu0 1
        %3311 = vperm.xlu0 %3310, %v2619
        %v3312 = vpop.permute.xlu0 %3311
        %3314 = vset.pattern.permute.xlu0 1
        %3315 = vperm.xlu0 %3314, %v2620
        %v3316 = vpop.permute.xlu0 %3315
        %3318 = vset.pattern.permute.xlu0 1
        %3319 = vperm.xlu0 %3318, %v2621
        %v3320 = vpop.permute.xlu0 %3319
        %3322 = vset.pattern.permute.xlu0 1
        %3323 = vperm.xlu0 %3322, %v2622
        %v3324 = vpop.permute.xlu0 %3323
        %v3326 = vlaneseq
        %v3327 = vshrl.u32 %v3326, 7
        %v3328 = vsub.s32 0, %v3327
        %v3329 = vrot.slane %v3073, %v3328
        %v3330 = vmul.f32 %v3076, %v3329
        %v3331 = vmul.f32 %v3080, %v3329
        %v3332 = vmul.f32 %v3084, %v3329
        %v3333 = vmul.f32 %v3088, %v3329
        %v3334 = vmul.f32 %v3092, %v3329
        %v3335 = vmul.f32 %v3096, %v3329
        %v3336 = vmul.f32 %v3100, %v3329
        %v3337 = vmul.f32 %v3104, %v3329
        %v3338 = vmul.f32 %v3108, %v3329
        %v3339 = vmul.f32 %v3112, %v3329
        %v3340 = vmul.f32 %v3116, %v3329
        %v3341 = vmul.f32 %v3120, %v3329
        %v3342 = vmul.f32 %v3124, %v3329
        %v3343 = vmul.f32 %v3128, %v3329
        %v3344 = vmul.f32 %v3132, %v3329
        %v3345 = vmul.f32 %v3136, %v3329
        %v3346 = vmul.f32 %v3140, %v3329
        %v3347 = vmul.f32 %v3144, %v3329
        %v3348 = vmul.f32 %v3148, %v3329
        %v3349 = vmul.f32 %v3152, %v3329
        %v3350 = vmul.f32 %v3156, %v3329
        %v3351 = vmul.f32 %v3160, %v3329
        %v3352 = vmul.f32 %v3164, %v3329
        %v3353 = vmul.f32 %v3168, %v3329
        %v3354 = vmul.f32 %v3172, %v3329
        %v3355 = vmul.f32 %v3176, %v3329
        %v3356 = vmul.f32 %v3180, %v3329
        %v3357 = vmul.f32 %v3184, %v3329
        %v3358 = vmul.f32 %v3188, %v3329
        %v3359 = vmul.f32 %v3192, %v3329
        %v3360 = vmul.f32 %v3196, %v3329
        %v3361 = vmul.f32 %v3200, %v3329
        %v3362 = vmul.f32 %v3204, %v3329
        %v3363 = vmul.f32 %v3208, %v3329
        %v3364 = vmul.f32 %v3212, %v3329
        %v3365 = vmul.f32 %v3216, %v3329
        %v3366 = vmul.f32 %v3220, %v3329
        %v3367 = vmul.f32 %v3224, %v3329
        %v3368 = vmul.f32 %v3228, %v3329
        %v3369 = vmul.f32 %v3232, %v3329
        %v3370 = vmul.f32 %v3236, %v3329
        %v3371 = vmul.f32 %v3240, %v3329
        %v3372 = vmul.f32 %v3244, %v3329
        %v3373 = vmul.f32 %v3248, %v3329
        %v3374 = vmul.f32 %v3252, %v3329
        %v3375 = vmul.f32 %v3256, %v3329
        %v3376 = vmul.f32 %v3260, %v3329
        %v3377 = vmul.f32 %v3264, %v3329
        %v3378 = vmul.f32 %v3268, %v3329
        %v3379 = vmul.f32 %v3272, %v3329
        %v3380 = vmul.f32 %v3276, %v3329
        %v3381 = vmul.f32 %v3280, %v3329
        %v3382 = vmul.f32 %v3284, %v3329
        %v3383 = vmul.f32 %v3288, %v3329
        %v3384 = vmul.f32 %v3292, %v3329
        %v3385 = vmul.f32 %v3296, %v3329
        %v3386 = vmul.f32 %v3300, %v3329
        %v3387 = vmul.f32 %v3304, %v3329
        %v3388 = vmul.f32 %v3308, %v3329
        %v3389 = vmul.f32 %v3312, %v3329
        %v3390 = vmul.f32 %v3316, %v3329
        %v3391 = vmul.f32 %v3320, %v3329
        %v3392 = vmul.f32 %v3324, %v3329
        %v3393 = vadd.f32 %v3010, %v3330
        %v3394 = vadd.f32 %v3011, %v3331
        %v3395 = vadd.f32 %v3012, %v3332
        %v3396 = vadd.f32 %v3013, %v3333
        %v3397 = vadd.f32 %v3014, %v3334
        %v3398 = vadd.f32 %v3015, %v3335
        %v3399 = vadd.f32 %v3016, %v3336
        %v3400 = vadd.f32 %v3017, %v3337
        %v3401 = vadd.f32 %v3018, %v3338
        %v3402 = vadd.f32 %v3019, %v3339
        %v3403 = vadd.f32 %v3020, %v3340
        %v3404 = vadd.f32 %v3021, %v3341
        %v3405 = vadd.f32 %v3022, %v3342
        %v3406 = vadd.f32 %v3023, %v3343
        %v3407 = vadd.f32 %v3024, %v3344
        %v3408 = vadd.f32 %v3025, %v3345
        %v3409 = vadd.f32 %v3026, %v3346
        %v3410 = vadd.f32 %v3027, %v3347
        %v3411 = vadd.f32 %v3028, %v3348
        %v3412 = vadd.f32 %v3029, %v3349
        %v3413 = vadd.f32 %v3030, %v3350
        %v3414 = vadd.f32 %v3031, %v3351
        %v3415 = vadd.f32 %v3032, %v3352
        %v3416 = vadd.f32 %v3033, %v3353
        %v3417 = vadd.f32 %v3034, %v3354
        %v3418 = vadd.f32 %v3035, %v3355
        %v3419 = vadd.f32 %v3036, %v3356
        %v3420 = vadd.f32 %v3037, %v3357
        %v3421 = vadd.f32 %v3038, %v3358
        %v3422 = vadd.f32 %v3039, %v3359
        %v3423 = vadd.f32 %v3040, %v3360
        %v3424 = vadd.f32 %v3041, %v3361
        %v3425 = vadd.f32 %v3042, %v3362
        %v3426 = vadd.f32 %v3043, %v3363
        %v3427 = vadd.f32 %v3044, %v3364
        %v3428 = vadd.f32 %v3045, %v3365
        %v3429 = vadd.f32 %v3046, %v3366
        %v3430 = vadd.f32 %v3047, %v3367
        %v3431 = vadd.f32 %v3048, %v3368
        %v3432 = vadd.f32 %v3049, %v3369
        %v3433 = vadd.f32 %v3050, %v3370
        %v3434 = vadd.f32 %v3051, %v3371
        %v3435 = vadd.f32 %v3052, %v3372
        %v3436 = vadd.f32 %v3053, %v3373
        %v3437 = vadd.f32 %v3054, %v3374
        %v3438 = vadd.f32 %v3055, %v3375
        %v3439 = vadd.f32 %v3056, %v3376
        %v3440 = vadd.f32 %v3057, %v3377
        %v3441 = vadd.f32 %v3058, %v3378
        %v3442 = vadd.f32 %v3059, %v3379
        %v3443 = vadd.f32 %v3060, %v3380
        %v3444 = vadd.f32 %v3061, %v3381
        %v3445 = vadd.f32 %v3062, %v3382
        %v3446 = vadd.f32 %v3063, %v3383
        %v3447 = vadd.f32 %v3064, %v3384
        %v3448 = vadd.f32 %v3065, %v3385
        %v3449 = vadd.f32 %v3066, %v3386
        %v3450 = vadd.f32 %v3067, %v3387
        %v3451 = vadd.f32 %v3068, %v3388
        %v3452 = vadd.f32 %v3069, %v3389
        %v3453 = vadd.f32 %v3070, %v3390
        %v3454 = vadd.f32 %v3071, %v3391
        %v3455 = vadd.f32 %v3072, %v3392
        %v3456 = vmax.f32 %v3393, 0.0
        %v3457 = vmax.f32 %v3394, 0.0
        %v3458 = vmax.f32 %v3395, 0.0
        %v3459 = vmax.f32 %v3396, 0.0
        %v3460 = vmax.f32 %v3397, 0.0
        %v3461 = vmax.f32 %v3398, 0.0
        %v3462 = vmax.f32 %v3399, 0.0
        %v3463 = vmax.f32 %v3400, 0.0
        %v3464 = vmax.f32 %v3401, 0.0
        %v3465 = vmax.f32 %v3402, 0.0
        %v3466 = vmax.f32 %v3403, 0.0
        %v3467 = vmax.f32 %v3404, 0.0
        %v3468 = vmax.f32 %v3405, 0.0
        %v3469 = vmax.f32 %v3406, 0.0
        %v3470 = vmax.f32 %v3407, 0.0
        %v3471 = vmax.f32 %v3408, 0.0
        %v3472 = vmax.f32 %v3409, 0.0
        %v3473 = vmax.f32 %v3410, 0.0
        %v3474 = vmax.f32 %v3411, 0.0
        %v3475 = vmax.f32 %v3412, 0.0
        %v3476 = vmax.f32 %v3413, 0.0
        %v3477 = vmax.f32 %v3414, 0.0
        %v3478 = vmax.f32 %v3415, 0.0
        %v3479 = vmax.f32 %v3416, 0.0
        %v3480 = vmax.f32 %v3417, 0.0
        %v3481 = vmax.f32 %v3418, 0.0
        %v3482 = vmax.f32 %v3419, 0.0
        %v3483 = vmax.f32 %v3420, 0.0
        %v3484 = vmax.f32 %v3421, 0.0
        %v3485 = vmax.f32 %v3422, 0.0
        %v3486 = vmax.f32 %v3423, 0.0
        %v3487 = vmax.f32 %v3424, 0.0
        %v3488 = vmax.f32 %v3425, 0.0
        %v3489 = vmax.f32 %v3426, 0.0
        %v3490 = vmax.f32 %v3427, 0.0
        %v3491 = vmax.f32 %v3428, 0.0
        %v3492 = vmax.f32 %v3429, 0.0
        %v3493 = vmax.f32 %v3430, 0.0
        %v3494 = vmax.f32 %v3431, 0.0
        %v3495 = vmax.f32 %v3432, 0.0
        %v3496 = vmax.f32 %v3433, 0.0
        %v3497 = vmax.f32 %v3434, 0.0
        %v3498 = vmax.f32 %v3435, 0.0
        %v3499 = vmax.f32 %v3436, 0.0
        %v3500 = vmax.f32 %v3437, 0.0
        %v3501 = vmax.f32 %v3438, 0.0
        %v3502 = vmax.f32 %v3439, 0.0
        %v3503 = vmax.f32 %v3440, 0.0
        %v3504 = vmax.f32 %v3441, 0.0
        %v3505 = vmax.f32 %v3442, 0.0
        %v3506 = vmax.f32 %v3443, 0.0
        %v3507 = vmax.f32 %v3444, 0.0
        %v3508 = vmax.f32 %v3445, 0.0
        %v3509 = vmax.f32 %v3446, 0.0
        %v3510 = vmax.f32 %v3447, 0.0
        %v3511 = vmax.f32 %v3448, 0.0
        %v3512 = vmax.f32 %v3449, 0.0
        %v3513 = vmax.f32 %v3450, 0.0
        %v3514 = vmax.f32 %v3451, 0.0
        %v3515 = vmax.f32 %v3452, 0.0
        %v3516 = vmax.f32 %v3453, 0.0
        %v3517 = vmax.f32 %v3454, 0.0
        %v3518 = vmax.f32 %v3455, 0.0
        %v3519 = vld [vmem:[%s5] sm:$0xff]
        %v3520 = vld [vmem:[%s5 + $0x8] sm:$0xff]
        %v3521 = vld [vmem:[%s5 + $0x10] sm:$0xff]
        %v3522 = vld [vmem:[%s5 + $0x18] sm:$0xff]
        %v3523 = vlaneseq
        %v3524 = vshrl.u32 %v3523, 7
        %v3525 = vsub.s32 0, %v3524
        %v3526 = vrot.slane %v586, %v3525
        %v3528 = vsel %vm1234, %v3456, 0
        %v3531 = vsel %vm1234, %v3457, 0
        %v3534 = vsel %vm1234, %v3458, 0
        %v3537 = vsel %vm1234, %v3459, 0
        %v3540 = vsel %vm1234, %v3460, 0
        %v3543 = vsel %vm1234, %v3461, 0
        %v3546 = vsel %vm1234, %v3462, 0
        %v3549 = vsel %vm1234, %v3463, 0
        %v3552 = vsel %vm1234, %v3464, 0
        %v3555 = vsel %vm1234, %v3465, 0
        %v3558 = vsel %vm1234, %v3466, 0
        %v3561 = vsel %vm1234, %v3467, 0
        %v3564 = vsel %vm1234, %v3468, 0
        %v3567 = vsel %vm1234, %v3469, 0
        %v3570 = vsel %vm1234, %v3470, 0
        %v3573 = vsel %vm1234, %v3471, 0
        %v3576 = vsel %vm1234, %v3472, 0
        %v3579 = vsel %vm1234, %v3473, 0
        %v3582 = vsel %vm1234, %v3474, 0
        %v3585 = vsel %vm1234, %v3475, 0
        %v3588 = vsel %vm1234, %v3476, 0
        %v3591 = vsel %vm1234, %v3477, 0
        %v3594 = vsel %vm1234, %v3478, 0
        %v3597 = vsel %vm1234, %v3479, 0
        %v3600 = vsel %vm1234, %v3480, 0
        %v3603 = vsel %vm1234, %v3481, 0
        %v3606 = vsel %vm1234, %v3482, 0
        %v3609 = vsel %vm1234, %v3483, 0
        %v3612 = vsel %vm1234, %v3484, 0
        %v3615 = vsel %vm1234, %v3485, 0
        %v3618 = vsel %vm1234, %v3486, 0
        %v3621 = vsel %vm1234, %v3487, 0
        %v3624 = vsel %vm1234, %v3488, 0
        %v3627 = vsel %vm1234, %v3489, 0
        %v3630 = vsel %vm1234, %v3490, 0
        %v3633 = vsel %vm1234, %v3491, 0
        %v3636 = vsel %vm1234, %v3492, 0
        %v3639 = vsel %vm1234, %v3493, 0
        %v3642 = vsel %vm1234, %v3494, 0
        %v3645 = vsel %vm1234, %v3495, 0
        %v3648 = vsel %vm1234, %v3496, 0
        %v3651 = vsel %vm1234, %v3497, 0
        %v3654 = vsel %vm1234, %v3498, 0
        %v3657 = vsel %vm1234, %v3499, 0
        %v3660 = vsel %vm1234, %v3500, 0
        %v3663 = vsel %vm1234, %v3501, 0
        %v3666 = vsel %vm1234, %v3502, 0
        %v3669 = vsel %vm1234, %v3503, 0
        %v3672 = vsel %vm1234, %v3504, 0
        %v3675 = vsel %vm1234, %v3505, 0
        %v3678 = vsel %vm1234, %v3506, 0
        %v3681 = vsel %vm1234, %v3507, 0
        %v3684 = vsel %vm1234, %v3508, 0
        %v3687 = vsel %vm1234, %v3509, 0
        %v3690 = vsel %vm1234, %v3510, 0
        %v3693 = vsel %vm1234, %v3511, 0
        %v3696 = vsel %vm1234, %v3512, 0
        %v3699 = vsel %vm1234, %v3513, 0
        %v3702 = vsel %vm1234, %v3514, 0
        %v3705 = vsel %vm1234, %v3515, 0
        %v3708 = vsel %vm1234, %v3516, 0
        %v3711 = vsel %vm1234, %v3517, 0
        %v3714 = vsel %vm1234, %v3518, 0
        %3716 = vmatprep.subr.mxu0 0.0
        %3717 = vmatpush1.msra.mxu0 %v3519
        %3718 = vmatprep.subr.mxu0 0.0
        %3719 = vmatpush1.msra.mxu0 %v3520
        %3720 = vmatprep.subr.mxu0 0.0
        %3721 = vmatpush1.msra.mxu0 %v3521
        %3722 = vmatprep.subr.mxu0 0.0
        %3723 = vmatpush1.msra.mxu0 %v3522
        %3724 = vmatprep.subr.mxu0 0.0
        %3725 = vmatpush1.msra.mxu0 0.0
        %3726 = vmatprep.subr.mxu0 0.0
        %3727 = vmatpush1.msra.mxu0 0.0
        %3728 = vmatprep.subr.mxu0 0.0
        %3729 = vmatpush1.msra.mxu0 0.0
        %3730 = vmatprep.subr.mxu0 0.0
        %3731 = vmatpush1.msra.mxu0 0.0
        %3732 = vmatprep.subr.mxu0 0.0
        %3733 = vmatpush1.msra.mxu0 0.0
        %3734 = vmatprep.subr.mxu0 0.0
        %3735 = vmatpush1.msra.mxu0 0.0
        %3736 = vmatprep.subr.mxu0 0.0
        %3737 = vmatpush1.msra.mxu0 0.0
        %3738 = vmatprep.subr.mxu0 0.0
        %3739 = vmatpush1.msra.mxu0 0.0
        %3740 = vmatprep.subr.mxu0 0.0
        %3741 = vmatpush1.msra.mxu0 0.0
        %3742 = vmatprep.subr.mxu0 0.0
        %3743 = vmatpush1.msra.mxu0 0.0
        %3744 = vmatprep.subr.mxu0 0.0
        %3745 = vmatpush1.msra.mxu0 0.0
        %3746 = vmatprep.subr.mxu0 0.0
        %3747 = vmatpush1.msra.mxu0 0.0
        %3748 = vmatprep.subr.mxu0 0.0
        %3749 = vmatpush1.msra.mxu0 0.0
        %3750 = vmatprep.subr.mxu0 0.0
        %3751 = vmatpush1.msra.mxu0 0.0
        %3752 = vmatprep.subr.mxu0 0.0
        %3753 = vmatpush1.msra.mxu0 0.0
        %3754 = vmatprep.subr.mxu0 0.0
        %3755 = vmatpush1.msra.mxu0 0.0
        %3756 = vmatprep.subr.mxu0 0.0
        %3757 = vmatpush1.msra.mxu0 0.0
        %3758 = vmatprep.subr.mxu0 0.0
        %3759 = vmatpush1.msra.mxu0 0.0
        %3760 = vmatprep.subr.mxu0 0.0
        %3761 = vmatpush1.msra.mxu0 0.0
        %3762 = vmatprep.subr.mxu0 0.0
        %3763 = vmatpush1.msra.mxu0 0.0
        %3764 = vmatprep.subr.mxu0 0.0
        %3765 = vmatpush1.msra.mxu0 0.0
        %3766 = vmatprep.subr.mxu0 0.0
        %3767 = vmatpush1.msra.mxu0 0.0
        %3768 = vmatprep.subr.mxu0 0.0
        %3769 = vmatpush1.msra.mxu0 0.0
        %3770 = vmatprep.subr.mxu0 0.0
        %3771 = vmatpush1.msra.mxu0 0.0
        %3772 = vmatprep.subr.mxu0 0.0
        %3773 = vmatpush1.msra.mxu0 0.0
        %3774 = vmatprep.subr.mxu0 0.0
        %3775 = vmatpush1.msra.mxu0 0.0
        %3776 = vmatprep.subr.mxu0 0.0
        %3777 = vmatpush1.msra.mxu0 0.0
        %3778 = vmatprep.subr.mxu0 0.0
        %3779 = vmatpush1.msra.mxu0 0.0
        %3780 = vmatprep.mubr.f32.mxu0 0.0
        %3781 = vmatmul.mubr.f32.gmra.mrb[0].mxu0 %v3528
        %v3782 = vpop.f32.mrb[0].mxu0
        %v3783 = vadd.f32 %v3526, %v3782
        %v3784 = vpop.f32.mrb[0].mxu0
        %3785 = vmatprep.mubr.f32.mxu0 0.0
        %3786 = vmatmul.mubr.f32.gmra.mrb[0].mxu0 %v3531
        %v3787 = vpop.f32.mrb[0].mxu0
        %v3788 = vadd.f32 %v3526, %v3787
        %v3789 = vpop.f32.mrb[0].mxu0
        %3790 = vmatprep.mubr.f32.mxu0 0.0
        %3791 = vmatmul.mubr.f32.gmra.mrb[0].mxu0 %v3534
        %v3792 = vpop.f32.mrb[0].mxu0
        %v3793 = vadd.f32 %v3526, %v3792
        %v3794 = vpop.f32.mrb[0].mxu0
        %3795 = vmatprep.mubr.f32.mxu0 0.0
        %3796 = vmatmul.mubr.f32.gmra.mrb[0].mxu0 %v3537
        %v3797 = vpop.f32.mrb[0].mxu0
        %v3798 = vadd.f32 %v3526, %v3797
        %v3799 = vpop.f32.mrb[0].mxu0
        %3800 = vmatprep.mubr.f32.mxu0 0.0
        %3801 = vmatmul.mubr.f32.gmra.mrb[0].mxu0 %v3540
        %v3802 = vpop.f32.mrb[0].mxu0
        %v3803 = vadd.f32 %v3526, %v3802
        %v3804 = vpop.f32.mrb[0].mxu0
        %3805 = vmatprep.mubr.f32.mxu0 0.0
        %3806 = vmatmul.mubr.f32.gmra.mrb[0].mxu0 %v3543
        %v3807 = vpop.f32.mrb[0].mxu0
        %v3808 = vadd.f32 %v3526, %v3807
        %v3809 = vpop.f32.mrb[0].mxu0
        %3810 = vmatprep.mubr.f32.mxu0 0.0
        %3811 = vmatmul.mubr.f32.gmra.mrb[0].mxu0 %v3546
        %v3812 = vpop.f32.mrb[0].mxu0
        %v3813 = vadd.f32 %v3526, %v3812
        %v3814 = vpop.f32.mrb[0].mxu0
        %3815 = vmatprep.mubr.f32.mxu0 0.0
        %3816 = vmatmul.mubr.f32.gmra.mrb[0].mxu0 %v3549
        %v3817 = vpop.f32.mrb[0].mxu0
        %v3818 = vadd.f32 %v3526, %v3817
        %v3819 = vpop.f32.mrb[0].mxu0
        %3820 = vmatprep.mubr.f32.mxu0 0.0
        %3821 = vmatmul.mubr.f32.gmra.mrb[0].mxu0 %v3552
        %v3822 = vpop.f32.mrb[0].mxu0
        %v3823 = vadd.f32 %v3526, %v3822
        %v3824 = vpop.f32.mrb[0].mxu0
        %3825 = vmatprep.mubr.f32.mxu0 0.0
        %3826 = vmatmul.mubr.f32.gmra.mrb[0].mxu0 %v3555
        %v3827 = vpop.f32.mrb[0].mxu0
        %v3828 = vadd.f32 %v3526, %v3827
        %v3829 = vpop.f32.mrb[0].mxu0
        %3830 = vmatprep.mubr.f32.mxu0 0.0
        %3831 = vmatmul.mubr.f32.gmra.mrb[0].mxu0 %v3558
        %v3832 = vpop.f32.mrb[0].mxu0
        %v3833 = vadd.f32 %v3526, %v3832
        %v3834 = vpop.f32.mrb[0].mxu0
        %3835 = vmatprep.mubr.f32.mxu0 0.0
        %3836 = vmatmul.mubr.f32.gmra.mrb[0].mxu0 %v3561
        %v3837 = vpop.f32.mrb[0].mxu0
        %v3838 = vadd.f32 %v3526, %v3837
        %v3839 = vpop.f32.mrb[0].mxu0
        %3840 = vmatprep.mubr.f32.mxu0 0.0
        %3841 = vmatmul.mubr.f32.gmra.mrb[0].mxu0 %v3564
        %v3842 = vpop.f32.mrb[0].mxu0
        %v3843 = vadd.f32 %v3526, %v3842
        %v3844 = vpop.f32.mrb[0].mxu0
        %3845 = vmatprep.mubr.f32.mxu0 0.0
        %3846 = vmatmul.mubr.f32.gmra.mrb[0].mxu0 %v3567
        %v3847 = vpop.f32.mrb[0].mxu0
        %v3848 = vadd.f32 %v3526, %v3847
        %v3849 = vpop.f32.mrb[0].mxu0
        %3850 = vmatprep.mubr.f32.mxu0 0.0
        %3851 = vmatmul.mubr.f32.gmra.mrb[0].mxu0 %v3570
        %v3852 = vpop.f32.mrb[0].mxu0
        %v3853 = vadd.f32 %v3526, %v3852
        %v3854 = vpop.f32.mrb[0].mxu0
        %3855 = vmatprep.mubr.f32.mxu0 0.0
        %3856 = vmatmul.mubr.f32.gmra.mrb[0].mxu0 %v3573
        %v3857 = vpop.f32.mrb[0].mxu0
        %v3858 = vadd.f32 %v3526, %v3857
        %v3859 = vpop.f32.mrb[0].mxu0
        %3860 = vmatprep.mubr.f32.mxu0 0.0
        %3861 = vmatmul.mubr.f32.gmra.mrb[0].mxu0 %v3576
        %v3862 = vpop.f32.mrb[0].mxu0
        %v3863 = vadd.f32 %v3526, %v3862
        %v3864 = vpop.f32.mrb[0].mxu0
        %3865 = vmatprep.mubr.f32.mxu0 0.0
        %3866 = vmatmul.mubr.f32.gmra.mrb[0].mxu0 %v3579
        %v3867 = vpop.f32.mrb[0].mxu0
        %v3868 = vadd.f32 %v3526, %v3867
        %v3869 = vpop.f32.mrb[0].mxu0
        %3870 = vmatprep.mubr.f32.mxu0 0.0
        %3871 = vmatmul.mubr.f32.gmra.mrb[0].mxu0 %v3582
        %v3872 = vpop.f32.mrb[0].mxu0
        %v3873 = vadd.f32 %v3526, %v3872
        %v3874 = vpop.f32.mrb[0].mxu0
        %3875 = vmatprep.mubr.f32.mxu0 0.0
        %3876 = vmatmul.mubr.f32.gmra.mrb[0].mxu0 %v3585
        %v3877 = vpop.f32.mrb[0].mxu0
        %v3878 = vadd.f32 %v3526, %v3877
        %v3879 = vpop.f32.mrb[0].mxu0
        %3880 = vmatprep.mubr.f32.mxu0 0.0
        %3881 = vmatmul.mubr.f32.gmra.mrb[0].mxu0 %v3588
        %v3882 = vpop.f32.mrb[0].mxu0
        %v3883 = vadd.f32 %v3526, %v3882
        %v3884 = vpop.f32.mrb[0].mxu0
        %3885 = vmatprep.mubr.f32.mxu0 0.0
        %3886 = vmatmul.mubr.f32.gmra.mrb[0].mxu0 %v3591
        %v3887 = vpop.f32.mrb[0].mxu0
        %v3888 = vadd.f32 %v3526, %v3887
        %v3889 = vpop.f32.mrb[0].mxu0
        %3890 = vmatprep.mubr.f32.mxu0 0.0
        %3891 = vmatmul.mubr.f32.gmra.mrb[0].mxu0 %v3594
        %v3892 = vpop.f32.mrb[0].mxu0
        %v3893 = vadd.f32 %v3526, %v3892
        %v3894 = vpop.f32.mrb[0].mxu0
        %3895 = vmatprep.mubr.f32.mxu0 0.0
        %3896 = vmatmul.mubr.f32.gmra.mrb[0].mxu0 %v3597
        %v3897 = vpop.f32.mrb[0].mxu0
        %v3898 = vadd.f32 %v3526, %v3897
        %v3899 = vpop.f32.mrb[0].mxu0
        %3900 = vmatprep.mubr.f32.mxu0 0.0
        %3901 = vmatmul.mubr.f32.gmra.mrb[0].mxu0 %v3600
        %v3902 = vpop.f32.mrb[0].mxu0
        %v3903 = vadd.f32 %v3526, %v3902
        %v3904 = vpop.f32.mrb[0].mxu0
        %3905 = vmatprep.mubr.f32.mxu0 0.0
        %3906 = vmatmul.mubr.f32.gmra.mrb[0].mxu0 %v3603
        %v3907 = vpop.f32.mrb[0].mxu0
        %v3908 = vadd.f32 %v3526, %v3907
        %v3909 = vpop.f32.mrb[0].mxu0
        %3910 = vmatprep.mubr.f32.mxu0 0.0
        %3911 = vmatmul.mubr.f32.gmra.mrb[0].mxu0 %v3606
        %v3912 = vpop.f32.mrb[0].mxu0
        %v3913 = vadd.f32 %v3526, %v3912
        %v3914 = vpop.f32.mrb[0].mxu0
        %3915 = vmatprep.mubr.f32.mxu0 0.0
        %3916 = vmatmul.mubr.f32.gmra.mrb[0].mxu0 %v3609
        %v3917 = vpop.f32.mrb[0].mxu0
        %v3918 = vadd.f32 %v3526, %v3917
        %v3919 = vpop.f32.mrb[0].mxu0
        %3920 = vmatprep.mubr.f32.mxu0 0.0
        %3921 = vmatmul.mubr.f32.gmra.mrb[0].mxu0 %v3612
        %v3922 = vpop.f32.mrb[0].mxu0
        %v3923 = vadd.f32 %v3526, %v3922
        %v3924 = vpop.f32.mrb[0].mxu0
        %3925 = vmatprep.mubr.f32.mxu0 0.0
        %3926 = vmatmul.mubr.f32.gmra.mrb[0].mxu0 %v3615
        %v3927 = vpop.f32.mrb[0].mxu0
        %v3928 = vadd.f32 %v3526, %v3927
        %v3929 = vpop.f32.mrb[0].mxu0
        %3930 = vmatprep.mubr.f32.mxu0 0.0
        %3931 = vmatmul.mubr.f32.gmra.mrb[0].mxu0 %v3618
        %v3932 = vpop.f32.mrb[0].mxu0
        %v3933 = vadd.f32 %v3526, %v3932
        %v3934 = vpop.f32.mrb[0].mxu0
        %3935 = vmatprep.mubr.f32.mxu0 0.0
        %3936 = vmatmul.mubr.f32.gmra.mrb[0].mxu0 %v3621
        %v3937 = vpop.f32.mrb[0].mxu0
        %v3938 = vadd.f32 %v3526, %v3937
        %v3939 = vpop.f32.mrb[0].mxu0
        %3940 = vmatprep.mubr.f32.mxu0 0.0
        %3941 = vmatmul.mubr.f32.gmra.mrb[0].mxu0 %v3624
        %v3942 = vpop.f32.mrb[0].mxu0
        %v3943 = vadd.f32 %v3526, %v3942
        %v3944 = vpop.f32.mrb[0].mxu0
        %3945 = vmatprep.mubr.f32.mxu0 0.0
        %3946 = vmatmul.mubr.f32.gmra.mrb[0].mxu0 %v3627
        %v3947 = vpop.f32.mrb[0].mxu0
        %v3948 = vadd.f32 %v3526, %v3947
        %v3949 = vpop.f32.mrb[0].mxu0
        %3950 = vmatprep.mubr.f32.mxu0 0.0
        %3951 = vmatmul.mubr.f32.gmra.mrb[0].mxu0 %v3630
        %v3952 = vpop.f32.mrb[0].mxu0
        %v3953 = vadd.f32 %v3526, %v3952
        %v3954 = vpop.f32.mrb[0].mxu0
        %3955 = vmatprep.mubr.f32.mxu0 0.0
        %3956 = vmatmul.mubr.f32.gmra.mrb[0].mxu0 %v3633
        %v3957 = vpop.f32.mrb[0].mxu0
        %v3958 = vadd.f32 %v3526, %v3957
        %v3959 = vpop.f32.mrb[0].mxu0
        %3960 = vmatprep.mubr.f32.mxu0 0.0
        %3961 = vmatmul.mubr.f32.gmra.mrb[0].mxu0 %v3636
        %v3962 = vpop.f32.mrb[0].mxu0
        %v3963 = vadd.f32 %v3526, %v3962
        %v3964 = vpop.f32.mrb[0].mxu0
        %3965 = vmatprep.mubr.f32.mxu0 0.0
        %3966 = vmatmul.mubr.f32.gmra.mrb[0].mxu0 %v3639
        %v3967 = vpop.f32.mrb[0].mxu0
        %v3968 = vadd.f32 %v3526, %v3967
        %v3969 = vpop.f32.mrb[0].mxu0
        %3970 = vmatprep.mubr.f32.mxu0 0.0
        %3971 = vmatmul.mubr.f32.gmra.mrb[0].mxu0 %v3642
        %v3972 = vpop.f32.mrb[0].mxu0
        %v3973 = vadd.f32 %v3526, %v3972
        %v3974 = vpop.f32.mrb[0].mxu0
        %3975 = vmatprep.mubr.f32.mxu0 0.0
        %3976 = vmatmul.mubr.f32.gmra.mrb[0].mxu0 %v3645
        %v3977 = vpop.f32.mrb[0].mxu0
        %v3978 = vadd.f32 %v3526, %v3977
        %v3979 = vpop.f32.mrb[0].mxu0
        %3980 = vmatprep.mubr.f32.mxu0 0.0
        %3981 = vmatmul.mubr.f32.gmra.mrb[0].mxu0 %v3648
        %v3982 = vpop.f32.mrb[0].mxu0
        %v3983 = vadd.f32 %v3526, %v3982
        %v3984 = vpop.f32.mrb[0].mxu0
        %3985 = vmatprep.mubr.f32.mxu0 0.0
        %3986 = vmatmul.mubr.f32.gmra.mrb[0].mxu0 %v3651
        %v3987 = vpop.f32.mrb[0].mxu0
        %v3988 = vadd.f32 %v3526, %v3987
        %v3989 = vpop.f32.mrb[0].mxu0
        %3990 = vmatprep.mubr.f32.mxu0 0.0
        %3991 = vmatmul.mubr.f32.gmra.mrb[0].mxu0 %v3654
        %v3992 = vpop.f32.mrb[0].mxu0
        %v3993 = vadd.f32 %v3526, %v3992
        %v3994 = vpop.f32.mrb[0].mxu0
        %3995 = vmatprep.mubr.f32.mxu0 0.0
        %3996 = vmatmul.mubr.f32.gmra.mrb[0].mxu0 %v3657
        %v3997 = vpop.f32.mrb[0].mxu0
        %v3998 = vadd.f32 %v3526, %v3997
        %v3999 = vpop.f32.mrb[0].mxu0
        %4000 = vmatprep.mubr.f32.mxu0 0.0
        %4001 = vmatmul.mubr.f32.gmra.mrb[0].mxu0 %v3660
        %v4002 = vpop.f32.mrb[0].mxu0
        %v4003 = vadd.f32 %v3526, %v4002
        %v4004 = vpop.f32.mrb[0].mxu0
        %4005 = vmatprep.mubr.f32.mxu0 0.0
        %4006 = vmatmul.mubr.f32.gmra.mrb[0].mxu0 %v3663
        %v4007 = vpop.f32.mrb[0].mxu0
        %v4008 = vadd.f32 %v3526, %v4007
        %v4009 = vpop.f32.mrb[0].mxu0
        %4010 = vmatprep.mubr.f32.mxu0 0.0
        %4011 = vmatmul.mubr.f32.gmra.mrb[0].mxu0 %v3666
        %v4012 = vpop.f32.mrb[0].mxu0
        %v4013 = vadd.f32 %v3526, %v4012
        %v4014 = vpop.f32.mrb[0].mxu0
        %4015 = vmatprep.mubr.f32.mxu0 0.0
        %4016 = vmatmul.mubr.f32.gmra.mrb[0].mxu0 %v3669
        %v4017 = vpop.f32.mrb[0].mxu0
        %v4018 = vadd.f32 %v3526, %v4017
        %v4019 = vpop.f32.mrb[0].mxu0
        %4020 = vmatprep.mubr.f32.mxu0 0.0
        %4021 = vmatmul.mubr.f32.gmra.mrb[0].mxu0 %v3672
        %v4022 = vpop.f32.mrb[0].mxu0
        %v4023 = vadd.f32 %v3526, %v4022
        %v4024 = vpop.f32.mrb[0].mxu0
        %4025 = vmatprep.mubr.f32.mxu0 0.0
        %4026 = vmatmul.mubr.f32.gmra.mrb[0].mxu0 %v3675
        %v4027 = vpop.f32.mrb[0].mxu0
        %v4028 = vadd.f32 %v3526, %v4027
        %v4029 = vpop.f32.mrb[0].mxu0
        %4030 = vmatprep.mubr.f32.mxu0 0.0
        %4031 = vmatmul.mubr.f32.gmra.mrb[0].mxu0 %v3678
        %v4032 = vpop.f32.mrb[0].mxu0
        %v4033 = vadd.f32 %v3526, %v4032
        %v4034 = vpop.f32.mrb[0].mxu0
        %4035 = vmatprep.mubr.f32.mxu0 0.0
        %4036 = vmatmul.mubr.f32.gmra.mrb[0].mxu0 %v3681
        %v4037 = vpop.f32.mrb[0].mxu0
        %v4038 = vadd.f32 %v3526, %v4037
        %v4039 = vpop.f32.mrb[0].mxu0
        %4040 = vmatprep.mubr.f32.mxu0 0.0
        %4041 = vmatmul.mubr.f32.gmra.mrb[0].mxu0 %v3684
        %v4042 = vpop.f32.mrb[0].mxu0
        %v4043 = vadd.f32 %v3526, %v4042
        %v4044 = vpop.f32.mrb[0].mxu0
        %4045 = vmatprep.mubr.f32.mxu0 0.0
        %4046 = vmatmul.mubr.f32.gmra.mrb[0].mxu0 %v3687
        %v4047 = vpop.f32.mrb[0].mxu0
        %v4048 = vadd.f32 %v3526, %v4047
        %v4049 = vpop.f32.mrb[0].mxu0
        %4050 = vmatprep.mubr.f32.mxu0 0.0
        %4051 = vmatmul.mubr.f32.gmra.mrb[0].mxu0 %v3690
        %v4052 = vpop.f32.mrb[0].mxu0
        %v4053 = vadd.f32 %v3526, %v4052
        %v4054 = vpop.f32.mrb[0].mxu0
        %4055 = vmatprep.mubr.f32.mxu0 0.0
        %4056 = vmatmul.mubr.f32.gmra.mrb[0].mxu0 %v3693
        %v4057 = vpop.f32.mrb[0].mxu0
        %v4058 = vadd.f32 %v3526, %v4057
        %v4059 = vpop.f32.mrb[0].mxu0
        %4060 = vmatprep.mubr.f32.mxu0 0.0
        %4061 = vmatmul.mubr.f32.gmra.mrb[0].mxu0 %v3696
        %v4062 = vpop.f32.mrb[0].mxu0
        %v4063 = vadd.f32 %v3526, %v4062
        %v4064 = vpop.f32.mrb[0].mxu0
        %4065 = vmatprep.mubr.f32.mxu0 0.0
        %4066 = vmatmul.mubr.f32.gmra.mrb[0].mxu0 %v3699
        %v4067 = vpop.f32.mrb[0].mxu0
        %v4068 = vadd.f32 %v3526, %v4067
        %v4069 = vpop.f32.mrb[0].mxu0
        %4070 = vmatprep.mubr.f32.mxu0 0.0
        %4071 = vmatmul.mubr.f32.gmra.mrb[0].mxu0 %v3702
        %v4072 = vpop.f32.mrb[0].mxu0
        %v4073 = vadd.f32 %v3526, %v4072
        %v4074 = vpop.f32.mrb[0].mxu0
        %4075 = vmatprep.mubr.f32.mxu0 0.0
        %4076 = vmatmul.mubr.f32.gmra.mrb[0].mxu0 %v3705
        %v4077 = vpop.f32.mrb[0].mxu0
        %v4078 = vadd.f32 %v3526, %v4077
        %v4079 = vpop.f32.mrb[0].mxu0
        %4080 = vmatprep.mubr.f32.mxu0 0.0
        %4081 = vmatmul.mubr.f32.gmra.mrb[0].mxu0 %v3708
        %v4082 = vpop.f32.mrb[0].mxu0
        %v4083 = vadd.f32 %v3526, %v4082
        %v4084 = vpop.f32.mrb[0].mxu0
        %4085 = vmatprep.mubr.f32.mxu0 0.0
        %4086 = vmatmul.mubr.f32.gmra.mrb[0].mxu0 %v3711
        %v4087 = vpop.f32.mrb[0].mxu0
        %v4088 = vadd.f32 %v3526, %v4087
        %v4089 = vpop.f32.mrb[0].mxu0
        %4090 = vmatprep.mubr.f32.mxu0 0.0
        %4091 = vmatmul.mubr.f32.gmra.mrb[0].mxu0 %v3714
        %v4092 = vpop.f32.mrb[0].mxu0
        %v4093 = vadd.f32 %v3526, %v4092
        %v4094 = vpop.f32.mrb[0].mxu0
        %4095 = vdwg.mxu0
        %4096 = vst.msk [vmem:[%s390] sm:$0xff] %vm593, %v3783
        %4097 = vst.msk [vmem:[%s390 + $0x8] sm:$0xff] %vm593, %v3788
        %4098 = vst.msk [vmem:[%s390 + $0x10] sm:$0xff] %vm593, %v3793
        %4099 = vst.msk [vmem:[%s390 + $0x18] sm:$0xff] %vm593, %v3798
        %4100 = vst.msk [vmem:[%s390 + $0x20] sm:$0xff] %vm593, %v3803
        %4101 = vst.msk [vmem:[%s390 + $0x28] sm:$0xff] %vm593, %v3808
        %4102 = vst.msk [vmem:[%s390 + $0x30] sm:$0xff] %vm593, %v3813
        %4103 = vst.msk [vmem:[%s390 + $0x38] sm:$0xff] %vm593, %v3818
        %4104 = vst.msk [vmem:[%s390 + $0x40] sm:$0xff] %vm593, %v3823
        %4105 = vst.msk [vmem:[%s390 + $0x48] sm:$0xff] %vm593, %v3828
        %4106 = vst.msk [vmem:[%s390 + $0x50] sm:$0xff] %vm593, %v3833
        %4107 = vst.msk [vmem:[%s390 + $0x58] sm:$0xff] %vm593, %v3838
        %4108 = vst.msk [vmem:[%s390 + $0x60] sm:$0xff] %vm593, %v3843
        %4109 = vst.msk [vmem:[%s390 + $0x68] sm:$0xff] %vm593, %v3848
        %4110 = vst.msk [vmem:[%s390 + $0x70] sm:$0xff] %vm593, %v3853
        %4111 = vst.msk [vmem:[%s390 + $0x78] sm:$0xff] %vm593, %v3858
        %4112 = vst.msk [vmem:[%s390 + $0x80] sm:$0xff] %vm593, %v3863
        %4113 = vst.msk [vmem:[%s390 + $0x88] sm:$0xff] %vm593, %v3868
        %4114 = vst.msk [vmem:[%s390 + $0x90] sm:$0xff] %vm593, %v3873
        %4115 = vst.msk [vmem:[%s390 + $0x98] sm:$0xff] %vm593, %v3878
        %4116 = vst.msk [vmem:[%s390 + $0xa0] sm:$0xff] %vm593, %v3883
        %4117 = vst.msk [vmem:[%s390 + $0xa8] sm:$0xff] %vm593, %v3888
        %4118 = vst.msk [vmem:[%s390 + $0xb0] sm:$0xff] %vm593, %v3893
        %4119 = vst.msk [vmem:[%s390 + $0xb8] sm:$0xff] %vm593, %v3898
        %4120 = vst.msk [vmem:[%s390 + $0xc0] sm:$0xff] %vm593, %v3903
        %4121 = vst.msk [vmem:[%s390 + $0xc8] sm:$0xff] %vm593, %v3908
        %4122 = vst.msk [vmem:[%s390 + $0xd0] sm:$0xff] %vm593, %v3913
        %4123 = vst.msk [vmem:[%s390 + $0xd8] sm:$0xff] %vm593, %v3918
        %4124 = vst.msk [vmem:[%s390 + $0xe0] sm:$0xff] %vm593, %v3923
        %4125 = vst.msk [vmem:[%s390 + $0xe8] sm:$0xff] %vm593, %v3928
        %4126 = vst.msk [vmem:[%s390 + $0xf0] sm:$0xff] %vm593, %v3933
        %4127 = vst.msk [vmem:[%s390 + $0xf8] sm:$0xff] %vm593, %v3938
        %4128 = vst.msk [vmem:[%s390 + $0x100] sm:$0xff] %vm593, %v3943
        %4129 = vst.msk [vmem:[%s390 + $0x108] sm:$0xff] %vm593, %v3948
        %4130 = vst.msk [vmem:[%s390 + $0x110] sm:$0xff] %vm593, %v3953
        %4131 = vst.msk [vmem:[%s390 + $0x118] sm:$0xff] %vm593, %v3958
        %4132 = vst.msk [vmem:[%s390 + $0x120] sm:$0xff] %vm593, %v3963
        %4133 = vst.msk [vmem:[%s390 + $0x128] sm:$0xff] %vm593, %v3968
        %4134 = vst.msk [vmem:[%s390 + $0x130] sm:$0xff] %vm593, %v3973
        %4135 = vst.msk [vmem:[%s390 + $0x138] sm:$0xff] %vm593, %v3978
        %4136 = vst.msk [vmem:[%s390 + $0x140] sm:$0xff] %vm593, %v3983
        %4137 = vst.msk [vmem:[%s390 + $0x148] sm:$0xff] %vm593, %v3988
        %4138 = vst.msk [vmem:[%s390 + $0x150] sm:$0xff] %vm593, %v3993
        %4139 = vst.msk [vmem:[%s390 + $0x158] sm:$0xff] %vm593, %v3998
        %4140 = vst.msk [vmem:[%s390 + $0x160] sm:$0xff] %vm593, %v4003
        %4141 = vst.msk [vmem:[%s390 + $0x168] sm:$0xff] %vm593, %v4008
        %4142 = vst.msk [vmem:[%s390 + $0x170] sm:$0xff] %vm593, %v4013
        %4143 = vst.msk [vmem:[%s390 + $0x178] sm:$0xff] %vm593, %v4018
        %4144 = vst.msk [vmem:[%s390 + $0x180] sm:$0xff] %vm593, %v4023
        %4145 = vst.msk [vmem:[%s390 + $0x188] sm:$0xff] %vm593, %v4028
        %4146 = vst.msk [vmem:[%s390 + $0x190] sm:$0xff] %vm593, %v4033
        %4147 = vst.msk [vmem:[%s390 + $0x198] sm:$0xff] %vm593, %v4038
        %4148 = vst.msk [vmem:[%s390 + $0x1a0] sm:$0xff] %vm593, %v4043
        %4149 = vst.msk [vmem:[%s390 + $0x1a8] sm:$0xff] %vm593, %v4048
        %4150 = vst.msk [vmem:[%s390 + $0x1b0] sm:$0xff] %vm593, %v4053
        %4151 = vst.msk [vmem:[%s390 + $0x1b8] sm:$0xff] %vm593, %v4058
        %4152 = vst.msk [vmem:[%s390 + $0x1c0] sm:$0xff] %vm593, %v4063
        %4153 = vst.msk [vmem:[%s390 + $0x1c8] sm:$0xff] %vm593, %v4068
        %4154 = vst.msk [vmem:[%s390 + $0x1d0] sm:$0xff] %vm593, %v4073
        %4155 = vst.msk [vmem:[%s390 + $0x1d8] sm:$0xff] %vm593, %v4078
        %4156 = vst.msk [vmem:[%s390 + $0x1e0] sm:$0xff] %vm593, %v4083
        %4157 = vst.msk [vmem:[%s390 + $0x1e8] sm:$0xff] %vm593, %v4088
        %4158 = vst.msk [vmem:[%s390 + $0x1f0] sm:$0xff] %vm593, %v4093
        %vm4159 = vcmask 15360
        %4160 = vst.msk [vmem:[%s396] sm:$0xff] %vm4159, %v2560
        %4161 = vst.msk [vmem:[%s396 + $0x8] sm:$0xff] %vm4159, %v2561
        %4162 = vst.msk [vmem:[%s396 + $0x10] sm:$0xff] %vm4159, %v2562
        %4163 = vst.msk [vmem:[%s396 + $0x18] sm:$0xff] %vm4159, %v2563
        %4164 = vst.msk [vmem:[%s396 + $0x20] sm:$0xff] %vm4159, %v2564
        %4165 = vst.msk [vmem:[%s396 + $0x28] sm:$0xff] %vm4159, %v2565
        %4166 = vst.msk [vmem:[%s396 + $0x30] sm:$0xff] %vm4159, %v2566
        %4167 = vst.msk [vmem:[%s396 + $0x38] sm:$0xff] %vm4159, %v2567
        %4168 = vst.msk [vmem:[%s396 + $0x40] sm:$0xff] %vm4159, %v2568
        %4169 = vst.msk [vmem:[%s396 + $0x48] sm:$0xff] %vm4159, %v2569
        %4170 = vst.msk [vmem:[%s396 + $0x50] sm:$0xff] %vm4159, %v2570
        %4171 = vst.msk [vmem:[%s396 + $0x58] sm:$0xff] %vm4159, %v2571
        %4172 = vst.msk [vmem:[%s396 + $0x60] sm:$0xff] %vm4159, %v2572
        %4173 = vst.msk [vmem:[%s396 + $0x68] sm:$0xff] %vm4159, %v2573
        %4174 = vst.msk [vmem:[%s396 + $0x70] sm:$0xff] %vm4159, %v2574
        %4175 = vst.msk [vmem:[%s396 + $0x78] sm:$0xff] %vm4159, %v2575
        %4176 = vst.msk [vmem:[%s396 + $0x80] sm:$0xff] %vm4159, %v2576
        %4177 = vst.msk [vmem:[%s396 + $0x88] sm:$0xff] %vm4159, %v2577
        %4178 = vst.msk [vmem:[%s396 + $0x90] sm:$0xff] %vm4159, %v2578
        %4179 = vst.msk [vmem:[%s396 + $0x98] sm:$0xff] %vm4159, %v2579
        %4180 = vst.msk [vmem:[%s396 + $0xa0] sm:$0xff] %vm4159, %v2580
        %4181 = vst.msk [vmem:[%s396 + $0xa8] sm:$0xff] %vm4159, %v2581
        %4182 = vst.msk [vmem:[%s396 + $0xb0] sm:$0xff] %vm4159, %v2582
        %4183 = vst.msk [vmem:[%s396 + $0xb8] sm:$0xff] %vm4159, %v2583
        %4184 = vst.msk [vmem:[%s396 + $0xc0] sm:$0xff] %vm4159, %v2584
        %4185 = vst.msk [vmem:[%s396 + $0xc8] sm:$0xff] %vm4159, %v2585
        %4186 = vst.msk [vmem:[%s396 + $0xd0] sm:$0xff] %vm4159, %v2586
        %4187 = vst.msk [vmem:[%s396 + $0xd8] sm:$0xff] %vm4159, %v2587
        %4188 = vst.msk [vmem:[%s396 + $0xe0] sm:$0xff] %vm4159, %v2588
        %4189 = vst.msk [vmem:[%s396 + $0xe8] sm:$0xff] %vm4159, %v2589
        %4190 = vst.msk [vmem:[%s396 + $0xf0] sm:$0xff] %vm4159, %v2590
        %4191 = vst.msk [vmem:[%s396 + $0xf8] sm:$0xff] %vm4159, %v2591
        %4192 = vst.msk [vmem:[%s396 + $0x100] sm:$0xff] %vm4159, %v2592
        %4193 = vst.msk [vmem:[%s396 + $0x108] sm:$0xff] %vm4159, %v2593
        %4194 = vst.msk [vmem:[%s396 + $0x110] sm:$0xff] %vm4159, %v2594
        %4195 = vst.msk [vmem:[%s396 + $0x118] sm:$0xff] %vm4159, %v2595
        %4196 = vst.msk [vmem:[%s396 + $0x120] sm:$0xff] %vm4159, %v2596
        %4197 = vst.msk [vmem:[%s396 + $0x128] sm:$0xff] %vm4159, %v2597
        %4198 = vst.msk [vmem:[%s396 + $0x130] sm:$0xff] %vm4159, %v2598
        %4199 = vst.msk [vmem:[%s396 + $0x138] sm:$0xff] %vm4159, %v2599
        %4200 = vst.msk [vmem:[%s396 + $0x140] sm:$0xff] %vm4159, %v2600
        %4201 = vst.msk [vmem:[%s396 + $0x148] sm:$0xff] %vm4159, %v2601
        %4202 = vst.msk [vmem:[%s396 + $0x150] sm:$0xff] %vm4159, %v2602
        %4203 = vst.msk [vmem:[%s396 + $0x158] sm:$0xff] %vm4159, %v2603
        %4204 = vst.msk [vmem:[%s396 + $0x160] sm:$0xff] %vm4159, %v2604
        %4205 = vst.msk [vmem:[%s396 + $0x168] sm:$0xff] %vm4159, %v2605
        %4206 = vst.msk [vmem:[%s396 + $0x170] sm:$0xff] %vm4159, %v2606
        %4207 = vst.msk [vmem:[%s396 + $0x178] sm:$0xff] %vm4159, %v2607
        %4208 = vst.msk [vmem:[%s396 + $0x180] sm:$0xff] %vm4159, %v2608
        %4209 = vst.msk [vmem:[%s396 + $0x188] sm:$0xff] %vm4159, %v2609
        %4210 = vst.msk [vmem:[%s396 + $0x190] sm:$0xff] %vm4159, %v2610
        %4211 = vst.msk [vmem:[%s396 + $0x198] sm:$0xff] %vm4159, %v2611
        %4212 = vst.msk [vmem:[%s396 + $0x1a0] sm:$0xff] %vm4159, %v2612
        %4213 = vst.msk [vmem:[%s396 + $0x1a8] sm:$0xff] %vm4159, %v2613
        %4214 = vst.msk [vmem:[%s396 + $0x1b0] sm:$0xff] %vm4159, %v2614
        %4215 = vst.msk [vmem:[%s396 + $0x1b8] sm:$0xff] %vm4159, %v2615
        %4216 = vst.msk [vmem:[%s396 + $0x1c0] sm:$0xff] %vm4159, %v2616
        %4217 = vst.msk [vmem:[%s396 + $0x1c8] sm:$0xff] %vm4159, %v2617
        %4218 = vst.msk [vmem:[%s396 + $0x1d0] sm:$0xff] %vm4159, %v2618
        %4219 = vst.msk [vmem:[%s396 + $0x1d8] sm:$0xff] %vm4159, %v2619
        %4220 = vst.msk [vmem:[%s396 + $0x1e0] sm:$0xff] %vm4159, %v2620
        %4221 = vst.msk [vmem:[%s396 + $0x1e8] sm:$0xff] %vm4159, %v2621
        %4222 = vst.msk [vmem:[%s396 + $0x1f0] sm:$0xff] %vm4159, %v2622
        %4223 = vst.msk [vmem:[%s402] sm:$0xff] %vm4159, %v1491
        %4224 = vst.msk [vmem:[%s402 + $0x8] sm:$0xff] %vm4159, %v1496
        %4225 = vst.msk [vmem:[%s402 + $0x10] sm:$0xff] %vm4159, %v1501
        %4226 = vst.msk [vmem:[%s402 + $0x18] sm:$0xff] %vm4159, %v1506
        %4227 = vst.msk [vmem:[%s402 + $0x20] sm:$0xff] %vm4159, %v1511
        %4228 = vst.msk [vmem:[%s402 + $0x28] sm:$0xff] %vm4159, %v1516
        %4229 = vst.msk [vmem:[%s402 + $0x30] sm:$0xff] %vm4159, %v1521
        %4230 = vst.msk [vmem:[%s402 + $0x38] sm:$0xff] %vm4159, %v1526
        %4231 = vst.msk [vmem:[%s402 + $0x40] sm:$0xff] %vm4159, %v1531
        %4232 = vst.msk [vmem:[%s402 + $0x48] sm:$0xff] %vm4159, %v1536
        %4233 = vst.msk [vmem:[%s402 + $0x50] sm:$0xff] %vm4159, %v1541
        %4234 = vst.msk [vmem:[%s402 + $0x58] sm:$0xff] %vm4159, %v1546
        %4235 = vst.msk [vmem:[%s402 + $0x60] sm:$0xff] %vm4159, %v1551
        %4236 = vst.msk [vmem:[%s402 + $0x68] sm:$0xff] %vm4159, %v1556
        %4237 = vst.msk [vmem:[%s402 + $0x70] sm:$0xff] %vm4159, %v1561
        %4238 = vst.msk [vmem:[%s402 + $0x78] sm:$0xff] %vm4159, %v1566
        %4239 = vst.msk [vmem:[%s402 + $0x80] sm:$0xff] %vm4159, %v1571
        %4240 = vst.msk [vmem:[%s402 + $0x88] sm:$0xff] %vm4159, %v1576
        %4241 = vst.msk [vmem:[%s402 + $0x90] sm:$0xff] %vm4159, %v1581
        %4242 = vst.msk [vmem:[%s402 + $0x98] sm:$0xff] %vm4159, %v1586
        %4243 = vst.msk [vmem:[%s402 + $0xa0] sm:$0xff] %vm4159, %v1591
        %4244 = vst.msk [vmem:[%s402 + $0xa8] sm:$0xff] %vm4159, %v1596
        %4245 = vst.msk [vmem:[%s402 + $0xb0] sm:$0xff] %vm4159, %v1601
        %4246 = vst.msk [vmem:[%s402 + $0xb8] sm:$0xff] %vm4159, %v1606
        %4247 = vst.msk [vmem:[%s402 + $0xc0] sm:$0xff] %vm4159, %v1611
        %4248 = vst.msk [vmem:[%s402 + $0xc8] sm:$0xff] %vm4159, %v1616
        %4249 = vst.msk [vmem:[%s402 + $0xd0] sm:$0xff] %vm4159, %v1621
        %4250 = vst.msk [vmem:[%s402 + $0xd8] sm:$0xff] %vm4159, %v1626
        %4251 = vst.msk [vmem:[%s402 + $0xe0] sm:$0xff] %vm4159, %v1631
        %4252 = vst.msk [vmem:[%s402 + $0xe8] sm:$0xff] %vm4159, %v1636
        %4253 = vst.msk [vmem:[%s402 + $0xf0] sm:$0xff] %vm4159, %v1641
        %4254 = vst.msk [vmem:[%s402 + $0xf8] sm:$0xff] %vm4159, %v1646
        %4255 = vst.msk [vmem:[%s402 + $0x100] sm:$0xff] %vm4159, %v1651
        %4256 = vst.msk [vmem:[%s402 + $0x108] sm:$0xff] %vm4159, %v1656
        %4257 = vst.msk [vmem:[%s402 + $0x110] sm:$0xff] %vm4159, %v1661
        %4258 = vst.msk [vmem:[%s402 + $0x118] sm:$0xff] %vm4159, %v1666
        %4259 = vst.msk [vmem:[%s402 + $0x120] sm:$0xff] %vm4159, %v1671
        %4260 = vst.msk [vmem:[%s402 + $0x128] sm:$0xff] %vm4159, %v1676
        %4261 = vst.msk [vmem:[%s402 + $0x130] sm:$0xff] %vm4159, %v1681
        %4262 = vst.msk [vmem:[%s402 + $0x138] sm:$0xff] %vm4159, %v1686
        %4263 = vst.msk [vmem:[%s402 + $0x140] sm:$0xff] %vm4159, %v1691
        %4264 = vst.msk [vmem:[%s402 + $0x148] sm:$0xff] %vm4159, %v1696
        %4265 = vst.msk [vmem:[%s402 + $0x150] sm:$0xff] %vm4159, %v1701
        %4266 = vst.msk [vmem:[%s402 + $0x158] sm:$0xff] %vm4159, %v1706
        %4267 = vst.msk [vmem:[%s402 + $0x160] sm:$0xff] %vm4159, %v1711
        %4268 = vst.msk [vmem:[%s402 + $0x168] sm:$0xff] %vm4159, %v1716
        %4269 = vst.msk [vmem:[%s402 + $0x170] sm:$0xff] %vm4159, %v1721
        %4270 = vst.msk [vmem:[%s402 + $0x178] sm:$0xff] %vm4159, %v1726
        %4271 = vst.msk [vmem:[%s402 + $0x180] sm:$0xff] %vm4159, %v1731
        %4272 = vst.msk [vmem:[%s402 + $0x188] sm:$0xff] %vm4159, %v1736
        %4273 = vst.msk [vmem:[%s402 + $0x190] sm:$0xff] %vm4159, %v1741
        %4274 = vst.msk [vmem:[%s402 + $0x198] sm:$0xff] %vm4159, %v1746
        %4275 = vst.msk [vmem:[%s402 + $0x1a0] sm:$0xff] %vm4159, %v1751
        %4276 = vst.msk [vmem:[%s402 + $0x1a8] sm:$0xff] %vm4159, %v1756
        %4277 = vst.msk [vmem:[%s402 + $0x1b0] sm:$0xff] %vm4159, %v1761
        %4278 = vst.msk [vmem:[%s402 + $0x1b8] sm:$0xff] %vm4159, %v1766
        %4279 = vst.msk [vmem:[%s402 + $0x1c0] sm:$0xff] %vm4159, %v1771
        %4280 = vst.msk [vmem:[%s402 + $0x1c8] sm:$0xff] %vm4159, %v1776
        %4281 = vst.msk [vmem:[%s402 + $0x1d0] sm:$0xff] %vm4159, %v1781
        %4282 = vst.msk [vmem:[%s402 + $0x1d8] sm:$0xff] %vm4159, %v1786
        %4283 = vst.msk [vmem:[%s402 + $0x1e0] sm:$0xff] %vm4159, %v1791
        %4284 = vst.msk [vmem:[%s402 + $0x1e8] sm:$0xff] %vm4159, %v1796
        %4285 = vst.msk [vmem:[%s402 + $0x1f0] sm:$0xff] %vm4159, %v1801
        %4349 = vrot.lane.b32.xlu0 %v1491, 126
        %v4350 = vpop.permute.xlu0 %4349
        %4351 = vrot.lane.b32.xlu0 %v1496, 126
        %v4352 = vpop.permute.xlu0 %4351
        %4353 = vrot.lane.b32.xlu0 %v1501, 126
        %v4354 = vpop.permute.xlu0 %4353
        %4355 = vrot.lane.b32.xlu0 %v1506, 126
        %v4356 = vpop.permute.xlu0 %4355
        %4357 = vrot.lane.b32.xlu0 %v1511, 126
        %v4358 = vpop.permute.xlu0 %4357
        %4359 = vrot.lane.b32.xlu0 %v1516, 126
        %v4360 = vpop.permute.xlu0 %4359
        %4361 = vrot.lane.b32.xlu0 %v1521, 126
        %v4362 = vpop.permute.xlu0 %4361
        %4363 = vrot.lane.b32.xlu0 %v1526, 126
        %v4364 = vpop.permute.xlu0 %4363
        %4365 = vrot.lane.b32.xlu0 %v1531, 126
        %v4366 = vpop.permute.xlu0 %4365
        %4367 = vrot.lane.b32.xlu0 %v1536, 126
        %v4368 = vpop.permute.xlu0 %4367
        %4369 = vrot.lane.b32.xlu0 %v1541, 126
        %v4370 = vpop.permute.xlu0 %4369
        %4371 = vrot.lane.b32.xlu0 %v1546, 126
        %v4372 = vpop.permute.xlu0 %4371
        %4373 = vrot.lane.b32.xlu0 %v1551, 126
        %v4374 = vpop.permute.xlu0 %4373
        %4375 = vrot.lane.b32.xlu0 %v1556, 126
        %v4376 = vpop.permute.xlu0 %4375
        %4377 = vrot.lane.b32.xlu0 %v1561, 126
        %v4378 = vpop.permute.xlu0 %4377
        %4379 = vrot.lane.b32.xlu0 %v1566, 126
        %v4380 = vpop.permute.xlu0 %4379
        %4381 = vrot.lane.b32.xlu0 %v1571, 126
        %v4382 = vpop.permute.xlu0 %4381
        %4383 = vrot.lane.b32.xlu0 %v1576, 126
        %v4384 = vpop.permute.xlu0 %4383
        %4385 = vrot.lane.b32.xlu0 %v1581, 126
        %v4386 = vpop.permute.xlu0 %4385
        %4387 = vrot.lane.b32.xlu0 %v1586, 126
        %v4388 = vpop.permute.xlu0 %4387
        %4389 = vrot.lane.b32.xlu0 %v1591, 126
        %v4390 = vpop.permute.xlu0 %4389
        %4391 = vrot.lane.b32.xlu0 %v1596, 126
        %v4392 = vpop.permute.xlu0 %4391
        %4393 = vrot.lane.b32.xlu0 %v1601, 126
        %v4394 = vpop.permute.xlu0 %4393
        %4395 = vrot.lane.b32.xlu0 %v1606, 126
        %v4396 = vpop.permute.xlu0 %4395
        %4397 = vrot.lane.b32.xlu0 %v1611, 126
        %v4398 = vpop.permute.xlu0 %4397
        %4399 = vrot.lane.b32.xlu0 %v1616, 126
        %v4400 = vpop.permute.xlu0 %4399
        %4401 = vrot.lane.b32.xlu0 %v1621, 126
        %v4402 = vpop.permute.xlu0 %4401
        %4403 = vrot.lane.b32.xlu0 %v1626, 126
        %v4404 = vpop.permute.xlu0 %4403
        %4405 = vrot.lane.b32.xlu0 %v1631, 126
        %v4406 = vpop.permute.xlu0 %4405
        %4407 = vrot.lane.b32.xlu0 %v1636, 126
        %v4408 = vpop.permute.xlu0 %4407
        %4409 = vrot.lane.b32.xlu0 %v1641, 126
        %v4410 = vpop.permute.xlu0 %4409
        %4411 = vrot.lane.b32.xlu0 %v1646, 126
        %v4412 = vpop.permute.xlu0 %4411
        %4413 = vrot.lane.b32.xlu0 %v1651, 126
        %v4414 = vpop.permute.xlu0 %4413
        %4415 = vrot.lane.b32.xlu0 %v1656, 126
        %v4416 = vpop.permute.xlu0 %4415
        %4417 = vrot.lane.b32.xlu0 %v1661, 126
        %v4418 = vpop.permute.xlu0 %4417
        %4419 = vrot.lane.b32.xlu0 %v1666, 126
        %v4420 = vpop.permute.xlu0 %4419
        %4421 = vrot.lane.b32.xlu0 %v1671, 126
        %v4422 = vpop.permute.xlu0 %4421
        %4423 = vrot.lane.b32.xlu0 %v1676, 126
        %v4424 = vpop.permute.xlu0 %4423
        %4425 = vrot.lane.b32.xlu0 %v1681, 126
        %v4426 = vpop.permute.xlu0 %4425
        %4427 = vrot.lane.b32.xlu0 %v1686, 126
        %v4428 = vpop.permute.xlu0 %4427
        %4429 = vrot.lane.b32.xlu0 %v1691, 126
        %v4430 = vpop.permute.xlu0 %4429
        %4431 = vrot.lane.b32.xlu0 %v1696, 126
        %v4432 = vpop.permute.xlu0 %4431
        %4433 = vrot.lane.b32.xlu0 %v1701, 126
        %v4434 = vpop.permute.xlu0 %4433
        %4435 = vrot.lane.b32.xlu0 %v1706, 126
        %v4436 = vpop.permute.xlu0 %4435
        %4437 = vrot.lane.b32.xlu0 %v1711, 126
        %v4438 = vpop.permute.xlu0 %4437
        %4439 = vrot.lane.b32.xlu0 %v1716, 126
        %v4440 = vpop.permute.xlu0 %4439
        %4441 = vrot.lane.b32.xlu0 %v1721, 126
        %v4442 = vpop.permute.xlu0 %4441
        %4443 = vrot.lane.b32.xlu0 %v1726, 126
        %v4444 = vpop.permute.xlu0 %4443
        %4445 = vrot.lane.b32.xlu0 %v1731, 126
        %v4446 = vpop.permute.xlu0 %4445
        %4447 = vrot.lane.b32.xlu0 %v1736, 126
        %v4448 = vpop.permute.xlu0 %4447
        %4449 = vrot.lane.b32.xlu0 %v1741, 126
        %v4450 = vpop.permute.xlu0 %4449
        %4451 = vrot.lane.b32.xlu0 %v1746, 126
        %v4452 = vpop.permute.xlu0 %4451
        %4453 = vrot.lane.b32.xlu0 %v1751, 126
        %v4454 = vpop.permute.xlu0 %4453
        %4455 = vrot.lane.b32.xlu0 %v1756, 126
        %v4456 = vpop.permute.xlu0 %4455
        %4457 = vrot.lane.b32.xlu0 %v1761, 126
        %v4458 = vpop.permute.xlu0 %4457
        %4459 = vrot.lane.b32.xlu0 %v1766, 126
        %v4460 = vpop.permute.xlu0 %4459
        %4461 = vrot.lane.b32.xlu0 %v1771, 126
        %v4462 = vpop.permute.xlu0 %4461
        %4463 = vrot.lane.b32.xlu0 %v1776, 126
        %v4464 = vpop.permute.xlu0 %4463
        %4465 = vrot.lane.b32.xlu0 %v1781, 126
        %v4466 = vpop.permute.xlu0 %4465
        %4467 = vrot.lane.b32.xlu0 %v1786, 126
        %v4468 = vpop.permute.xlu0 %4467
        %4469 = vrot.lane.b32.xlu0 %v1791, 126
        %v4470 = vpop.permute.xlu0 %4469
        %4471 = vrot.lane.b32.xlu0 %v1796, 126
        %v4472 = vpop.permute.xlu0 %4471
        %4473 = vrot.lane.b32.xlu0 %v1801, 126
        %v4474 = vpop.permute.xlu0 %4473
        %4538 = vst.msk [vmem:[%s408] sm:$0xff] %vm4159, %v4350
        %4539 = vst.msk [vmem:[%s408 + $0x8] sm:$0xff] %vm4159, %v4352
        %4540 = vst.msk [vmem:[%s408 + $0x10] sm:$0xff] %vm4159, %v4354
        %4541 = vst.msk [vmem:[%s408 + $0x18] sm:$0xff] %vm4159, %v4356
        %4542 = vst.msk [vmem:[%s408 + $0x20] sm:$0xff] %vm4159, %v4358
        %4543 = vst.msk [vmem:[%s408 + $0x28] sm:$0xff] %vm4159, %v4360
        %4544 = vst.msk [vmem:[%s408 + $0x30] sm:$0xff] %vm4159, %v4362
        %4545 = vst.msk [vmem:[%s408 + $0x38] sm:$0xff] %vm4159, %v4364
        %4546 = vst.msk [vmem:[%s408 + $0x40] sm:$0xff] %vm4159, %v4366
        %4547 = vst.msk [vmem:[%s408 + $0x48] sm:$0xff] %vm4159, %v4368
        %4548 = vst.msk [vmem:[%s408 + $0x50] sm:$0xff] %vm4159, %v4370
        %4549 = vst.msk [vmem:[%s408 + $0x58] sm:$0xff] %vm4159, %v4372
        %4550 = vst.msk [vmem:[%s408 + $0x60] sm:$0xff] %vm4159, %v4374
        %4551 = vst.msk [vmem:[%s408 + $0x68] sm:$0xff] %vm4159, %v4376
        %4552 = vst.msk [vmem:[%s408 + $0x70] sm:$0xff] %vm4159, %v4378
        %4553 = vst.msk [vmem:[%s408 + $0x78] sm:$0xff] %vm4159, %v4380
        %4554 = vst.msk [vmem:[%s408 + $0x80] sm:$0xff] %vm4159, %v4382
        %4555 = vst.msk [vmem:[%s408 + $0x88] sm:$0xff] %vm4159, %v4384
        %4556 = vst.msk [vmem:[%s408 + $0x90] sm:$0xff] %vm4159, %v4386
        %4557 = vst.msk [vmem:[%s408 + $0x98] sm:$0xff] %vm4159, %v4388
        %4558 = vst.msk [vmem:[%s408 + $0xa0] sm:$0xff] %vm4159, %v4390
        %4559 = vst.msk [vmem:[%s408 + $0xa8] sm:$0xff] %vm4159, %v4392
        %4560 = vst.msk [vmem:[%s408 + $0xb0] sm:$0xff] %vm4159, %v4394
        %4561 = vst.msk [vmem:[%s408 + $0xb8] sm:$0xff] %vm4159, %v4396
        %4562 = vst.msk [vmem:[%s408 + $0xc0] sm:$0xff] %vm4159, %v4398
        %4563 = vst.msk [vmem:[%s408 + $0xc8] sm:$0xff] %vm4159, %v4400
        %4564 = vst.msk [vmem:[%s408 + $0xd0] sm:$0xff] %vm4159, %v4402
        %4565 = vst.msk [vmem:[%s408 + $0xd8] sm:$0xff] %vm4159, %v4404
        %4566 = vst.msk [vmem:[%s408 + $0xe0] sm:$0xff] %vm4159, %v4406
        %4567 = vst.msk [vmem:[%s408 + $0xe8] sm:$0xff] %vm4159, %v4408
        %4568 = vst.msk [vmem:[%s408 + $0xf0] sm:$0xff] %vm4159, %v4410
        %4569 = vst.msk [vmem:[%s408 + $0xf8] sm:$0xff] %vm4159, %v4412
        %4570 = vst.msk [vmem:[%s408 + $0x100] sm:$0xff] %vm4159, %v4414
        %4571 = vst.msk [vmem:[%s408 + $0x108] sm:$0xff] %vm4159, %v4416
        %4572 = vst.msk [vmem:[%s408 + $0x110] sm:$0xff] %vm4159, %v4418
        %4573 = vst.msk [vmem:[%s408 + $0x118] sm:$0xff] %vm4159, %v4420
        %4574 = vst.msk [vmem:[%s408 + $0x120] sm:$0xff] %vm4159, %v4422
        %4575 = vst.msk [vmem:[%s408 + $0x128] sm:$0xff] %vm4159, %v4424
        %4576 = vst.msk [vmem:[%s408 + $0x130] sm:$0xff] %vm4159, %v4426
        %4577 = vst.msk [vmem:[%s408 + $0x138] sm:$0xff] %vm4159, %v4428
        %4578 = vst.msk [vmem:[%s408 + $0x140] sm:$0xff] %vm4159, %v4430
        %4579 = vst.msk [vmem:[%s408 + $0x148] sm:$0xff] %vm4159, %v4432
        %4580 = vst.msk [vmem:[%s408 + $0x150] sm:$0xff] %vm4159, %v4434
        %4581 = vst.msk [vmem:[%s408 + $0x158] sm:$0xff] %vm4159, %v4436
        %4582 = vst.msk [vmem:[%s408 + $0x160] sm:$0xff] %vm4159, %v4438
        %4583 = vst.msk [vmem:[%s408 + $0x168] sm:$0xff] %vm4159, %v4440
        %4584 = vst.msk [vmem:[%s408 + $0x170] sm:$0xff] %vm4159, %v4442
        %4585 = vst.msk [vmem:[%s408 + $0x178] sm:$0xff] %vm4159, %v4444
        %4586 = vst.msk [vmem:[%s408 + $0x180] sm:$0xff] %vm4159, %v4446
        %4587 = vst.msk [vmem:[%s408 + $0x188] sm:$0xff] %vm4159, %v4448
        %4588 = vst.msk [vmem:[%s408 + $0x190] sm:$0xff] %vm4159, %v4450
        %4589 = vst.msk [vmem:[%s408 + $0x198] sm:$0xff] %vm4159, %v4452
        %4590 = vst.msk [vmem:[%s408 + $0x1a0] sm:$0xff] %vm4159, %v4454
        %4591 = vst.msk [vmem:[%s408 + $0x1a8] sm:$0xff] %vm4159, %v4456
        %4592 = vst.msk [vmem:[%s408 + $0x1b0] sm:$0xff] %vm4159, %v4458
        %4593 = vst.msk [vmem:[%s408 + $0x1b8] sm:$0xff] %vm4159, %v4460
        %4594 = vst.msk [vmem:[%s408 + $0x1c0] sm:$0xff] %vm4159, %v4462
        %4595 = vst.msk [vmem:[%s408 + $0x1c8] sm:$0xff] %vm4159, %v4464
        %4596 = vst.msk [vmem:[%s408 + $0x1d0] sm:$0xff] %vm4159, %v4466
        %4597 = vst.msk [vmem:[%s408 + $0x1d8] sm:$0xff] %vm4159, %v4468
        %4598 = vst.msk [vmem:[%s408 + $0x1e0] sm:$0xff] %vm4159, %v4470
        %4599 = vst.msk [vmem:[%s408 + $0x1e8] sm:$0xff] %vm4159, %v4472
        %4600 = vst.msk [vmem:[%s408 + $0x1f0] sm:$0xff] %vm4159, %v4474
        %s4601 = sand.u32 %s187, 1
        %s4602 = sand.u32 %s187, 1
        %s4603 = smul.addr %s4602, 504
        %s4604 = scalar_lea.vmem [#allocation2], %s4603
        %s4605 = sand.u32 %s213, 1
        %s4606 = sand.u32 %s213, 1
        %s4607 = smul.addr %s4606, 504
        %s4608 = scalar_lea.vmem [#allocation3], %s4607
        %s4609 = sand.u32 %s239, 1
        %s4610 = sand.u32 %s239, 1
        %s4611 = smul.addr %s4610, 504
        %s4612 = scalar_lea.vmem [#allocation4], %s4611
        %s4613 = sand.u32 %s265, 1
        %s4614 = sand.u32 %s265, 1
        %s4615 = smul.addr %s4614, 504
        %s4616 = scalar_lea.vmem [#allocation5], %s4615
        // Predicated region
        $region49: #{ae1d_forward.1} parent=47 // pred_check
          %p4617 = pneg %p197
        $region50: #{ae1d_forward.1} parent=47 // pred_check_branch
          %4619 = sbr.rel (%p4617) target = $region52
        $region51: #{ae1d_forward.1} parent=47 // pred_region
          %s4620 = smul.u32 63, %s22
          %s4621 = ssub.s32 125, %s4620
          %p4622 = scmp.lt.s32.totalorder %s4621, 63
          %s4623 = scalar_select %p4622, %s4621, 63
          %s4624 = smul.u32 128, %s4623
          %p4625 = scmp.ne.s32.totalorder 0, %s4624
          %s4626 = smul.addr %s4620, 8
          %s4627 = scalar_lea.vmem %s7, %s4626
          // Predicated region
          $region53: #{ae1d_forward.1} parent=51 // pred_check
            %p4628 = pneg %p4625
          $region54: #{ae1d_forward.1} parent=51 // pred_check_branch
            %4630 = sbr.rel (%p4628) target = $region56
          $region55: #{ae1d_forward.1} parent=51 // pred_region
            // Predicated region
            $region57: #{ae1d_forward.1} parent=55 // pred_check
              _
            $region58: #{ae1d_forward.1} parent=55 // pred_check_branch
              %4632 = sbr.rel (0) target = $region60
            $region59: #{ae1d_forward.1} parent=55 // pred_region
              // Predicated region
              $region79: #{ae1d_forward.1} parent=59 // pred_check
                _
              $region80: #{ae1d_forward.1} parent=59 // pred_check_branch
                %4806 = sbr.rel (0) target = $region82
              $region81: #{ae1d_forward.1} parent=59 // pred_region
                %s4807 = sdiv.u32.pop %s4623, 63
                %s4808 = srem.u32.pop %s4623, 63
                // While loop
                $region83: #{ae1d_forward.1} parent=81 // loop_pre_header
                  _
                $region84: #{ae1d_forward.1} parent=81 // loop_header
                  %s4810 = sphi 0, %s4812
                  %p4811 = scmp.ge.s32.totalorder %s4810, %s4807
                  %s4815 = sphi 0, %s4946
                  %s4816 = sphi %s4604, %s4949
                  %s4817 = sphi %s4627, %s4950
                $region85: #{ae1d_forward.1} parent=81 // loop_header_branch
                  %4814 = sbr.rel (%p4811) target = $region89
                $region86: #{ae1d_forward.1} parent=81 // loop_body
                  %v4818 = vld [vmem:[%s4816] sm:$0xff]
                  %4819 = vst [vmem:[%s4817] sm:$0xff] %v4818
                  %v4820 = vld [vmem:[%s4816 + $0x8] sm:$0xff]
                  %4821 = vst [vmem:[%s4817 + $0x8] sm:$0xff] %v4820
                  %v4822 = vld [vmem:[%s4816 + $0x10] sm:$0xff]
                  %4823 = vst [vmem:[%s4817 + $0x10] sm:$0xff] %v4822
                  %v4824 = vld [vmem:[%s4816 + $0x18] sm:$0xff]
                  %4825 = vst [vmem:[%s4817 + $0x18] sm:$0xff] %v4824
                  %v4826 = vld [vmem:[%s4816 + $0x20] sm:$0xff]
                  %4827 = vst [vmem:[%s4817 + $0x20] sm:$0xff] %v4826
                  %v4828 = vld [vmem:[%s4816 + $0x28] sm:$0xff]
                  %4829 = vst [vmem:[%s4817 + $0x28] sm:$0xff] %v4828
                  %v4830 = vld [vmem:[%s4816 + $0x30] sm:$0xff]
                  %4831 = vst [vmem:[%s4817 + $0x30] sm:$0xff] %v4830
                  %v4832 = vld [vmem:[%s4816 + $0x38] sm:$0xff]
                  %4833 = vst [vmem:[%s4817 + $0x38] sm:$0xff] %v4832
                  %v4834 = vld [vmem:[%s4816 + $0x40] sm:$0xff]
                  %4835 = vst [vmem:[%s4817 + $0x40] sm:$0xff] %v4834
                  %v4836 = vld [vmem:[%s4816 + $0x48] sm:$0xff]
                  %4837 = vst [vmem:[%s4817 + $0x48] sm:$0xff] %v4836
                  %v4838 = vld [vmem:[%s4816 + $0x50] sm:$0xff]
                  %4839 = vst [vmem:[%s4817 + $0x50] sm:$0xff] %v4838
                  %v4840 = vld [vmem:[%s4816 + $0x58] sm:$0xff]
                  %4841 = vst [vmem:[%s4817 + $0x58] sm:$0xff] %v4840
                  %v4842 = vld [vmem:[%s4816 + $0x60] sm:$0xff]
                  %4843 = vst [vmem:[%s4817 + $0x60] sm:$0xff] %v4842
                  %v4844 = vld [vmem:[%s4816 + $0x68] sm:$0xff]
                  %4845 = vst [vmem:[%s4817 + $0x68] sm:$0xff] %v4844
                  %v4846 = vld [vmem:[%s4816 + $0x70] sm:$0xff]
                  %4847 = vst [vmem:[%s4817 + $0x70] sm:$0xff] %v4846
                  %v4848 = vld [vmem:[%s4816 + $0x78] sm:$0xff]
                  %4849 = vst [vmem:[%s4817 + $0x78] sm:$0xff] %v4848
                  %v4850 = vld [vmem:[%s4816 + $0x80] sm:$0xff]
                  %4851 = vst [vmem:[%s4817 + $0x80] sm:$0xff] %v4850
                  %v4852 = vld [vmem:[%s4816 + $0x88] sm:$0xff]
                  %4853 = vst [vmem:[%s4817 + $0x88] sm:$0xff] %v4852
                  %v4854 = vld [vmem:[%s4816 + $0x90] sm:$0xff]
                  %4855 = vst [vmem:[%s4817 + $0x90] sm:$0xff] %v4854
                  %v4856 = vld [vmem:[%s4816 + $0x98] sm:$0xff]
                  %4857 = vst [vmem:[%s4817 + $0x98] sm:$0xff] %v4856
                  %v4858 = vld [vmem:[%s4816 + $0xa0] sm:$0xff]
                  %4859 = vst [vmem:[%s4817 + $0xa0] sm:$0xff] %v4858
                  %v4860 = vld [vmem:[%s4816 + $0xa8] sm:$0xff]
                  %4861 = vst [vmem:[%s4817 + $0xa8] sm:$0xff] %v4860
                  %v4862 = vld [vmem:[%s4816 + $0xb0] sm:$0xff]
                  %4863 = vst [vmem:[%s4817 + $0xb0] sm:$0xff] %v4862
                  %v4864 = vld [vmem:[%s4816 + $0xb8] sm:$0xff]
                  %4865 = vst [vmem:[%s4817 + $0xb8] sm:$0xff] %v4864
                  %v4866 = vld [vmem:[%s4816 + $0xc0] sm:$0xff]
                  %4867 = vst [vmem:[%s4817 + $0xc0] sm:$0xff] %v4866
                  %v4868 = vld [vmem:[%s4816 + $0xc8] sm:$0xff]
                  %4869 = vst [vmem:[%s4817 + $0xc8] sm:$0xff] %v4868
                  %v4870 = vld [vmem:[%s4816 + $0xd0] sm:$0xff]
                  %4871 = vst [vmem:[%s4817 + $0xd0] sm:$0xff] %v4870
                  %v4872 = vld [vmem:[%s4816 + $0xd8] sm:$0xff]
                  %4873 = vst [vmem:[%s4817 + $0xd8] sm:$0xff] %v4872
                  %v4874 = vld [vmem:[%s4816 + $0xe0] sm:$0xff]
                  %4875 = vst [vmem:[%s4817 + $0xe0] sm:$0xff] %v4874
                  %v4876 = vld [vmem:[%s4816 + $0xe8] sm:$0xff]
                  %4877 = vst [vmem:[%s4817 + $0xe8] sm:$0xff] %v4876
                  %v4878 = vld [vmem:[%s4816 + $0xf0] sm:$0xff]
                  %4879 = vst [vmem:[%s4817 + $0xf0] sm:$0xff] %v4878
                  %v4880 = vld [vmem:[%s4816 + $0xf8] sm:$0xff]
                  %4881 = vst [vmem:[%s4817 + $0xf8] sm:$0xff] %v4880
                  %v4882 = vld [vmem:[%s4816 + $0x100] sm:$0xff]
                  %4883 = vst [vmem:[%s4817 + $0x100] sm:$0xff] %v4882
                  %v4884 = vld [vmem:[%s4816 + $0x108] sm:$0xff]
                  %4885 = vst [vmem:[%s4817 + $0x108] sm:$0xff] %v4884
                  %v4886 = vld [vmem:[%s4816 + $0x110] sm:$0xff]
                  %4887 = vst [vmem:[%s4817 + $0x110] sm:$0xff] %v4886
                  %v4888 = vld [vmem:[%s4816 + $0x118] sm:$0xff]
                  %4889 = vst [vmem:[%s4817 + $0x118] sm:$0xff] %v4888
                  %v4890 = vld [vmem:[%s4816 + $0x120] sm:$0xff]
                  %4891 = vst [vmem:[%s4817 + $0x120] sm:$0xff] %v4890
                  %v4892 = vld [vmem:[%s4816 + $0x128] sm:$0xff]
                  %4893 = vst [vmem:[%s4817 + $0x128] sm:$0xff] %v4892
                  %v4894 = vld [vmem:[%s4816 + $0x130] sm:$0xff]
                  %4895 = vst [vmem:[%s4817 + $0x130] sm:$0xff] %v4894
                  %v4896 = vld [vmem:[%s4816 + $0x138] sm:$0xff]
                  %4897 = vst [vmem:[%s4817 + $0x138] sm:$0xff] %v4896
                  %v4898 = vld [vmem:[%s4816 + $0x140] sm:$0xff]
                  %4899 = vst [vmem:[%s4817 + $0x140] sm:$0xff] %v4898
                  %v4900 = vld [vmem:[%s4816 + $0x148] sm:$0xff]
                  %4901 = vst [vmem:[%s4817 + $0x148] sm:$0xff] %v4900
                  %v4902 = vld [vmem:[%s4816 + $0x150] sm:$0xff]
                  %4903 = vst [vmem:[%s4817 + $0x150] sm:$0xff] %v4902
                  %v4904 = vld [vmem:[%s4816 + $0x158] sm:$0xff]
                  %4905 = vst [vmem:[%s4817 + $0x158] sm:$0xff] %v4904
                  %v4906 = vld [vmem:[%s4816 + $0x160] sm:$0xff]
                  %4907 = vst [vmem:[%s4817 + $0x160] sm:$0xff] %v4906
                  %v4908 = vld [vmem:[%s4816 + $0x168] sm:$0xff]
                  %4909 = vst [vmem:[%s4817 + $0x168] sm:$0xff] %v4908
                  %v4910 = vld [vmem:[%s4816 + $0x170] sm:$0xff]
                  %4911 = vst [vmem:[%s4817 + $0x170] sm:$0xff] %v4910
                  %v4912 = vld [vmem:[%s4816 + $0x178] sm:$0xff]
                  %4913 = vst [vmem:[%s4817 + $0x178] sm:$0xff] %v4912
                  %v4914 = vld [vmem:[%s4816 + $0x180] sm:$0xff]
                  %4915 = vst [vmem:[%s4817 + $0x180] sm:$0xff] %v4914
                  %v4916 = vld [vmem:[%s4816 + $0x188] sm:$0xff]
                  %4917 = vst [vmem:[%s4817 + $0x188] sm:$0xff] %v4916
                  %v4918 = vld [vmem:[%s4816 + $0x190] sm:$0xff]
                  %4919 = vst [vmem:[%s4817 + $0x190] sm:$0xff] %v4918
                  %v4920 = vld [vmem:[%s4816 + $0x198] sm:$0xff]
                  %4921 = vst [vmem:[%s4817 + $0x198] sm:$0xff] %v4920
                  %v4922 = vld [vmem:[%s4816 + $0x1a0] sm:$0xff]
                  %4923 = vst [vmem:[%s4817 + $0x1a0] sm:$0xff] %v4922
                  %v4924 = vld [vmem:[%s4816 + $0x1a8] sm:$0xff]
                  %4925 = vst [vmem:[%s4817 + $0x1a8] sm:$0xff] %v4924
                  %v4926 = vld [vmem:[%s4816 + $0x1b0] sm:$0xff]
                  %4927 = vst [vmem:[%s4817 + $0x1b0] sm:$0xff] %v4926
                  %v4928 = vld [vmem:[%s4816 + $0x1b8] sm:$0xff]
                  %4929 = vst [vmem:[%s4817 + $0x1b8] sm:$0xff] %v4928
                  %v4930 = vld [vmem:[%s4816 + $0x1c0] sm:$0xff]
                  %4931 = vst [vmem:[%s4817 + $0x1c0] sm:$0xff] %v4930
                  %v4932 = vld [vmem:[%s4816 + $0x1c8] sm:$0xff]
                  %4933 = vst [vmem:[%s4817 + $0x1c8] sm:$0xff] %v4932
                  %v4934 = vld [vmem:[%s4816 + $0x1d0] sm:$0xff]
                  %4935 = vst [vmem:[%s4817 + $0x1d0] sm:$0xff] %v4934
                  %v4936 = vld [vmem:[%s4816 + $0x1d8] sm:$0xff]
                  %4937 = vst [vmem:[%s4817 + $0x1d8] sm:$0xff] %v4936
                  %v4938 = vld [vmem:[%s4816 + $0x1e0] sm:$0xff]
                  %4939 = vst [vmem:[%s4817 + $0x1e0] sm:$0xff] %v4938
                  %v4940 = vld [vmem:[%s4816 + $0x1e8] sm:$0xff]
                  %4941 = vst [vmem:[%s4817 + $0x1e8] sm:$0xff] %v4940
                  %v4942 = vld [vmem:[%s4816 + $0x1f0] sm:$0xff]
                  %4943 = vst [vmem:[%s4817 + $0x1f0] sm:$0xff] %v4942
                  %s4944 = sadd.s32 1, %s4815
                  %p4945 = scmp.ge.s32.totalorder %s4944, %s4807
                  %s4946 = scalar_select %p4945, 0, %s4944
                  %s4947 = smul.u32 %s4946, 504
                  %s4948 = smul.u32 %s4946, 504
                  %s4949 = scalar_lea.vmem %s4604, %s4947 [#allocation2]
                  %s4950 = scalar_lea.vmem %s4627, %s4948
                $region87: #{ae1d_forward.1} parent=81 // loop_footer
                  %s4812 = sadd.s32 %s4810, 1
                $region88: #{ae1d_forward.1} parent=81 // loop_footer_branch
                  %4809 = sbr.rel target = $region84
                $region89: #{ae1d_forward.1} parent=81 // loop_exit
                  _
                %s4951 = sdiv.u32.pop %s4623, 63
                %s4952 = srem.u32.pop %s4623, 63
                %s4953 = smul.u32 %s4951, 63
                %s4954 = smul.u32 8, %s4953
                %s4955 = scalar_lea.vmem %s4604, %s4954 [#allocation2]
                %s4956 = smul.u32 8, %s4953
                %s4957 = scalar_lea.vmem %s4627, %s4956
                // While loop
                $region90: #{ae1d_forward.1} parent=81 // loop_pre_header
                  _
                $region91: #{ae1d_forward.1} parent=81 // loop_header
                  %s4959 = sphi 0, %s4961
                  %p4960 = scmp.ge.s32.totalorder %s4959, %s4952
                  %s4964 = sphi 0, %s4971
                  %s4965 = sphi %s4955, %s4974
                  %s4966 = sphi %s4957, %s4975
                $region92: #{ae1d_forward.1} parent=81 // loop_header_branch
                  %4963 = sbr.rel (%p4960) target = $region96
                $region93: #{ae1d_forward.1} parent=81 // loop_body
                  %v4967 = vld [vmem:[%s4965] sm:$0xff]
                  %4968 = vst [vmem:[%s4966] sm:$0xff] %v4967
                  %s4969 = sadd.s32 1, %s4964
                  %p4970 = scmp.ge.s32.totalorder %s4969, %s4952
                  %s4971 = scalar_select %p4970, 0, %s4969
                  %s4972 = smul.u32 %s4971, 8
                  %s4973 = smul.u32 %s4971, 8
                  %s4974 = scalar_lea.vmem %s4955, %s4972 [#allocation2]
                  %s4975 = scalar_lea.vmem %s4957, %s4973
                $region94: #{ae1d_forward.1} parent=81 // loop_footer
                  %s4961 = sadd.s32 %s4959, 1
                $region95: #{ae1d_forward.1} parent=81 // loop_footer_branch
                  %4958 = sbr.rel target = $region91
                $region96: #{ae1d_forward.1} parent=81 // loop_exit
                  _
              $region82: #{ae1d_forward.1} parent=59 // pred_fallthru
                _
              // Predicated region
              $region97: #{ae1d_forward.1} parent=59 // pred_check
                _
              $region98: #{ae1d_forward.1} parent=59 // pred_check_branch
                %4977 = sbr.rel target = $region100
              $region99: #{ae1d_forward.1} parent=59 // pred_region
                _
              $region100: #{ae1d_forward.1} parent=59 // pred_fallthru
                _
            $region60: #{ae1d_forward.1} parent=55 // pred_fallthru
              _
            // Predicated region
            $region61: #{ae1d_forward.1} parent=55 // pred_check
              _
            $region62: #{ae1d_forward.1} parent=55 // pred_check_branch
              %4634 = sbr.rel target = $region64
            $region63: #{ae1d_forward.1} parent=55 // pred_region
              %s4636 = sdiv.u32.pop %s4623, 63
              %s4637 = srem.u32.pop %s4623, 63
              // While loop
              $region65: #{ae1d_forward.1} parent=63 // loop_pre_header
                _
              $region66: #{ae1d_forward.1} parent=63 // loop_header
                %s4639 = sphi 0, %s4641
                %p4640 = scmp.ge.s32.totalorder %s4639, %s4636
                %s4644 = sphi 0, %s4775
                %s4645 = sphi %s4604, %s4778
                %s4646 = sphi %s4627, %s4779
              $region67: #{ae1d_forward.1} parent=63 // loop_header_branch
                %4643 = sbr.rel (%p4640) target = $region71
              $region68: #{ae1d_forward.1} parent=63 // loop_body
                %v4647 = vld [vmem:[%s4645] sm:$0xff]
                %4648 = vst [vmem:[%s4646] sm:$0xff] %v4647
                %v4649 = vld [vmem:[%s4645 + $0x8] sm:$0xff]
                %4650 = vst [vmem:[%s4646 + $0x8] sm:$0xff] %v4649
                %v4651 = vld [vmem:[%s4645 + $0x10] sm:$0xff]
                %4652 = vst [vmem:[%s4646 + $0x10] sm:$0xff] %v4651
                %v4653 = vld [vmem:[%s4645 + $0x18] sm:$0xff]
                %4654 = vst [vmem:[%s4646 + $0x18] sm:$0xff] %v4653
                %v4655 = vld [vmem:[%s4645 + $0x20] sm:$0xff]
                %4656 = vst [vmem:[%s4646 + $0x20] sm:$0xff] %v4655
                %v4657 = vld [vmem:[%s4645 + $0x28] sm:$0xff]
                %4658 = vst [vmem:[%s4646 + $0x28] sm:$0xff] %v4657
                %v4659 = vld [vmem:[%s4645 + $0x30] sm:$0xff]
                %4660 = vst [vmem:[%s4646 + $0x30] sm:$0xff] %v4659
                %v4661 = vld [vmem:[%s4645 + $0x38] sm:$0xff]
                %4662 = vst [vmem:[%s4646 + $0x38] sm:$0xff] %v4661
                %v4663 = vld [vmem:[%s4645 + $0x40] sm:$0xff]
                %4664 = vst [vmem:[%s4646 + $0x40] sm:$0xff] %v4663
                %v4665 = vld [vmem:[%s4645 + $0x48] sm:$0xff]
                %4666 = vst [vmem:[%s4646 + $0x48] sm:$0xff] %v4665
                %v4667 = vld [vmem:[%s4645 + $0x50] sm:$0xff]
                %4668 = vst [vmem:[%s4646 + $0x50] sm:$0xff] %v4667
                %v4669 = vld [vmem:[%s4645 + $0x58] sm:$0xff]
                %4670 = vst [vmem:[%s4646 + $0x58] sm:$0xff] %v4669
                %v4671 = vld [vmem:[%s4645 + $0x60] sm:$0xff]
                %4672 = vst [vmem:[%s4646 + $0x60] sm:$0xff] %v4671
                %v4673 = vld [vmem:[%s4645 + $0x68] sm:$0xff]
                %4674 = vst [vmem:[%s4646 + $0x68] sm:$0xff] %v4673
                %v4675 = vld [vmem:[%s4645 + $0x70] sm:$0xff]
                %4676 = vst [vmem:[%s4646 + $0x70] sm:$0xff] %v4675
                %v4677 = vld [vmem:[%s4645 + $0x78] sm:$0xff]
                %4678 = vst [vmem:[%s4646 + $0x78] sm:$0xff] %v4677
                %v4679 = vld [vmem:[%s4645 + $0x80] sm:$0xff]
                %4680 = vst [vmem:[%s4646 + $0x80] sm:$0xff] %v4679
                %v4681 = vld [vmem:[%s4645 + $0x88] sm:$0xff]
                %4682 = vst [vmem:[%s4646 + $0x88] sm:$0xff] %v4681
                %v4683 = vld [vmem:[%s4645 + $0x90] sm:$0xff]
                %4684 = vst [vmem:[%s4646 + $0x90] sm:$0xff] %v4683
                %v4685 = vld [vmem:[%s4645 + $0x98] sm:$0xff]
                %4686 = vst [vmem:[%s4646 + $0x98] sm:$0xff] %v4685
                %v4687 = vld [vmem:[%s4645 + $0xa0] sm:$0xff]
                %4688 = vst [vmem:[%s4646 + $0xa0] sm:$0xff] %v4687
                %v4689 = vld [vmem:[%s4645 + $0xa8] sm:$0xff]
                %4690 = vst [vmem:[%s4646 + $0xa8] sm:$0xff] %v4689
                %v4691 = vld [vmem:[%s4645 + $0xb0] sm:$0xff]
                %4692 = vst [vmem:[%s4646 + $0xb0] sm:$0xff] %v4691
                %v4693 = vld [vmem:[%s4645 + $0xb8] sm:$0xff]
                %4694 = vst [vmem:[%s4646 + $0xb8] sm:$0xff] %v4693
                %v4695 = vld [vmem:[%s4645 + $0xc0] sm:$0xff]
                %4696 = vst [vmem:[%s4646 + $0xc0] sm:$0xff] %v4695
                %v4697 = vld [vmem:[%s4645 + $0xc8] sm:$0xff]
                %4698 = vst [vmem:[%s4646 + $0xc8] sm:$0xff] %v4697
                %v4699 = vld [vmem:[%s4645 + $0xd0] sm:$0xff]
                %4700 = vst [vmem:[%s4646 + $0xd0] sm:$0xff] %v4699
                %v4701 = vld [vmem:[%s4645 + $0xd8] sm:$0xff]
                %4702 = vst [vmem:[%s4646 + $0xd8] sm:$0xff] %v4701
                %v4703 = vld [vmem:[%s4645 + $0xe0] sm:$0xff]
                %4704 = vst [vmem:[%s4646 + $0xe0] sm:$0xff] %v4703
                %v4705 = vld [vmem:[%s4645 + $0xe8] sm:$0xff]
                %4706 = vst [vmem:[%s4646 + $0xe8] sm:$0xff] %v4705
                %v4707 = vld [vmem:[%s4645 + $0xf0] sm:$0xff]
                %4708 = vst [vmem:[%s4646 + $0xf0] sm:$0xff] %v4707
                %v4709 = vld [vmem:[%s4645 + $0xf8] sm:$0xff]
                %4710 = vst [vmem:[%s4646 + $0xf8] sm:$0xff] %v4709
                %v4711 = vld [vmem:[%s4645 + $0x100] sm:$0xff]
                %4712 = vst [vmem:[%s4646 + $0x100] sm:$0xff] %v4711
                %v4713 = vld [vmem:[%s4645 + $0x108] sm:$0xff]
                %4714 = vst [vmem:[%s4646 + $0x108] sm:$0xff] %v4713
                %v4715 = vld [vmem:[%s4645 + $0x110] sm:$0xff]
                %4716 = vst [vmem:[%s4646 + $0x110] sm:$0xff] %v4715
                %v4717 = vld [vmem:[%s4645 + $0x118] sm:$0xff]
                %4718 = vst [vmem:[%s4646 + $0x118] sm:$0xff] %v4717
                %v4719 = vld [vmem:[%s4645 + $0x120] sm:$0xff]
                %4720 = vst [vmem:[%s4646 + $0x120] sm:$0xff] %v4719
                %v4721 = vld [vmem:[%s4645 + $0x128] sm:$0xff]
                %4722 = vst [vmem:[%s4646 + $0x128] sm:$0xff] %v4721
                %v4723 = vld [vmem:[%s4645 + $0x130] sm:$0xff]
                %4724 = vst [vmem:[%s4646 + $0x130] sm:$0xff] %v4723
                %v4725 = vld [vmem:[%s4645 + $0x138] sm:$0xff]
                %4726 = vst [vmem:[%s4646 + $0x138] sm:$0xff] %v4725
                %v4727 = vld [vmem:[%s4645 + $0x140] sm:$0xff]
                %4728 = vst [vmem:[%s4646 + $0x140] sm:$0xff] %v4727
                %v4729 = vld [vmem:[%s4645 + $0x148] sm:$0xff]
                %4730 = vst [vmem:[%s4646 + $0x148] sm:$0xff] %v4729
                %v4731 = vld [vmem:[%s4645 + $0x150] sm:$0xff]
                %4732 = vst [vmem:[%s4646 + $0x150] sm:$0xff] %v4731
                %v4733 = vld [vmem:[%s4645 + $0x158] sm:$0xff]
                %4734 = vst [vmem:[%s4646 + $0x158] sm:$0xff] %v4733
                %v4735 = vld [vmem:[%s4645 + $0x160] sm:$0xff]
                %4736 = vst [vmem:[%s4646 + $0x160] sm:$0xff] %v4735
                %v4737 = vld [vmem:[%s4645 + $0x168] sm:$0xff]
                %4738 = vst [vmem:[%s4646 + $0x168] sm:$0xff] %v4737
                %v4739 = vld [vmem:[%s4645 + $0x170] sm:$0xff]
                %4740 = vst [vmem:[%s4646 + $0x170] sm:$0xff] %v4739
                %v4741 = vld [vmem:[%s4645 + $0x178] sm:$0xff]
                %4742 = vst [vmem:[%s4646 + $0x178] sm:$0xff] %v4741
                %v4743 = vld [vmem:[%s4645 + $0x180] sm:$0xff]
                %4744 = vst [vmem:[%s4646 + $0x180] sm:$0xff] %v4743
                %v4745 = vld [vmem:[%s4645 + $0x188] sm:$0xff]
                %4746 = vst [vmem:[%s4646 + $0x188] sm:$0xff] %v4745
                %v4747 = vld [vmem:[%s4645 + $0x190] sm:$0xff]
                %4748 = vst [vmem:[%s4646 + $0x190] sm:$0xff] %v4747
                %v4749 = vld [vmem:[%s4645 + $0x198] sm:$0xff]
                %4750 = vst [vmem:[%s4646 + $0x198] sm:$0xff] %v4749
                %v4751 = vld [vmem:[%s4645 + $0x1a0] sm:$0xff]
                %4752 = vst [vmem:[%s4646 + $0x1a0] sm:$0xff] %v4751
                %v4753 = vld [vmem:[%s4645 + $0x1a8] sm:$0xff]
                %4754 = vst [vmem:[%s4646 + $0x1a8] sm:$0xff] %v4753
                %v4755 = vld [vmem:[%s4645 + $0x1b0] sm:$0xff]
                %4756 = vst [vmem:[%s4646 + $0x1b0] sm:$0xff] %v4755
                %v4757 = vld [vmem:[%s4645 + $0x1b8] sm:$0xff]
                %4758 = vst [vmem:[%s4646 + $0x1b8] sm:$0xff] %v4757
                %v4759 = vld [vmem:[%s4645 + $0x1c0] sm:$0xff]
                %4760 = vst [vmem:[%s4646 + $0x1c0] sm:$0xff] %v4759
                %v4761 = vld [vmem:[%s4645 + $0x1c8] sm:$0xff]
                %4762 = vst [vmem:[%s4646 + $0x1c8] sm:$0xff] %v4761
                %v4763 = vld [vmem:[%s4645 + $0x1d0] sm:$0xff]
                %4764 = vst [vmem:[%s4646 + $0x1d0] sm:$0xff] %v4763
                %v4765 = vld [vmem:[%s4645 + $0x1d8] sm:$0xff]
                %4766 = vst [vmem:[%s4646 + $0x1d8] sm:$0xff] %v4765
                %v4767 = vld [vmem:[%s4645 + $0x1e0] sm:$0xff]
                %4768 = vst [vmem:[%s4646 + $0x1e0] sm:$0xff] %v4767
                %v4769 = vld [vmem:[%s4645 + $0x1e8] sm:$0xff]
                %4770 = vst [vmem:[%s4646 + $0x1e8] sm:$0xff] %v4769
                %v4771 = vld [vmem:[%s4645 + $0x1f0] sm:$0xff]
                %4772 = vst [vmem:[%s4646 + $0x1f0] sm:$0xff] %v4771
                %s4773 = sadd.s32 1, %s4644
                %p4774 = scmp.ge.s32.totalorder %s4773, %s4636
                %s4775 = scalar_select %p4774, 0, %s4773
                %s4776 = smul.u32 %s4775, 504
                %s4777 = smul.u32 %s4775, 504
                %s4778 = scalar_lea.vmem %s4604, %s4776 [#allocation2]
                %s4779 = scalar_lea.vmem %s4627, %s4777
              $region69: #{ae1d_forward.1} parent=63 // loop_footer
                %s4641 = sadd.s32 %s4639, 1
              $region70: #{ae1d_forward.1} parent=63 // loop_footer_branch
                %4638 = sbr.rel target = $region66
              $region71: #{ae1d_forward.1} parent=63 // loop_exit
                _
              %s4780 = sdiv.u32.pop %s4623, 63
              %s4781 = srem.u32.pop %s4623, 63
              %s4782 = smul.u32 %s4780, 63
              %s4783 = smul.u32 8, %s4782
              %s4784 = scalar_lea.vmem %s4604, %s4783 [#allocation2]
              %s4785 = smul.u32 8, %s4782
              %s4786 = scalar_lea.vmem %s4627, %s4785
              // While loop
              $region72: #{ae1d_forward.1} parent=63 // loop_pre_header
                _
              $region73: #{ae1d_forward.1} parent=63 // loop_header
                %s4788 = sphi 0, %s4790
                %p4789 = scmp.ge.s32.totalorder %s4788, %s4781
                %s4793 = sphi 0, %s4800
                %s4794 = sphi %s4784, %s4803
                %s4795 = sphi %s4786, %s4804
              $region74: #{ae1d_forward.1} parent=63 // loop_header_branch
                %4792 = sbr.rel (%p4789) target = $region78
              $region75: #{ae1d_forward.1} parent=63 // loop_body
                %v4796 = vld [vmem:[%s4794] sm:$0xff]
                %4797 = vst [vmem:[%s4795] sm:$0xff] %v4796
                %s4798 = sadd.s32 1, %s4793
                %p4799 = scmp.ge.s32.totalorder %s4798, %s4781
                %s4800 = scalar_select %p4799, 0, %s4798
                %s4801 = smul.u32 %s4800, 8
                %s4802 = smul.u32 %s4800, 8
                %s4803 = scalar_lea.vmem %s4784, %s4801 [#allocation2]
                %s4804 = scalar_lea.vmem %s4786, %s4802
              $region76: #{ae1d_forward.1} parent=63 // loop_footer
                %s4790 = sadd.s32 %s4788, 1
              $region77: #{ae1d_forward.1} parent=63 // loop_footer_branch
                %4787 = sbr.rel target = $region73
              $region78: #{ae1d_forward.1} parent=63 // loop_exit
                _
            $region64: #{ae1d_forward.1} parent=55 // pred_fallthru
              _
          $region56: #{ae1d_forward.1} parent=51 // pred_fallthru
            _
          %4978 = vnop
        $region52: #{ae1d_forward.1} parent=47 // pred_fallthru
          _
        // Predicated region
        $region101: #{ae1d_forward.1} parent=47 // pred_check
          %p4979 = pneg %p223
        $region102: #{ae1d_forward.1} parent=47 // pred_check_branch
          %4981 = sbr.rel (%p4979) target = $region104
        $region103: #{ae1d_forward.1} parent=47 // pred_region
          %s4982 = smul.u32 63, %s22
          %s4983 = ssub.s32 125, %s4982
          %p4984 = scmp.lt.s32.totalorder %s4983, 63
          %s4985 = scalar_select %p4984, %s4983, 63
          %s4986 = smul.u32 128, %s4985
          %p4987 = scmp.ne.s32.totalorder 0, %s4986
          %s4988 = smul.addr %s4982, 8
          %s4989 = scalar_lea.vmem %s8, %s4988
          // Predicated region
          $region105: #{ae1d_forward.1} parent=103 // pred_check
            %p4990 = pneg %p4987
          $region106: #{ae1d_forward.1} parent=103 // pred_check_branch
            %4992 = sbr.rel (%p4990) target = $region108
          $region107: #{ae1d_forward.1} parent=103 // pred_region
            // Predicated region
            $region109: #{ae1d_forward.1} parent=107 // pred_check
              _
            $region110: #{ae1d_forward.1} parent=107 // pred_check_branch
              %4994 = sbr.rel (0) target = $region112
            $region111: #{ae1d_forward.1} parent=107 // pred_region
              // Predicated region
              $region131: #{ae1d_forward.1} parent=111 // pred_check
                _
              $region132: #{ae1d_forward.1} parent=111 // pred_check_branch
                %5168 = sbr.rel (0) target = $region134
              $region133: #{ae1d_forward.1} parent=111 // pred_region
                %s5169 = sdiv.u32.pop %s4985, 63
                %s5170 = srem.u32.pop %s4985, 63
                // While loop
                $region135: #{ae1d_forward.1} parent=133 // loop_pre_header
                  _
                $region136: #{ae1d_forward.1} parent=133 // loop_header
                  %s5172 = sphi 0, %s5174
                  %p5173 = scmp.ge.s32.totalorder %s5172, %s5169
                  %s5177 = sphi 0, %s5308
                  %s5178 = sphi %s4608, %s5311
                  %s5179 = sphi %s4989, %s5312
                $region137: #{ae1d_forward.1} parent=133 // loop_header_branch
                  %5176 = sbr.rel (%p5173) target = $region141
                $region138: #{ae1d_forward.1} parent=133 // loop_body
                  %v5180 = vld [vmem:[%s5178] sm:$0xff]
                  %5181 = vst [vmem:[%s5179] sm:$0xff] %v5180
                  %v5182 = vld [vmem:[%s5178 + $0x8] sm:$0xff]
                  %5183 = vst [vmem:[%s5179 + $0x8] sm:$0xff] %v5182
                  %v5184 = vld [vmem:[%s5178 + $0x10] sm:$0xff]
                  %5185 = vst [vmem:[%s5179 + $0x10] sm:$0xff] %v5184
                  %v5186 = vld [vmem:[%s5178 + $0x18] sm:$0xff]
                  %5187 = vst [vmem:[%s5179 + $0x18] sm:$0xff] %v5186
                  %v5188 = vld [vmem:[%s5178 + $0x20] sm:$0xff]
                  %5189 = vst [vmem:[%s5179 + $0x20] sm:$0xff] %v5188
                  %v5190 = vld [vmem:[%s5178 + $0x28] sm:$0xff]
                  %5191 = vst [vmem:[%s5179 + $0x28] sm:$0xff] %v5190
                  %v5192 = vld [vmem:[%s5178 + $0x30] sm:$0xff]
                  %5193 = vst [vmem:[%s5179 + $0x30] sm:$0xff] %v5192
                  %v5194 = vld [vmem:[%s5178 + $0x38] sm:$0xff]
                  %5195 = vst [vmem:[%s5179 + $0x38] sm:$0xff] %v5194
                  %v5196 = vld [vmem:[%s5178 + $0x40] sm:$0xff]
                  %5197 = vst [vmem:[%s5179 + $0x40] sm:$0xff] %v5196
                  %v5198 = vld [vmem:[%s5178 + $0x48] sm:$0xff]
                  %5199 = vst [vmem:[%s5179 + $0x48] sm:$0xff] %v5198
                  %v5200 = vld [vmem:[%s5178 + $0x50] sm:$0xff]
                  %5201 = vst [vmem:[%s5179 + $0x50] sm:$0xff] %v5200
                  %v5202 = vld [vmem:[%s5178 + $0x58] sm:$0xff]
                  %5203 = vst [vmem:[%s5179 + $0x58] sm:$0xff] %v5202
                  %v5204 = vld [vmem:[%s5178 + $0x60] sm:$0xff]
                  %5205 = vst [vmem:[%s5179 + $0x60] sm:$0xff] %v5204
                  %v5206 = vld [vmem:[%s5178 + $0x68] sm:$0xff]
                  %5207 = vst [vmem:[%s5179 + $0x68] sm:$0xff] %v5206
                  %v5208 = vld [vmem:[%s5178 + $0x70] sm:$0xff]
                  %5209 = vst [vmem:[%s5179 + $0x70] sm:$0xff] %v5208
                  %v5210 = vld [vmem:[%s5178 + $0x78] sm:$0xff]
                  %5211 = vst [vmem:[%s5179 + $0x78] sm:$0xff] %v5210
                  %v5212 = vld [vmem:[%s5178 + $0x80] sm:$0xff]
                  %5213 = vst [vmem:[%s5179 + $0x80] sm:$0xff] %v5212
                  %v5214 = vld [vmem:[%s5178 + $0x88] sm:$0xff]
                  %5215 = vst [vmem:[%s5179 + $0x88] sm:$0xff] %v5214
                  %v5216 = vld [vmem:[%s5178 + $0x90] sm:$0xff]
                  %5217 = vst [vmem:[%s5179 + $0x90] sm:$0xff] %v5216
                  %v5218 = vld [vmem:[%s5178 + $0x98] sm:$0xff]
                  %5219 = vst [vmem:[%s5179 + $0x98] sm:$0xff] %v5218
                  %v5220 = vld [vmem:[%s5178 + $0xa0] sm:$0xff]
                  %5221 = vst [vmem:[%s5179 + $0xa0] sm:$0xff] %v5220
                  %v5222 = vld [vmem:[%s5178 + $0xa8] sm:$0xff]
                  %5223 = vst [vmem:[%s5179 + $0xa8] sm:$0xff] %v5222
                  %v5224 = vld [vmem:[%s5178 + $0xb0] sm:$0xff]
                  %5225 = vst [vmem:[%s5179 + $0xb0] sm:$0xff] %v5224
                  %v5226 = vld [vmem:[%s5178 + $0xb8] sm:$0xff]
                  %5227 = vst [vmem:[%s5179 + $0xb8] sm:$0xff] %v5226
                  %v5228 = vld [vmem:[%s5178 + $0xc0] sm:$0xff]
                  %5229 = vst [vmem:[%s5179 + $0xc0] sm:$0xff] %v5228
                  %v5230 = vld [vmem:[%s5178 + $0xc8] sm:$0xff]
                  %5231 = vst [vmem:[%s5179 + $0xc8] sm:$0xff] %v5230
                  %v5232 = vld [vmem:[%s5178 + $0xd0] sm:$0xff]
                  %5233 = vst [vmem:[%s5179 + $0xd0] sm:$0xff] %v5232
                  %v5234 = vld [vmem:[%s5178 + $0xd8] sm:$0xff]
                  %5235 = vst [vmem:[%s5179 + $0xd8] sm:$0xff] %v5234
                  %v5236 = vld [vmem:[%s5178 + $0xe0] sm:$0xff]
                  %5237 = vst [vmem:[%s5179 + $0xe0] sm:$0xff] %v5236
                  %v5238 = vld [vmem:[%s5178 + $0xe8] sm:$0xff]
                  %5239 = vst [vmem:[%s5179 + $0xe8] sm:$0xff] %v5238
                  %v5240 = vld [vmem:[%s5178 + $0xf0] sm:$0xff]
                  %5241 = vst [vmem:[%s5179 + $0xf0] sm:$0xff] %v5240
                  %v5242 = vld [vmem:[%s5178 + $0xf8] sm:$0xff]
                  %5243 = vst [vmem:[%s5179 + $0xf8] sm:$0xff] %v5242
                  %v5244 = vld [vmem:[%s5178 + $0x100] sm:$0xff]
                  %5245 = vst [vmem:[%s5179 + $0x100] sm:$0xff] %v5244
                  %v5246 = vld [vmem:[%s5178 + $0x108] sm:$0xff]
                  %5247 = vst [vmem:[%s5179 + $0x108] sm:$0xff] %v5246
                  %v5248 = vld [vmem:[%s5178 + $0x110] sm:$0xff]
                  %5249 = vst [vmem:[%s5179 + $0x110] sm:$0xff] %v5248
                  %v5250 = vld [vmem:[%s5178 + $0x118] sm:$0xff]
                  %5251 = vst [vmem:[%s5179 + $0x118] sm:$0xff] %v5250
                  %v5252 = vld [vmem:[%s5178 + $0x120] sm:$0xff]
                  %5253 = vst [vmem:[%s5179 + $0x120] sm:$0xff] %v5252
                  %v5254 = vld [vmem:[%s5178 + $0x128] sm:$0xff]
                  %5255 = vst [vmem:[%s5179 + $0x128] sm:$0xff] %v5254
                  %v5256 = vld [vmem:[%s5178 + $0x130] sm:$0xff]
                  %5257 = vst [vmem:[%s5179 + $0x130] sm:$0xff] %v5256
                  %v5258 = vld [vmem:[%s5178 + $0x138] sm:$0xff]
                  %5259 = vst [vmem:[%s5179 + $0x138] sm:$0xff] %v5258
                  %v5260 = vld [vmem:[%s5178 + $0x140] sm:$0xff]
                  %5261 = vst [vmem:[%s5179 + $0x140] sm:$0xff] %v5260
                  %v5262 = vld [vmem:[%s5178 + $0x148] sm:$0xff]
                  %5263 = vst [vmem:[%s5179 + $0x148] sm:$0xff] %v5262
                  %v5264 = vld [vmem:[%s5178 + $0x150] sm:$0xff]
                  %5265 = vst [vmem:[%s5179 + $0x150] sm:$0xff] %v5264
                  %v5266 = vld [vmem:[%s5178 + $0x158] sm:$0xff]
                  %5267 = vst [vmem:[%s5179 + $0x158] sm:$0xff] %v5266
                  %v5268 = vld [vmem:[%s5178 + $0x160] sm:$0xff]
                  %5269 = vst [vmem:[%s5179 + $0x160] sm:$0xff] %v5268
                  %v5270 = vld [vmem:[%s5178 + $0x168] sm:$0xff]
                  %5271 = vst [vmem:[%s5179 + $0x168] sm:$0xff] %v5270
                  %v5272 = vld [vmem:[%s5178 + $0x170] sm:$0xff]
                  %5273 = vst [vmem:[%s5179 + $0x170] sm:$0xff] %v5272
                  %v5274 = vld [vmem:[%s5178 + $0x178] sm:$0xff]
                  %5275 = vst [vmem:[%s5179 + $0x178] sm:$0xff] %v5274
                  %v5276 = vld [vmem:[%s5178 + $0x180] sm:$0xff]
                  %5277 = vst [vmem:[%s5179 + $0x180] sm:$0xff] %v5276
                  %v5278 = vld [vmem:[%s5178 + $0x188] sm:$0xff]
                  %5279 = vst [vmem:[%s5179 + $0x188] sm:$0xff] %v5278
                  %v5280 = vld [vmem:[%s5178 + $0x190] sm:$0xff]
                  %5281 = vst [vmem:[%s5179 + $0x190] sm:$0xff] %v5280
                  %v5282 = vld [vmem:[%s5178 + $0x198] sm:$0xff]
                  %5283 = vst [vmem:[%s5179 + $0x198] sm:$0xff] %v5282
                  %v5284 = vld [vmem:[%s5178 + $0x1a0] sm:$0xff]
                  %5285 = vst [vmem:[%s5179 + $0x1a0] sm:$0xff] %v5284
                  %v5286 = vld [vmem:[%s5178 + $0x1a8] sm:$0xff]
                  %5287 = vst [vmem:[%s5179 + $0x1a8] sm:$0xff] %v5286
                  %v5288 = vld [vmem:[%s5178 + $0x1b0] sm:$0xff]
                  %5289 = vst [vmem:[%s5179 + $0x1b0] sm:$0xff] %v5288
                  %v5290 = vld [vmem:[%s5178 + $0x1b8] sm:$0xff]
                  %5291 = vst [vmem:[%s5179 + $0x1b8] sm:$0xff] %v5290
                  %v5292 = vld [vmem:[%s5178 + $0x1c0] sm:$0xff]
                  %5293 = vst [vmem:[%s5179 + $0x1c0] sm:$0xff] %v5292
                  %v5294 = vld [vmem:[%s5178 + $0x1c8] sm:$0xff]
                  %5295 = vst [vmem:[%s5179 + $0x1c8] sm:$0xff] %v5294
                  %v5296 = vld [vmem:[%s5178 + $0x1d0] sm:$0xff]
                  %5297 = vst [vmem:[%s5179 + $0x1d0] sm:$0xff] %v5296
                  %v5298 = vld [vmem:[%s5178 + $0x1d8] sm:$0xff]
                  %5299 = vst [vmem:[%s5179 + $0x1d8] sm:$0xff] %v5298
                  %v5300 = vld [vmem:[%s5178 + $0x1e0] sm:$0xff]
                  %5301 = vst [vmem:[%s5179 + $0x1e0] sm:$0xff] %v5300
                  %v5302 = vld [vmem:[%s5178 + $0x1e8] sm:$0xff]
                  %5303 = vst [vmem:[%s5179 + $0x1e8] sm:$0xff] %v5302
                  %v5304 = vld [vmem:[%s5178 + $0x1f0] sm:$0xff]
                  %5305 = vst [vmem:[%s5179 + $0x1f0] sm:$0xff] %v5304
                  %s5306 = sadd.s32 1, %s5177
                  %p5307 = scmp.ge.s32.totalorder %s5306, %s5169
                  %s5308 = scalar_select %p5307, 0, %s5306
                  %s5309 = smul.u32 %s5308, 504
                  %s5310 = smul.u32 %s5308, 504
                  %s5311 = scalar_lea.vmem %s4608, %s5309 [#allocation3]
                  %s5312 = scalar_lea.vmem %s4989, %s5310
                $region139: #{ae1d_forward.1} parent=133 // loop_footer
                  %s5174 = sadd.s32 %s5172, 1
                $region140: #{ae1d_forward.1} parent=133 // loop_footer_branch
                  %5171 = sbr.rel target = $region136
                $region141: #{ae1d_forward.1} parent=133 // loop_exit
                  _
                %s5313 = sdiv.u32.pop %s4985, 63
                %s5314 = srem.u32.pop %s4985, 63
                %s5315 = smul.u32 %s5313, 63
                %s5316 = smul.u32 8, %s5315
                %s5317 = scalar_lea.vmem %s4608, %s5316 [#allocation3]
                %s5318 = smul.u32 8, %s5315
                %s5319 = scalar_lea.vmem %s4989, %s5318
                // While loop
                $region142: #{ae1d_forward.1} parent=133 // loop_pre_header
                  _
                $region143: #{ae1d_forward.1} parent=133 // loop_header
                  %s5321 = sphi 0, %s5323
                  %p5322 = scmp.ge.s32.totalorder %s5321, %s5314
                  %s5326 = sphi 0, %s5333
                  %s5327 = sphi %s5317, %s5336
                  %s5328 = sphi %s5319, %s5337
                $region144: #{ae1d_forward.1} parent=133 // loop_header_branch
                  %5325 = sbr.rel (%p5322) target = $region148
                $region145: #{ae1d_forward.1} parent=133 // loop_body
                  %v5329 = vld [vmem:[%s5327] sm:$0xff]
                  %5330 = vst [vmem:[%s5328] sm:$0xff] %v5329
                  %s5331 = sadd.s32 1, %s5326
                  %p5332 = scmp.ge.s32.totalorder %s5331, %s5314
                  %s5333 = scalar_select %p5332, 0, %s5331
                  %s5334 = smul.u32 %s5333, 8
                  %s5335 = smul.u32 %s5333, 8
                  %s5336 = scalar_lea.vmem %s5317, %s5334 [#allocation3]
                  %s5337 = scalar_lea.vmem %s5319, %s5335
                $region146: #{ae1d_forward.1} parent=133 // loop_footer
                  %s5323 = sadd.s32 %s5321, 1
                $region147: #{ae1d_forward.1} parent=133 // loop_footer_branch
                  %5320 = sbr.rel target = $region143
                $region148: #{ae1d_forward.1} parent=133 // loop_exit
                  _
              $region134: #{ae1d_forward.1} parent=111 // pred_fallthru
                _
              // Predicated region
              $region149: #{ae1d_forward.1} parent=111 // pred_check
                _
              $region150: #{ae1d_forward.1} parent=111 // pred_check_branch
                %5339 = sbr.rel target = $region152
              $region151: #{ae1d_forward.1} parent=111 // pred_region
                _
              $region152: #{ae1d_forward.1} parent=111 // pred_fallthru
                _
            $region112: #{ae1d_forward.1} parent=107 // pred_fallthru
              _
            // Predicated region
            $region113: #{ae1d_forward.1} parent=107 // pred_check
              _
            $region114: #{ae1d_forward.1} parent=107 // pred_check_branch
              %4996 = sbr.rel target = $region116
            $region115: #{ae1d_forward.1} parent=107 // pred_region
              %s4998 = sdiv.u32.pop %s4985, 63
              %s4999 = srem.u32.pop %s4985, 63
              // While loop
              $region117: #{ae1d_forward.1} parent=115 // loop_pre_header
                _
              $region118: #{ae1d_forward.1} parent=115 // loop_header
                %s5001 = sphi 0, %s5003
                %p5002 = scmp.ge.s32.totalorder %s5001, %s4998
                %s5006 = sphi 0, %s5137
                %s5007 = sphi %s4608, %s5140
                %s5008 = sphi %s4989, %s5141
              $region119: #{ae1d_forward.1} parent=115 // loop_header_branch
                %5005 = sbr.rel (%p5002) target = $region123
              $region120: #{ae1d_forward.1} parent=115 // loop_body
                %v5009 = vld [vmem:[%s5007] sm:$0xff]
                %5010 = vst [vmem:[%s5008] sm:$0xff] %v5009
                %v5011 = vld [vmem:[%s5007 + $0x8] sm:$0xff]
                %5012 = vst [vmem:[%s5008 + $0x8] sm:$0xff] %v5011
                %v5013 = vld [vmem:[%s5007 + $0x10] sm:$0xff]
                %5014 = vst [vmem:[%s5008 + $0x10] sm:$0xff] %v5013
                %v5015 = vld [vmem:[%s5007 + $0x18] sm:$0xff]
                %5016 = vst [vmem:[%s5008 + $0x18] sm:$0xff] %v5015
                %v5017 = vld [vmem:[%s5007 + $0x20] sm:$0xff]
                %5018 = vst [vmem:[%s5008 + $0x20] sm:$0xff] %v5017
                %v5019 = vld [vmem:[%s5007 + $0x28] sm:$0xff]
                %5020 = vst [vmem:[%s5008 + $0x28] sm:$0xff] %v5019
                %v5021 = vld [vmem:[%s5007 + $0x30] sm:$0xff]
                %5022 = vst [vmem:[%s5008 + $0x30] sm:$0xff] %v5021
                %v5023 = vld [vmem:[%s5007 + $0x38] sm:$0xff]
                %5024 = vst [vmem:[%s5008 + $0x38] sm:$0xff] %v5023
                %v5025 = vld [vmem:[%s5007 + $0x40] sm:$0xff]
                %5026 = vst [vmem:[%s5008 + $0x40] sm:$0xff] %v5025
                %v5027 = vld [vmem:[%s5007 + $0x48] sm:$0xff]
                %5028 = vst [vmem:[%s5008 + $0x48] sm:$0xff] %v5027
                %v5029 = vld [vmem:[%s5007 + $0x50] sm:$0xff]
                %5030 = vst [vmem:[%s5008 + $0x50] sm:$0xff] %v5029
                %v5031 = vld [vmem:[%s5007 + $0x58] sm:$0xff]
                %5032 = vst [vmem:[%s5008 + $0x58] sm:$0xff] %v5031
                %v5033 = vld [vmem:[%s5007 + $0x60] sm:$0xff]
                %5034 = vst [vmem:[%s5008 + $0x60] sm:$0xff] %v5033
                %v5035 = vld [vmem:[%s5007 + $0x68] sm:$0xff]
                %5036 = vst [vmem:[%s5008 + $0x68] sm:$0xff] %v5035
                %v5037 = vld [vmem:[%s5007 + $0x70] sm:$0xff]
                %5038 = vst [vmem:[%s5008 + $0x70] sm:$0xff] %v5037
                %v5039 = vld [vmem:[%s5007 + $0x78] sm:$0xff]
                %5040 = vst [vmem:[%s5008 + $0x78] sm:$0xff] %v5039
                %v5041 = vld [vmem:[%s5007 + $0x80] sm:$0xff]
                %5042 = vst [vmem:[%s5008 + $0x80] sm:$0xff] %v5041
                %v5043 = vld [vmem:[%s5007 + $0x88] sm:$0xff]
                %5044 = vst [vmem:[%s5008 + $0x88] sm:$0xff] %v5043
                %v5045 = vld [vmem:[%s5007 + $0x90] sm:$0xff]
                %5046 = vst [vmem:[%s5008 + $0x90] sm:$0xff] %v5045
                %v5047 = vld [vmem:[%s5007 + $0x98] sm:$0xff]
                %5048 = vst [vmem:[%s5008 + $0x98] sm:$0xff] %v5047
                %v5049 = vld [vmem:[%s5007 + $0xa0] sm:$0xff]
                %5050 = vst [vmem:[%s5008 + $0xa0] sm:$0xff] %v5049
                %v5051 = vld [vmem:[%s5007 + $0xa8] sm:$0xff]
                %5052 = vst [vmem:[%s5008 + $0xa8] sm:$0xff] %v5051
                %v5053 = vld [vmem:[%s5007 + $0xb0] sm:$0xff]
                %5054 = vst [vmem:[%s5008 + $0xb0] sm:$0xff] %v5053
                %v5055 = vld [vmem:[%s5007 + $0xb8] sm:$0xff]
                %5056 = vst [vmem:[%s5008 + $0xb8] sm:$0xff] %v5055
                %v5057 = vld [vmem:[%s5007 + $0xc0] sm:$0xff]
                %5058 = vst [vmem:[%s5008 + $0xc0] sm:$0xff] %v5057
                %v5059 = vld [vmem:[%s5007 + $0xc8] sm:$0xff]
                %5060 = vst [vmem:[%s5008 + $0xc8] sm:$0xff] %v5059
                %v5061 = vld [vmem:[%s5007 + $0xd0] sm:$0xff]
                %5062 = vst [vmem:[%s5008 + $0xd0] sm:$0xff] %v5061
                %v5063 = vld [vmem:[%s5007 + $0xd8] sm:$0xff]
                %5064 = vst [vmem:[%s5008 + $0xd8] sm:$0xff] %v5063
                %v5065 = vld [vmem:[%s5007 + $0xe0] sm:$0xff]
                %5066 = vst [vmem:[%s5008 + $0xe0] sm:$0xff] %v5065
                %v5067 = vld [vmem:[%s5007 + $0xe8] sm:$0xff]
                %5068 = vst [vmem:[%s5008 + $0xe8] sm:$0xff] %v5067
                %v5069 = vld [vmem:[%s5007 + $0xf0] sm:$0xff]
                %5070 = vst [vmem:[%s5008 + $0xf0] sm:$0xff] %v5069
                %v5071 = vld [vmem:[%s5007 + $0xf8] sm:$0xff]
                %5072 = vst [vmem:[%s5008 + $0xf8] sm:$0xff] %v5071
                %v5073 = vld [vmem:[%s5007 + $0x100] sm:$0xff]
                %5074 = vst [vmem:[%s5008 + $0x100] sm:$0xff] %v5073
                %v5075 = vld [vmem:[%s5007 + $0x108] sm:$0xff]
                %5076 = vst [vmem:[%s5008 + $0x108] sm:$0xff] %v5075
                %v5077 = vld [vmem:[%s5007 + $0x110] sm:$0xff]
                %5078 = vst [vmem:[%s5008 + $0x110] sm:$0xff] %v5077
                %v5079 = vld [vmem:[%s5007 + $0x118] sm:$0xff]
                %5080 = vst [vmem:[%s5008 + $0x118] sm:$0xff] %v5079
                %v5081 = vld [vmem:[%s5007 + $0x120] sm:$0xff]
                %5082 = vst [vmem:[%s5008 + $0x120] sm:$0xff] %v5081
                %v5083 = vld [vmem:[%s5007 + $0x128] sm:$0xff]
                %5084 = vst [vmem:[%s5008 + $0x128] sm:$0xff] %v5083
                %v5085 = vld [vmem:[%s5007 + $0x130] sm:$0xff]
                %5086 = vst [vmem:[%s5008 + $0x130] sm:$0xff] %v5085
                %v5087 = vld [vmem:[%s5007 + $0x138] sm:$0xff]
                %5088 = vst [vmem:[%s5008 + $0x138] sm:$0xff] %v5087
                %v5089 = vld [vmem:[%s5007 + $0x140] sm:$0xff]
                %5090 = vst [vmem:[%s5008 + $0x140] sm:$0xff] %v5089
                %v5091 = vld [vmem:[%s5007 + $0x148] sm:$0xff]
                %5092 = vst [vmem:[%s5008 + $0x148] sm:$0xff] %v5091
                %v5093 = vld [vmem:[%s5007 + $0x150] sm:$0xff]
                %5094 = vst [vmem:[%s5008 + $0x150] sm:$0xff] %v5093
                %v5095 = vld [vmem:[%s5007 + $0x158] sm:$0xff]
                %5096 = vst [vmem:[%s5008 + $0x158] sm:$0xff] %v5095
                %v5097 = vld [vmem:[%s5007 + $0x160] sm:$0xff]
                %5098 = vst [vmem:[%s5008 + $0x160] sm:$0xff] %v5097
                %v5099 = vld [vmem:[%s5007 + $0x168] sm:$0xff]
                %5100 = vst [vmem:[%s5008 + $0x168] sm:$0xff] %v5099
                %v5101 = vld [vmem:[%s5007 + $0x170] sm:$0xff]
                %5102 = vst [vmem:[%s5008 + $0x170] sm:$0xff] %v5101
                %v5103 = vld [vmem:[%s5007 + $0x178] sm:$0xff]
                %5104 = vst [vmem:[%s5008 + $0x178] sm:$0xff] %v5103
                %v5105 = vld [vmem:[%s5007 + $0x180] sm:$0xff]
                %5106 = vst [vmem:[%s5008 + $0x180] sm:$0xff] %v5105
                %v5107 = vld [vmem:[%s5007 + $0x188] sm:$0xff]
                %5108 = vst [vmem:[%s5008 + $0x188] sm:$0xff] %v5107
                %v5109 = vld [vmem:[%s5007 + $0x190] sm:$0xff]
                %5110 = vst [vmem:[%s5008 + $0x190] sm:$0xff] %v5109
                %v5111 = vld [vmem:[%s5007 + $0x198] sm:$0xff]
                %5112 = vst [vmem:[%s5008 + $0x198] sm:$0xff] %v5111
                %v5113 = vld [vmem:[%s5007 + $0x1a0] sm:$0xff]
                %5114 = vst [vmem:[%s5008 + $0x1a0] sm:$0xff] %v5113
                %v5115 = vld [vmem:[%s5007 + $0x1a8] sm:$0xff]
                %5116 = vst [vmem:[%s5008 + $0x1a8] sm:$0xff] %v5115
                %v5117 = vld [vmem:[%s5007 + $0x1b0] sm:$0xff]
                %5118 = vst [vmem:[%s5008 + $0x1b0] sm:$0xff] %v5117
                %v5119 = vld [vmem:[%s5007 + $0x1b8] sm:$0xff]
                %5120 = vst [vmem:[%s5008 + $0x1b8] sm:$0xff] %v5119
                %v5121 = vld [vmem:[%s5007 + $0x1c0] sm:$0xff]
                %5122 = vst [vmem:[%s5008 + $0x1c0] sm:$0xff] %v5121
                %v5123 = vld [vmem:[%s5007 + $0x1c8] sm:$0xff]
                %5124 = vst [vmem:[%s5008 + $0x1c8] sm:$0xff] %v5123
                %v5125 = vld [vmem:[%s5007 + $0x1d0] sm:$0xff]
                %5126 = vst [vmem:[%s5008 + $0x1d0] sm:$0xff] %v5125
                %v5127 = vld [vmem:[%s5007 + $0x1d8] sm:$0xff]
                %5128 = vst [vmem:[%s5008 + $0x1d8] sm:$0xff] %v5127
                %v5129 = vld [vmem:[%s5007 + $0x1e0] sm:$0xff]
                %5130 = vst [vmem:[%s5008 + $0x1e0] sm:$0xff] %v5129
                %v5131 = vld [vmem:[%s5007 + $0x1e8] sm:$0xff]
                %5132 = vst [vmem:[%s5008 + $0x1e8] sm:$0xff] %v5131
                %v5133 = vld [vmem:[%s5007 + $0x1f0] sm:$0xff]
                %5134 = vst [vmem:[%s5008 + $0x1f0] sm:$0xff] %v5133
                %s5135 = sadd.s32 1, %s5006
                %p5136 = scmp.ge.s32.totalorder %s5135, %s4998
                %s5137 = scalar_select %p5136, 0, %s5135
                %s5138 = smul.u32 %s5137, 504
                %s5139 = smul.u32 %s5137, 504
                %s5140 = scalar_lea.vmem %s4608, %s5138 [#allocation3]
                %s5141 = scalar_lea.vmem %s4989, %s5139
              $region121: #{ae1d_forward.1} parent=115 // loop_footer
                %s5003 = sadd.s32 %s5001, 1
              $region122: #{ae1d_forward.1} parent=115 // loop_footer_branch
                %5000 = sbr.rel target = $region118
              $region123: #{ae1d_forward.1} parent=115 // loop_exit
                _
              %s5142 = sdiv.u32.pop %s4985, 63
              %s5143 = srem.u32.pop %s4985, 63
              %s5144 = smul.u32 %s5142, 63
              %s5145 = smul.u32 8, %s5144
              %s5146 = scalar_lea.vmem %s4608, %s5145 [#allocation3]
              %s5147 = smul.u32 8, %s5144
              %s5148 = scalar_lea.vmem %s4989, %s5147
              // While loop
              $region124: #{ae1d_forward.1} parent=115 // loop_pre_header
                _
              $region125: #{ae1d_forward.1} parent=115 // loop_header
                %s5150 = sphi 0, %s5152
                %p5151 = scmp.ge.s32.totalorder %s5150, %s5143
                %s5155 = sphi 0, %s5162
                %s5156 = sphi %s5146, %s5165
                %s5157 = sphi %s5148, %s5166
              $region126: #{ae1d_forward.1} parent=115 // loop_header_branch
                %5154 = sbr.rel (%p5151) target = $region130
              $region127: #{ae1d_forward.1} parent=115 // loop_body
                %v5158 = vld [vmem:[%s5156] sm:$0xff]
                %5159 = vst [vmem:[%s5157] sm:$0xff] %v5158
                %s5160 = sadd.s32 1, %s5155
                %p5161 = scmp.ge.s32.totalorder %s5160, %s5143
                %s5162 = scalar_select %p5161, 0, %s5160
                %s5163 = smul.u32 %s5162, 8
                %s5164 = smul.u32 %s5162, 8
                %s5165 = scalar_lea.vmem %s5146, %s5163 [#allocation3]
                %s5166 = scalar_lea.vmem %s5148, %s5164
              $region128: #{ae1d_forward.1} parent=115 // loop_footer
                %s5152 = sadd.s32 %s5150, 1
              $region129: #{ae1d_forward.1} parent=115 // loop_footer_branch
                %5149 = sbr.rel target = $region125
              $region130: #{ae1d_forward.1} parent=115 // loop_exit
                _
            $region116: #{ae1d_forward.1} parent=107 // pred_fallthru
              _
          $region108: #{ae1d_forward.1} parent=103 // pred_fallthru
            _
          %5340 = vnop
        $region104: #{ae1d_forward.1} parent=47 // pred_fallthru
          _
        // Predicated region
        $region153: #{ae1d_forward.1} parent=47 // pred_check
          %p5341 = pneg %p249
        $region154: #{ae1d_forward.1} parent=47 // pred_check_branch
          %5343 = sbr.rel (%p5341) target = $region156
        $region155: #{ae1d_forward.1} parent=47 // pred_region
          %s5344 = smul.u32 63, %s22
          %s5345 = ssub.s32 125, %s5344
          %p5346 = scmp.lt.s32.totalorder %s5345, 63
          %s5347 = scalar_select %p5346, %s5345, 63
          %s5348 = smul.u32 128, %s5347
          %p5349 = scmp.ne.s32.totalorder 0, %s5348
          %s5350 = smul.addr %s5344, 8
          %s5351 = scalar_lea.vmem %s9, %s5350
          // Predicated region
          $region157: #{ae1d_forward.1} parent=155 // pred_check
            %p5352 = pneg %p5349
          $region158: #{ae1d_forward.1} parent=155 // pred_check_branch
            %5354 = sbr.rel (%p5352) target = $region160
          $region159: #{ae1d_forward.1} parent=155 // pred_region
            // Predicated region
            $region161: #{ae1d_forward.1} parent=159 // pred_check
              _
            $region162: #{ae1d_forward.1} parent=159 // pred_check_branch
              %5356 = sbr.rel (0) target = $region164
            $region163: #{ae1d_forward.1} parent=159 // pred_region
              // Predicated region
              $region183: #{ae1d_forward.1} parent=163 // pred_check
                _
              $region184: #{ae1d_forward.1} parent=163 // pred_check_branch
                %5530 = sbr.rel (0) target = $region186
              $region185: #{ae1d_forward.1} parent=163 // pred_region
                %s5531 = sdiv.u32.pop %s5347, 63
                %s5532 = srem.u32.pop %s5347, 63
                // While loop
                $region187: #{ae1d_forward.1} parent=185 // loop_pre_header
                  _
                $region188: #{ae1d_forward.1} parent=185 // loop_header
                  %s5534 = sphi 0, %s5536
                  %p5535 = scmp.ge.s32.totalorder %s5534, %s5531
                  %s5539 = sphi 0, %s5670
                  %s5540 = sphi %s4612, %s5673
                  %s5541 = sphi %s5351, %s5674
                $region189: #{ae1d_forward.1} parent=185 // loop_header_branch
                  %5538 = sbr.rel (%p5535) target = $region193
                $region190: #{ae1d_forward.1} parent=185 // loop_body
                  %v5542 = vld [vmem:[%s5540] sm:$0xff]
                  %5543 = vst [vmem:[%s5541] sm:$0xff] %v5542
                  %v5544 = vld [vmem:[%s5540 + $0x8] sm:$0xff]
                  %5545 = vst [vmem:[%s5541 + $0x8] sm:$0xff] %v5544
                  %v5546 = vld [vmem:[%s5540 + $0x10] sm:$0xff]
                  %5547 = vst [vmem:[%s5541 + $0x10] sm:$0xff] %v5546
                  %v5548 = vld [vmem:[%s5540 + $0x18] sm:$0xff]
                  %5549 = vst [vmem:[%s5541 + $0x18] sm:$0xff] %v5548
                  %v5550 = vld [vmem:[%s5540 + $0x20] sm:$0xff]
                  %5551 = vst [vmem:[%s5541 + $0x20] sm:$0xff] %v5550
                  %v5552 = vld [vmem:[%s5540 + $0x28] sm:$0xff]
                  %5553 = vst [vmem:[%s5541 + $0x28] sm:$0xff] %v5552
                  %v5554 = vld [vmem:[%s5540 + $0x30] sm:$0xff]
                  %5555 = vst [vmem:[%s5541 + $0x30] sm:$0xff] %v5554
                  %v5556 = vld [vmem:[%s5540 + $0x38] sm:$0xff]
                  %5557 = vst [vmem:[%s5541 + $0x38] sm:$0xff] %v5556
                  %v5558 = vld [vmem:[%s5540 + $0x40] sm:$0xff]
                  %5559 = vst [vmem:[%s5541 + $0x40] sm:$0xff] %v5558
                  %v5560 = vld [vmem:[%s5540 + $0x48] sm:$0xff]
                  %5561 = vst [vmem:[%s5541 + $0x48] sm:$0xff] %v5560
                  %v5562 = vld [vmem:[%s5540 + $0x50] sm:$0xff]
                  %5563 = vst [vmem:[%s5541 + $0x50] sm:$0xff] %v5562
                  %v5564 = vld [vmem:[%s5540 + $0x58] sm:$0xff]
                  %5565 = vst [vmem:[%s5541 + $0x58] sm:$0xff] %v5564
                  %v5566 = vld [vmem:[%s5540 + $0x60] sm:$0xff]
                  %5567 = vst [vmem:[%s5541 + $0x60] sm:$0xff] %v5566
                  %v5568 = vld [vmem:[%s5540 + $0x68] sm:$0xff]
                  %5569 = vst [vmem:[%s5541 + $0x68] sm:$0xff] %v5568
                  %v5570 = vld [vmem:[%s5540 + $0x70] sm:$0xff]
                  %5571 = vst [vmem:[%s5541 + $0x70] sm:$0xff] %v5570
                  %v5572 = vld [vmem:[%s5540 + $0x78] sm:$0xff]
                  %5573 = vst [vmem:[%s5541 + $0x78] sm:$0xff] %v5572
                  %v5574 = vld [vmem:[%s5540 + $0x80] sm:$0xff]
                  %5575 = vst [vmem:[%s5541 + $0x80] sm:$0xff] %v5574
                  %v5576 = vld [vmem:[%s5540 + $0x88] sm:$0xff]
                  %5577 = vst [vmem:[%s5541 + $0x88] sm:$0xff] %v5576
                  %v5578 = vld [vmem:[%s5540 + $0x90] sm:$0xff]
                  %5579 = vst [vmem:[%s5541 + $0x90] sm:$0xff] %v5578
                  %v5580 = vld [vmem:[%s5540 + $0x98] sm:$0xff]
                  %5581 = vst [vmem:[%s5541 + $0x98] sm:$0xff] %v5580
                  %v5582 = vld [vmem:[%s5540 + $0xa0] sm:$0xff]
                  %5583 = vst [vmem:[%s5541 + $0xa0] sm:$0xff] %v5582
                  %v5584 = vld [vmem:[%s5540 + $0xa8] sm:$0xff]
                  %5585 = vst [vmem:[%s5541 + $0xa8] sm:$0xff] %v5584
                  %v5586 = vld [vmem:[%s5540 + $0xb0] sm:$0xff]
                  %5587 = vst [vmem:[%s5541 + $0xb0] sm:$0xff] %v5586
                  %v5588 = vld [vmem:[%s5540 + $0xb8] sm:$0xff]
                  %5589 = vst [vmem:[%s5541 + $0xb8] sm:$0xff] %v5588
                  %v5590 = vld [vmem:[%s5540 + $0xc0] sm:$0xff]
                  %5591 = vst [vmem:[%s5541 + $0xc0] sm:$0xff] %v5590
                  %v5592 = vld [vmem:[%s5540 + $0xc8] sm:$0xff]
                  %5593 = vst [vmem:[%s5541 + $0xc8] sm:$0xff] %v5592
                  %v5594 = vld [vmem:[%s5540 + $0xd0] sm:$0xff]
                  %5595 = vst [vmem:[%s5541 + $0xd0] sm:$0xff] %v5594
                  %v5596 = vld [vmem:[%s5540 + $0xd8] sm:$0xff]
                  %5597 = vst [vmem:[%s5541 + $0xd8] sm:$0xff] %v5596
                  %v5598 = vld [vmem:[%s5540 + $0xe0] sm:$0xff]
                  %5599 = vst [vmem:[%s5541 + $0xe0] sm:$0xff] %v5598
                  %v5600 = vld [vmem:[%s5540 + $0xe8] sm:$0xff]
                  %5601 = vst [vmem:[%s5541 + $0xe8] sm:$0xff] %v5600
                  %v5602 = vld [vmem:[%s5540 + $0xf0] sm:$0xff]
                  %5603 = vst [vmem:[%s5541 + $0xf0] sm:$0xff] %v5602
                  %v5604 = vld [vmem:[%s5540 + $0xf8] sm:$0xff]
                  %5605 = vst [vmem:[%s5541 + $0xf8] sm:$0xff] %v5604
                  %v5606 = vld [vmem:[%s5540 + $0x100] sm:$0xff]
                  %5607 = vst [vmem:[%s5541 + $0x100] sm:$0xff] %v5606
                  %v5608 = vld [vmem:[%s5540 + $0x108] sm:$0xff]
                  %5609 = vst [vmem:[%s5541 + $0x108] sm:$0xff] %v5608
                  %v5610 = vld [vmem:[%s5540 + $0x110] sm:$0xff]
                  %5611 = vst [vmem:[%s5541 + $0x110] sm:$0xff] %v5610
                  %v5612 = vld [vmem:[%s5540 + $0x118] sm:$0xff]
                  %5613 = vst [vmem:[%s5541 + $0x118] sm:$0xff] %v5612
                  %v5614 = vld [vmem:[%s5540 + $0x120] sm:$0xff]
                  %5615 = vst [vmem:[%s5541 + $0x120] sm:$0xff] %v5614
                  %v5616 = vld [vmem:[%s5540 + $0x128] sm:$0xff]
                  %5617 = vst [vmem:[%s5541 + $0x128] sm:$0xff] %v5616
                  %v5618 = vld [vmem:[%s5540 + $0x130] sm:$0xff]
                  %5619 = vst [vmem:[%s5541 + $0x130] sm:$0xff] %v5618
                  %v5620 = vld [vmem:[%s5540 + $0x138] sm:$0xff]
                  %5621 = vst [vmem:[%s5541 + $0x138] sm:$0xff] %v5620
                  %v5622 = vld [vmem:[%s5540 + $0x140] sm:$0xff]
                  %5623 = vst [vmem:[%s5541 + $0x140] sm:$0xff] %v5622
                  %v5624 = vld [vmem:[%s5540 + $0x148] sm:$0xff]
                  %5625 = vst [vmem:[%s5541 + $0x148] sm:$0xff] %v5624
                  %v5626 = vld [vmem:[%s5540 + $0x150] sm:$0xff]
                  %5627 = vst [vmem:[%s5541 + $0x150] sm:$0xff] %v5626
                  %v5628 = vld [vmem:[%s5540 + $0x158] sm:$0xff]
                  %5629 = vst [vmem:[%s5541 + $0x158] sm:$0xff] %v5628
                  %v5630 = vld [vmem:[%s5540 + $0x160] sm:$0xff]
                  %5631 = vst [vmem:[%s5541 + $0x160] sm:$0xff] %v5630
                  %v5632 = vld [vmem:[%s5540 + $0x168] sm:$0xff]
                  %5633 = vst [vmem:[%s5541 + $0x168] sm:$0xff] %v5632
                  %v5634 = vld [vmem:[%s5540 + $0x170] sm:$0xff]
                  %5635 = vst [vmem:[%s5541 + $0x170] sm:$0xff] %v5634
                  %v5636 = vld [vmem:[%s5540 + $0x178] sm:$0xff]
                  %5637 = vst [vmem:[%s5541 + $0x178] sm:$0xff] %v5636
                  %v5638 = vld [vmem:[%s5540 + $0x180] sm:$0xff]
                  %5639 = vst [vmem:[%s5541 + $0x180] sm:$0xff] %v5638
                  %v5640 = vld [vmem:[%s5540 + $0x188] sm:$0xff]
                  %5641 = vst [vmem:[%s5541 + $0x188] sm:$0xff] %v5640
                  %v5642 = vld [vmem:[%s5540 + $0x190] sm:$0xff]
                  %5643 = vst [vmem:[%s5541 + $0x190] sm:$0xff] %v5642
                  %v5644 = vld [vmem:[%s5540 + $0x198] sm:$0xff]
                  %5645 = vst [vmem:[%s5541 + $0x198] sm:$0xff] %v5644
                  %v5646 = vld [vmem:[%s5540 + $0x1a0] sm:$0xff]
                  %5647 = vst [vmem:[%s5541 + $0x1a0] sm:$0xff] %v5646
                  %v5648 = vld [vmem:[%s5540 + $0x1a8] sm:$0xff]
                  %5649 = vst [vmem:[%s5541 + $0x1a8] sm:$0xff] %v5648
                  %v5650 = vld [vmem:[%s5540 + $0x1b0] sm:$0xff]
                  %5651 = vst [vmem:[%s5541 + $0x1b0] sm:$0xff] %v5650
                  %v5652 = vld [vmem:[%s5540 + $0x1b8] sm:$0xff]
                  %5653 = vst [vmem:[%s5541 + $0x1b8] sm:$0xff] %v5652
                  %v5654 = vld [vmem:[%s5540 + $0x1c0] sm:$0xff]
                  %5655 = vst [vmem:[%s5541 + $0x1c0] sm:$0xff] %v5654
                  %v5656 = vld [vmem:[%s5540 + $0x1c8] sm:$0xff]
                  %5657 = vst [vmem:[%s5541 + $0x1c8] sm:$0xff] %v5656
                  %v5658 = vld [vmem:[%s5540 + $0x1d0] sm:$0xff]
                  %5659 = vst [vmem:[%s5541 + $0x1d0] sm:$0xff] %v5658
                  %v5660 = vld [vmem:[%s5540 + $0x1d8] sm:$0xff]
                  %5661 = vst [vmem:[%s5541 + $0x1d8] sm:$0xff] %v5660
                  %v5662 = vld [vmem:[%s5540 + $0x1e0] sm:$0xff]
                  %5663 = vst [vmem:[%s5541 + $0x1e0] sm:$0xff] %v5662
                  %v5664 = vld [vmem:[%s5540 + $0x1e8] sm:$0xff]
                  %5665 = vst [vmem:[%s5541 + $0x1e8] sm:$0xff] %v5664
                  %v5666 = vld [vmem:[%s5540 + $0x1f0] sm:$0xff]
                  %5667 = vst [vmem:[%s5541 + $0x1f0] sm:$0xff] %v5666
                  %s5668 = sadd.s32 1, %s5539
                  %p5669 = scmp.ge.s32.totalorder %s5668, %s5531
                  %s5670 = scalar_select %p5669, 0, %s5668
                  %s5671 = smul.u32 %s5670, 504
                  %s5672 = smul.u32 %s5670, 504
                  %s5673 = scalar_lea.vmem %s4612, %s5671 [#allocation4]
                  %s5674 = scalar_lea.vmem %s5351, %s5672
                $region191: #{ae1d_forward.1} parent=185 // loop_footer
                  %s5536 = sadd.s32 %s5534, 1
                $region192: #{ae1d_forward.1} parent=185 // loop_footer_branch
                  %5533 = sbr.rel target = $region188
                $region193: #{ae1d_forward.1} parent=185 // loop_exit
                  _
                %s5675 = sdiv.u32.pop %s5347, 63
                %s5676 = srem.u32.pop %s5347, 63
                %s5677 = smul.u32 %s5675, 63
                %s5678 = smul.u32 8, %s5677
                %s5679 = scalar_lea.vmem %s4612, %s5678 [#allocation4]
                %s5680 = smul.u32 8, %s5677
                %s5681 = scalar_lea.vmem %s5351, %s5680
                // While loop
                $region194: #{ae1d_forward.1} parent=185 // loop_pre_header
                  _
                $region195: #{ae1d_forward.1} parent=185 // loop_header
                  %s5683 = sphi 0, %s5685
                  %p5684 = scmp.ge.s32.totalorder %s5683, %s5676
                  %s5688 = sphi 0, %s5695
                  %s5689 = sphi %s5679, %s5698
                  %s5690 = sphi %s5681, %s5699
                $region196: #{ae1d_forward.1} parent=185 // loop_header_branch
                  %5687 = sbr.rel (%p5684) target = $region200
                $region197: #{ae1d_forward.1} parent=185 // loop_body
                  %v5691 = vld [vmem:[%s5689] sm:$0xff]
                  %5692 = vst [vmem:[%s5690] sm:$0xff] %v5691
                  %s5693 = sadd.s32 1, %s5688
                  %p5694 = scmp.ge.s32.totalorder %s5693, %s5676
                  %s5695 = scalar_select %p5694, 0, %s5693
                  %s5696 = smul.u32 %s5695, 8
                  %s5697 = smul.u32 %s5695, 8
                  %s5698 = scalar_lea.vmem %s5679, %s5696 [#allocation4]
                  %s5699 = scalar_lea.vmem %s5681, %s5697
                $region198: #{ae1d_forward.1} parent=185 // loop_footer
                  %s5685 = sadd.s32 %s5683, 1
                $region199: #{ae1d_forward.1} parent=185 // loop_footer_branch
                  %5682 = sbr.rel target = $region195
                $region200: #{ae1d_forward.1} parent=185 // loop_exit
                  _
              $region186: #{ae1d_forward.1} parent=163 // pred_fallthru
                _
              // Predicated region
              $region201: #{ae1d_forward.1} parent=163 // pred_check
                _
              $region202: #{ae1d_forward.1} parent=163 // pred_check_branch
                %5701 = sbr.rel target = $region204
              $region203: #{ae1d_forward.1} parent=163 // pred_region
                _
              $region204: #{ae1d_forward.1} parent=163 // pred_fallthru
                _
            $region164: #{ae1d_forward.1} parent=159 // pred_fallthru
              _
            // Predicated region
            $region165: #{ae1d_forward.1} parent=159 // pred_check
              _
            $region166: #{ae1d_forward.1} parent=159 // pred_check_branch
              %5358 = sbr.rel target = $region168
            $region167: #{ae1d_forward.1} parent=159 // pred_region
              %s5360 = sdiv.u32.pop %s5347, 63
              %s5361 = srem.u32.pop %s5347, 63
              // While loop
              $region169: #{ae1d_forward.1} parent=167 // loop_pre_header
                _
              $region170: #{ae1d_forward.1} parent=167 // loop_header
                %s5363 = sphi 0, %s5365
                %p5364 = scmp.ge.s32.totalorder %s5363, %s5360
                %s5368 = sphi 0, %s5499
                %s5369 = sphi %s4612, %s5502
                %s5370 = sphi %s5351, %s5503
              $region171: #{ae1d_forward.1} parent=167 // loop_header_branch
                %5367 = sbr.rel (%p5364) target = $region175
              $region172: #{ae1d_forward.1} parent=167 // loop_body
                %v5371 = vld [vmem:[%s5369] sm:$0xff]
                %5372 = vst [vmem:[%s5370] sm:$0xff] %v5371
                %v5373 = vld [vmem:[%s5369 + $0x8] sm:$0xff]
                %5374 = vst [vmem:[%s5370 + $0x8] sm:$0xff] %v5373
                %v5375 = vld [vmem:[%s5369 + $0x10] sm:$0xff]
                %5376 = vst [vmem:[%s5370 + $0x10] sm:$0xff] %v5375
                %v5377 = vld [vmem:[%s5369 + $0x18] sm:$0xff]
                %5378 = vst [vmem:[%s5370 + $0x18] sm:$0xff] %v5377
                %v5379 = vld [vmem:[%s5369 + $0x20] sm:$0xff]
                %5380 = vst [vmem:[%s5370 + $0x20] sm:$0xff] %v5379
                %v5381 = vld [vmem:[%s5369 + $0x28] sm:$0xff]
                %5382 = vst [vmem:[%s5370 + $0x28] sm:$0xff] %v5381
                %v5383 = vld [vmem:[%s5369 + $0x30] sm:$0xff]
                %5384 = vst [vmem:[%s5370 + $0x30] sm:$0xff] %v5383
                %v5385 = vld [vmem:[%s5369 + $0x38] sm:$0xff]
                %5386 = vst [vmem:[%s5370 + $0x38] sm:$0xff] %v5385
                %v5387 = vld [vmem:[%s5369 + $0x40] sm:$0xff]
                %5388 = vst [vmem:[%s5370 + $0x40] sm:$0xff] %v5387
                %v5389 = vld [vmem:[%s5369 + $0x48] sm:$0xff]
                %5390 = vst [vmem:[%s5370 + $0x48] sm:$0xff] %v5389
                %v5391 = vld [vmem:[%s5369 + $0x50] sm:$0xff]
                %5392 = vst [vmem:[%s5370 + $0x50] sm:$0xff] %v5391
                %v5393 = vld [vmem:[%s5369 + $0x58] sm:$0xff]
                %5394 = vst [vmem:[%s5370 + $0x58] sm:$0xff] %v5393
                %v5395 = vld [vmem:[%s5369 + $0x60] sm:$0xff]
                %5396 = vst [vmem:[%s5370 + $0x60] sm:$0xff] %v5395
                %v5397 = vld [vmem:[%s5369 + $0x68] sm:$0xff]
                %5398 = vst [vmem:[%s5370 + $0x68] sm:$0xff] %v5397
                %v5399 = vld [vmem:[%s5369 + $0x70] sm:$0xff]
                %5400 = vst [vmem:[%s5370 + $0x70] sm:$0xff] %v5399
                %v5401 = vld [vmem:[%s5369 + $0x78] sm:$0xff]
                %5402 = vst [vmem:[%s5370 + $0x78] sm:$0xff] %v5401
                %v5403 = vld [vmem:[%s5369 + $0x80] sm:$0xff]
                %5404 = vst [vmem:[%s5370 + $0x80] sm:$0xff] %v5403
                %v5405 = vld [vmem:[%s5369 + $0x88] sm:$0xff]
                %5406 = vst [vmem:[%s5370 + $0x88] sm:$0xff] %v5405
                %v5407 = vld [vmem:[%s5369 + $0x90] sm:$0xff]
                %5408 = vst [vmem:[%s5370 + $0x90] sm:$0xff] %v5407
                %v5409 = vld [vmem:[%s5369 + $0x98] sm:$0xff]
                %5410 = vst [vmem:[%s5370 + $0x98] sm:$0xff] %v5409
                %v5411 = vld [vmem:[%s5369 + $0xa0] sm:$0xff]
                %5412 = vst [vmem:[%s5370 + $0xa0] sm:$0xff] %v5411
                %v5413 = vld [vmem:[%s5369 + $0xa8] sm:$0xff]
                %5414 = vst [vmem:[%s5370 + $0xa8] sm:$0xff] %v5413
                %v5415 = vld [vmem:[%s5369 + $0xb0] sm:$0xff]
                %5416 = vst [vmem:[%s5370 + $0xb0] sm:$0xff] %v5415
                %v5417 = vld [vmem:[%s5369 + $0xb8] sm:$0xff]
                %5418 = vst [vmem:[%s5370 + $0xb8] sm:$0xff] %v5417
                %v5419 = vld [vmem:[%s5369 + $0xc0] sm:$0xff]
                %5420 = vst [vmem:[%s5370 + $0xc0] sm:$0xff] %v5419
                %v5421 = vld [vmem:[%s5369 + $0xc8] sm:$0xff]
                %5422 = vst [vmem:[%s5370 + $0xc8] sm:$0xff] %v5421
                %v5423 = vld [vmem:[%s5369 + $0xd0] sm:$0xff]
                %5424 = vst [vmem:[%s5370 + $0xd0] sm:$0xff] %v5423
                %v5425 = vld [vmem:[%s5369 + $0xd8] sm:$0xff]
                %5426 = vst [vmem:[%s5370 + $0xd8] sm:$0xff] %v5425
                %v5427 = vld [vmem:[%s5369 + $0xe0] sm:$0xff]
                %5428 = vst [vmem:[%s5370 + $0xe0] sm:$0xff] %v5427
                %v5429 = vld [vmem:[%s5369 + $0xe8] sm:$0xff]
                %5430 = vst [vmem:[%s5370 + $0xe8] sm:$0xff] %v5429
                %v5431 = vld [vmem:[%s5369 + $0xf0] sm:$0xff]
                %5432 = vst [vmem:[%s5370 + $0xf0] sm:$0xff] %v5431
                %v5433 = vld [vmem:[%s5369 + $0xf8] sm:$0xff]
                %5434 = vst [vmem:[%s5370 + $0xf8] sm:$0xff] %v5433
                %v5435 = vld [vmem:[%s5369 + $0x100] sm:$0xff]
                %5436 = vst [vmem:[%s5370 + $0x100] sm:$0xff] %v5435
                %v5437 = vld [vmem:[%s5369 + $0x108] sm:$0xff]
                %5438 = vst [vmem:[%s5370 + $0x108] sm:$0xff] %v5437
                %v5439 = vld [vmem:[%s5369 + $0x110] sm:$0xff]
                %5440 = vst [vmem:[%s5370 + $0x110] sm:$0xff] %v5439
                %v5441 = vld [vmem:[%s5369 + $0x118] sm:$0xff]
                %5442 = vst [vmem:[%s5370 + $0x118] sm:$0xff] %v5441
                %v5443 = vld [vmem:[%s5369 + $0x120] sm:$0xff]
                %5444 = vst [vmem:[%s5370 + $0x120] sm:$0xff] %v5443
                %v5445 = vld [vmem:[%s5369 + $0x128] sm:$0xff]
                %5446 = vst [vmem:[%s5370 + $0x128] sm:$0xff] %v5445
                %v5447 = vld [vmem:[%s5369 + $0x130] sm:$0xff]
                %5448 = vst [vmem:[%s5370 + $0x130] sm:$0xff] %v5447
                %v5449 = vld [vmem:[%s5369 + $0x138] sm:$0xff]
                %5450 = vst [vmem:[%s5370 + $0x138] sm:$0xff] %v5449
                %v5451 = vld [vmem:[%s5369 + $0x140] sm:$0xff]
                %5452 = vst [vmem:[%s5370 + $0x140] sm:$0xff] %v5451
                %v5453 = vld [vmem:[%s5369 + $0x148] sm:$0xff]
                %5454 = vst [vmem:[%s5370 + $0x148] sm:$0xff] %v5453
                %v5455 = vld [vmem:[%s5369 + $0x150] sm:$0xff]
                %5456 = vst [vmem:[%s5370 + $0x150] sm:$0xff] %v5455
                %v5457 = vld [vmem:[%s5369 + $0x158] sm:$0xff]
                %5458 = vst [vmem:[%s5370 + $0x158] sm:$0xff] %v5457
                %v5459 = vld [vmem:[%s5369 + $0x160] sm:$0xff]
                %5460 = vst [vmem:[%s5370 + $0x160] sm:$0xff] %v5459
                %v5461 = vld [vmem:[%s5369 + $0x168] sm:$0xff]
                %5462 = vst [vmem:[%s5370 + $0x168] sm:$0xff] %v5461
                %v5463 = vld [vmem:[%s5369 + $0x170] sm:$0xff]
                %5464 = vst [vmem:[%s5370 + $0x170] sm:$0xff] %v5463
                %v5465 = vld [vmem:[%s5369 + $0x178] sm:$0xff]
                %5466 = vst [vmem:[%s5370 + $0x178] sm:$0xff] %v5465
                %v5467 = vld [vmem:[%s5369 + $0x180] sm:$0xff]
                %5468 = vst [vmem:[%s5370 + $0x180] sm:$0xff] %v5467
                %v5469 = vld [vmem:[%s5369 + $0x188] sm:$0xff]
                %5470 = vst [vmem:[%s5370 + $0x188] sm:$0xff] %v5469
                %v5471 = vld [vmem:[%s5369 + $0x190] sm:$0xff]
                %5472 = vst [vmem:[%s5370 + $0x190] sm:$0xff] %v5471
                %v5473 = vld [vmem:[%s5369 + $0x198] sm:$0xff]
                %5474 = vst [vmem:[%s5370 + $0x198] sm:$0xff] %v5473
                %v5475 = vld [vmem:[%s5369 + $0x1a0] sm:$0xff]
                %5476 = vst [vmem:[%s5370 + $0x1a0] sm:$0xff] %v5475
                %v5477 = vld [vmem:[%s5369 + $0x1a8] sm:$0xff]
                %5478 = vst [vmem:[%s5370 + $0x1a8] sm:$0xff] %v5477
                %v5479 = vld [vmem:[%s5369 + $0x1b0] sm:$0xff]
                %5480 = vst [vmem:[%s5370 + $0x1b0] sm:$0xff] %v5479
                %v5481 = vld [vmem:[%s5369 + $0x1b8] sm:$0xff]
                %5482 = vst [vmem:[%s5370 + $0x1b8] sm:$0xff] %v5481
                %v5483 = vld [vmem:[%s5369 + $0x1c0] sm:$0xff]
                %5484 = vst [vmem:[%s5370 + $0x1c0] sm:$0xff] %v5483
                %v5485 = vld [vmem:[%s5369 + $0x1c8] sm:$0xff]
                %5486 = vst [vmem:[%s5370 + $0x1c8] sm:$0xff] %v5485
                %v5487 = vld [vmem:[%s5369 + $0x1d0] sm:$0xff]
                %5488 = vst [vmem:[%s5370 + $0x1d0] sm:$0xff] %v5487
                %v5489 = vld [vmem:[%s5369 + $0x1d8] sm:$0xff]
                %5490 = vst [vmem:[%s5370 + $0x1d8] sm:$0xff] %v5489
                %v5491 = vld [vmem:[%s5369 + $0x1e0] sm:$0xff]
                %5492 = vst [vmem:[%s5370 + $0x1e0] sm:$0xff] %v5491
                %v5493 = vld [vmem:[%s5369 + $0x1e8] sm:$0xff]
                %5494 = vst [vmem:[%s5370 + $0x1e8] sm:$0xff] %v5493
                %v5495 = vld [vmem:[%s5369 + $0x1f0] sm:$0xff]
                %5496 = vst [vmem:[%s5370 + $0x1f0] sm:$0xff] %v5495
                %s5497 = sadd.s32 1, %s5368
                %p5498 = scmp.ge.s32.totalorder %s5497, %s5360
                %s5499 = scalar_select %p5498, 0, %s5497
                %s5500 = smul.u32 %s5499, 504
                %s5501 = smul.u32 %s5499, 504
                %s5502 = scalar_lea.vmem %s4612, %s5500 [#allocation4]
                %s5503 = scalar_lea.vmem %s5351, %s5501
              $region173: #{ae1d_forward.1} parent=167 // loop_footer
                %s5365 = sadd.s32 %s5363, 1
              $region174: #{ae1d_forward.1} parent=167 // loop_footer_branch
                %5362 = sbr.rel target = $region170
              $region175: #{ae1d_forward.1} parent=167 // loop_exit
                _
              %s5504 = sdiv.u32.pop %s5347, 63
              %s5505 = srem.u32.pop %s5347, 63
              %s5506 = smul.u32 %s5504, 63
              %s5507 = smul.u32 8, %s5506
              %s5508 = scalar_lea.vmem %s4612, %s5507 [#allocation4]
              %s5509 = smul.u32 8, %s5506
              %s5510 = scalar_lea.vmem %s5351, %s5509
              // While loop
              $region176: #{ae1d_forward.1} parent=167 // loop_pre_header
                _
              $region177: #{ae1d_forward.1} parent=167 // loop_header
                %s5512 = sphi 0, %s5514
                %p5513 = scmp.ge.s32.totalorder %s5512, %s5505
                %s5517 = sphi 0, %s5524
                %s5518 = sphi %s5508, %s5527
                %s5519 = sphi %s5510, %s5528
              $region178: #{ae1d_forward.1} parent=167 // loop_header_branch
                %5516 = sbr.rel (%p5513) target = $region182
              $region179: #{ae1d_forward.1} parent=167 // loop_body
                %v5520 = vld [vmem:[%s5518] sm:$0xff]
                %5521 = vst [vmem:[%s5519] sm:$0xff] %v5520
                %s5522 = sadd.s32 1, %s5517
                %p5523 = scmp.ge.s32.totalorder %s5522, %s5505
                %s5524 = scalar_select %p5523, 0, %s5522
                %s5525 = smul.u32 %s5524, 8
                %s5526 = smul.u32 %s5524, 8
                %s5527 = scalar_lea.vmem %s5508, %s5525 [#allocation4]
                %s5528 = scalar_lea.vmem %s5510, %s5526
              $region180: #{ae1d_forward.1} parent=167 // loop_footer
                %s5514 = sadd.s32 %s5512, 1
              $region181: #{ae1d_forward.1} parent=167 // loop_footer_branch
                %5511 = sbr.rel target = $region177
              $region182: #{ae1d_forward.1} parent=167 // loop_exit
                _
            $region168: #{ae1d_forward.1} parent=159 // pred_fallthru
              _
          $region160: #{ae1d_forward.1} parent=155 // pred_fallthru
            _
          %5702 = vnop
        $region156: #{ae1d_forward.1} parent=47 // pred_fallthru
          _
        // Predicated region
        $region205: #{ae1d_forward.1} parent=47 // pred_check
          %p5703 = pneg %p275
        $region206: #{ae1d_forward.1} parent=47 // pred_check_branch
          %5705 = sbr.rel (%p5703) target = $region208
        $region207: #{ae1d_forward.1} parent=47 // pred_region
          %s5706 = smul.u32 63, %s22
          %s5707 = ssub.s32 125, %s5706
          %p5708 = scmp.lt.s32.totalorder %s5707, 63
          %s5709 = scalar_select %p5708, %s5707, 63
          %s5710 = smul.u32 128, %s5709
          %p5711 = scmp.ne.s32.totalorder 0, %s5710
          %s5712 = smul.addr %s5706, 8
          %s5713 = scalar_lea.vmem %s10, %s5712
          // Predicated region
          $region209: #{ae1d_forward.1} parent=207 // pred_check
            %p5714 = pneg %p5711
          $region210: #{ae1d_forward.1} parent=207 // pred_check_branch
            %5716 = sbr.rel (%p5714) target = $region212
          $region211: #{ae1d_forward.1} parent=207 // pred_region
            // Predicated region
            $region213: #{ae1d_forward.1} parent=211 // pred_check
              _
            $region214: #{ae1d_forward.1} parent=211 // pred_check_branch
              %5718 = sbr.rel (0) target = $region216
            $region215: #{ae1d_forward.1} parent=211 // pred_region
              // Predicated region
              $region235: #{ae1d_forward.1} parent=215 // pred_check
                _
              $region236: #{ae1d_forward.1} parent=215 // pred_check_branch
                %5892 = sbr.rel (0) target = $region238
              $region237: #{ae1d_forward.1} parent=215 // pred_region
                %s5893 = sdiv.u32.pop %s5709, 63
                %s5894 = srem.u32.pop %s5709, 63
                // While loop
                $region239: #{ae1d_forward.1} parent=237 // loop_pre_header
                  _
                $region240: #{ae1d_forward.1} parent=237 // loop_header
                  %s5896 = sphi 0, %s5898
                  %p5897 = scmp.ge.s32.totalorder %s5896, %s5893
                  %s5901 = sphi 0, %s6032
                  %s5902 = sphi %s4616, %s6035
                  %s5903 = sphi %s5713, %s6036
                $region241: #{ae1d_forward.1} parent=237 // loop_header_branch
                  %5900 = sbr.rel (%p5897) target = $region245
                $region242: #{ae1d_forward.1} parent=237 // loop_body
                  %v5904 = vld [vmem:[%s5902] sm:$0xff]
                  %5905 = vst [vmem:[%s5903] sm:$0xff] %v5904
                  %v5906 = vld [vmem:[%s5902 + $0x8] sm:$0xff]
                  %5907 = vst [vmem:[%s5903 + $0x8] sm:$0xff] %v5906
                  %v5908 = vld [vmem:[%s5902 + $0x10] sm:$0xff]
                  %5909 = vst [vmem:[%s5903 + $0x10] sm:$0xff] %v5908
                  %v5910 = vld [vmem:[%s5902 + $0x18] sm:$0xff]
                  %5911 = vst [vmem:[%s5903 + $0x18] sm:$0xff] %v5910
                  %v5912 = vld [vmem:[%s5902 + $0x20] sm:$0xff]
                  %5913 = vst [vmem:[%s5903 + $0x20] sm:$0xff] %v5912
                  %v5914 = vld [vmem:[%s5902 + $0x28] sm:$0xff]
                  %5915 = vst [vmem:[%s5903 + $0x28] sm:$0xff] %v5914
                  %v5916 = vld [vmem:[%s5902 + $0x30] sm:$0xff]
                  %5917 = vst [vmem:[%s5903 + $0x30] sm:$0xff] %v5916
                  %v5918 = vld [vmem:[%s5902 + $0x38] sm:$0xff]
                  %5919 = vst [vmem:[%s5903 + $0x38] sm:$0xff] %v5918
                  %v5920 = vld [vmem:[%s5902 + $0x40] sm:$0xff]
                  %5921 = vst [vmem:[%s5903 + $0x40] sm:$0xff] %v5920
                  %v5922 = vld [vmem:[%s5902 + $0x48] sm:$0xff]
                  %5923 = vst [vmem:[%s5903 + $0x48] sm:$0xff] %v5922
                  %v5924 = vld [vmem:[%s5902 + $0x50] sm:$0xff]
                  %5925 = vst [vmem:[%s5903 + $0x50] sm:$0xff] %v5924
                  %v5926 = vld [vmem:[%s5902 + $0x58] sm:$0xff]
                  %5927 = vst [vmem:[%s5903 + $0x58] sm:$0xff] %v5926
                  %v5928 = vld [vmem:[%s5902 + $0x60] sm:$0xff]
                  %5929 = vst [vmem:[%s5903 + $0x60] sm:$0xff] %v5928
                  %v5930 = vld [vmem:[%s5902 + $0x68] sm:$0xff]
                  %5931 = vst [vmem:[%s5903 + $0x68] sm:$0xff] %v5930
                  %v5932 = vld [vmem:[%s5902 + $0x70] sm:$0xff]
                  %5933 = vst [vmem:[%s5903 + $0x70] sm:$0xff] %v5932
                  %v5934 = vld [vmem:[%s5902 + $0x78] sm:$0xff]
                  %5935 = vst [vmem:[%s5903 + $0x78] sm:$0xff] %v5934
                  %v5936 = vld [vmem:[%s5902 + $0x80] sm:$0xff]
                  %5937 = vst [vmem:[%s5903 + $0x80] sm:$0xff] %v5936
                  %v5938 = vld [vmem:[%s5902 + $0x88] sm:$0xff]
                  %5939 = vst [vmem:[%s5903 + $0x88] sm:$0xff] %v5938
                  %v5940 = vld [vmem:[%s5902 + $0x90] sm:$0xff]
                  %5941 = vst [vmem:[%s5903 + $0x90] sm:$0xff] %v5940
                  %v5942 = vld [vmem:[%s5902 + $0x98] sm:$0xff]
                  %5943 = vst [vmem:[%s5903 + $0x98] sm:$0xff] %v5942
                  %v5944 = vld [vmem:[%s5902 + $0xa0] sm:$0xff]
                  %5945 = vst [vmem:[%s5903 + $0xa0] sm:$0xff] %v5944
                  %v5946 = vld [vmem:[%s5902 + $0xa8] sm:$0xff]
                  %5947 = vst [vmem:[%s5903 + $0xa8] sm:$0xff] %v5946
                  %v5948 = vld [vmem:[%s5902 + $0xb0] sm:$0xff]
                  %5949 = vst [vmem:[%s5903 + $0xb0] sm:$0xff] %v5948
                  %v5950 = vld [vmem:[%s5902 + $0xb8] sm:$0xff]
                  %5951 = vst [vmem:[%s5903 + $0xb8] sm:$0xff] %v5950
                  %v5952 = vld [vmem:[%s5902 + $0xc0] sm:$0xff]
                  %5953 = vst [vmem:[%s5903 + $0xc0] sm:$0xff] %v5952
                  %v5954 = vld [vmem:[%s5902 + $0xc8] sm:$0xff]
                  %5955 = vst [vmem:[%s5903 + $0xc8] sm:$0xff] %v5954
                  %v5956 = vld [vmem:[%s5902 + $0xd0] sm:$0xff]
                  %5957 = vst [vmem:[%s5903 + $0xd0] sm:$0xff] %v5956
                  %v5958 = vld [vmem:[%s5902 + $0xd8] sm:$0xff]
                  %5959 = vst [vmem:[%s5903 + $0xd8] sm:$0xff] %v5958
                  %v5960 = vld [vmem:[%s5902 + $0xe0] sm:$0xff]
                  %5961 = vst [vmem:[%s5903 + $0xe0] sm:$0xff] %v5960
                  %v5962 = vld [vmem:[%s5902 + $0xe8] sm:$0xff]
                  %5963 = vst [vmem:[%s5903 + $0xe8] sm:$0xff] %v5962
                  %v5964 = vld [vmem:[%s5902 + $0xf0] sm:$0xff]
                  %5965 = vst [vmem:[%s5903 + $0xf0] sm:$0xff] %v5964
                  %v5966 = vld [vmem:[%s5902 + $0xf8] sm:$0xff]
                  %5967 = vst [vmem:[%s5903 + $0xf8] sm:$0xff] %v5966
                  %v5968 = vld [vmem:[%s5902 + $0x100] sm:$0xff]
                  %5969 = vst [vmem:[%s5903 + $0x100] sm:$0xff] %v5968
                  %v5970 = vld [vmem:[%s5902 + $0x108] sm:$0xff]
                  %5971 = vst [vmem:[%s5903 + $0x108] sm:$0xff] %v5970
                  %v5972 = vld [vmem:[%s5902 + $0x110] sm:$0xff]
                  %5973 = vst [vmem:[%s5903 + $0x110] sm:$0xff] %v5972
                  %v5974 = vld [vmem:[%s5902 + $0x118] sm:$0xff]
                  %5975 = vst [vmem:[%s5903 + $0x118] sm:$0xff] %v5974
                  %v5976 = vld [vmem:[%s5902 + $0x120] sm:$0xff]
                  %5977 = vst [vmem:[%s5903 + $0x120] sm:$0xff] %v5976
                  %v5978 = vld [vmem:[%s5902 + $0x128] sm:$0xff]
                  %5979 = vst [vmem:[%s5903 + $0x128] sm:$0xff] %v5978
                  %v5980 = vld [vmem:[%s5902 + $0x130] sm:$0xff]
                  %5981 = vst [vmem:[%s5903 + $0x130] sm:$0xff] %v5980
                  %v5982 = vld [vmem:[%s5902 + $0x138] sm:$0xff]
                  %5983 = vst [vmem:[%s5903 + $0x138] sm:$0xff] %v5982
                  %v5984 = vld [vmem:[%s5902 + $0x140] sm:$0xff]
                  %5985 = vst [vmem:[%s5903 + $0x140] sm:$0xff] %v5984
                  %v5986 = vld [vmem:[%s5902 + $0x148] sm:$0xff]
                  %5987 = vst [vmem:[%s5903 + $0x148] sm:$0xff] %v5986
                  %v5988 = vld [vmem:[%s5902 + $0x150] sm:$0xff]
                  %5989 = vst [vmem:[%s5903 + $0x150] sm:$0xff] %v5988
                  %v5990 = vld [vmem:[%s5902 + $0x158] sm:$0xff]
                  %5991 = vst [vmem:[%s5903 + $0x158] sm:$0xff] %v5990
                  %v5992 = vld [vmem:[%s5902 + $0x160] sm:$0xff]
                  %5993 = vst [vmem:[%s5903 + $0x160] sm:$0xff] %v5992
                  %v5994 = vld [vmem:[%s5902 + $0x168] sm:$0xff]
                  %5995 = vst [vmem:[%s5903 + $0x168] sm:$0xff] %v5994
                  %v5996 = vld [vmem:[%s5902 + $0x170] sm:$0xff]
                  %5997 = vst [vmem:[%s5903 + $0x170] sm:$0xff] %v5996
                  %v5998 = vld [vmem:[%s5902 + $0x178] sm:$0xff]
                  %5999 = vst [vmem:[%s5903 + $0x178] sm:$0xff] %v5998
                  %v6000 = vld [vmem:[%s5902 + $0x180] sm:$0xff]
                  %6001 = vst [vmem:[%s5903 + $0x180] sm:$0xff] %v6000
                  %v6002 = vld [vmem:[%s5902 + $0x188] sm:$0xff]
                  %6003 = vst [vmem:[%s5903 + $0x188] sm:$0xff] %v6002
                  %v6004 = vld [vmem:[%s5902 + $0x190] sm:$0xff]
                  %6005 = vst [vmem:[%s5903 + $0x190] sm:$0xff] %v6004
                  %v6006 = vld [vmem:[%s5902 + $0x198] sm:$0xff]
                  %6007 = vst [vmem:[%s5903 + $0x198] sm:$0xff] %v6006
                  %v6008 = vld [vmem:[%s5902 + $0x1a0] sm:$0xff]
                  %6009 = vst [vmem:[%s5903 + $0x1a0] sm:$0xff] %v6008
                  %v6010 = vld [vmem:[%s5902 + $0x1a8] sm:$0xff]
                  %6011 = vst [vmem:[%s5903 + $0x1a8] sm:$0xff] %v6010
                  %v6012 = vld [vmem:[%s5902 + $0x1b0] sm:$0xff]
                  %6013 = vst [vmem:[%s5903 + $0x1b0] sm:$0xff] %v6012
                  %v6014 = vld [vmem:[%s5902 + $0x1b8] sm:$0xff]
                  %6015 = vst [vmem:[%s5903 + $0x1b8] sm:$0xff] %v6014
                  %v6016 = vld [vmem:[%s5902 + $0x1c0] sm:$0xff]
                  %6017 = vst [vmem:[%s5903 + $0x1c0] sm:$0xff] %v6016
                  %v6018 = vld [vmem:[%s5902 + $0x1c8] sm:$0xff]
                  %6019 = vst [vmem:[%s5903 + $0x1c8] sm:$0xff] %v6018
                  %v6020 = vld [vmem:[%s5902 + $0x1d0] sm:$0xff]
                  %6021 = vst [vmem:[%s5903 + $0x1d0] sm:$0xff] %v6020
                  %v6022 = vld [vmem:[%s5902 + $0x1d8] sm:$0xff]
                  %6023 = vst [vmem:[%s5903 + $0x1d8] sm:$0xff] %v6022
                  %v6024 = vld [vmem:[%s5902 + $0x1e0] sm:$0xff]
                  %6025 = vst [vmem:[%s5903 + $0x1e0] sm:$0xff] %v6024
                  %v6026 = vld [vmem:[%s5902 + $0x1e8] sm:$0xff]
                  %6027 = vst [vmem:[%s5903 + $0x1e8] sm:$0xff] %v6026
                  %v6028 = vld [vmem:[%s5902 + $0x1f0] sm:$0xff]
                  %6029 = vst [vmem:[%s5903 + $0x1f0] sm:$0xff] %v6028
                  %s6030 = sadd.s32 1, %s5901
                  %p6031 = scmp.ge.s32.totalorder %s6030, %s5893
                  %s6032 = scalar_select %p6031, 0, %s6030
                  %s6033 = smul.u32 %s6032, 504
                  %s6034 = smul.u32 %s6032, 504
                  %s6035 = scalar_lea.vmem %s4616, %s6033 [#allocation5]
                  %s6036 = scalar_lea.vmem %s5713, %s6034
                $region243: #{ae1d_forward.1} parent=237 // loop_footer
                  %s5898 = sadd.s32 %s5896, 1
                $region244: #{ae1d_forward.1} parent=237 // loop_footer_branch
                  %5895 = sbr.rel target = $region240
                $region245: #{ae1d_forward.1} parent=237 // loop_exit
                  _
                %s6037 = sdiv.u32.pop %s5709, 63
                %s6038 = srem.u32.pop %s5709, 63
                %s6039 = smul.u32 %s6037, 63
                %s6040 = smul.u32 8, %s6039
                %s6041 = scalar_lea.vmem %s4616, %s6040 [#allocation5]
                %s6042 = smul.u32 8, %s6039
                %s6043 = scalar_lea.vmem %s5713, %s6042
                // While loop
                $region246: #{ae1d_forward.1} parent=237 // loop_pre_header
                  _
                $region247: #{ae1d_forward.1} parent=237 // loop_header
                  %s6045 = sphi 0, %s6047
                  %p6046 = scmp.ge.s32.totalorder %s6045, %s6038
                  %s6050 = sphi 0, %s6057
                  %s6051 = sphi %s6041, %s6060
                  %s6052 = sphi %s6043, %s6061
                $region248: #{ae1d_forward.1} parent=237 // loop_header_branch
                  %6049 = sbr.rel (%p6046) target = $region252
                $region249: #{ae1d_forward.1} parent=237 // loop_body
                  %v6053 = vld [vmem:[%s6051] sm:$0xff]
                  %6054 = vst [vmem:[%s6052] sm:$0xff] %v6053
                  %s6055 = sadd.s32 1, %s6050
                  %p6056 = scmp.ge.s32.totalorder %s6055, %s6038
                  %s6057 = scalar_select %p6056, 0, %s6055
                  %s6058 = smul.u32 %s6057, 8
                  %s6059 = smul.u32 %s6057, 8
                  %s6060 = scalar_lea.vmem %s6041, %s6058 [#allocation5]
                  %s6061 = scalar_lea.vmem %s6043, %s6059
                $region250: #{ae1d_forward.1} parent=237 // loop_footer
                  %s6047 = sadd.s32 %s6045, 1
                $region251: #{ae1d_forward.1} parent=237 // loop_footer_branch
                  %6044 = sbr.rel target = $region247
                $region252: #{ae1d_forward.1} parent=237 // loop_exit
                  _
              $region238: #{ae1d_forward.1} parent=215 // pred_fallthru
                _
              // Predicated region
              $region253: #{ae1d_forward.1} parent=215 // pred_check
                _
              $region254: #{ae1d_forward.1} parent=215 // pred_check_branch
                %6063 = sbr.rel target = $region256
              $region255: #{ae1d_forward.1} parent=215 // pred_region
                _
              $region256: #{ae1d_forward.1} parent=215 // pred_fallthru
                _
            $region216: #{ae1d_forward.1} parent=211 // pred_fallthru
              _
            // Predicated region
            $region217: #{ae1d_forward.1} parent=211 // pred_check
              _
            $region218: #{ae1d_forward.1} parent=211 // pred_check_branch
              %5720 = sbr.rel target = $region220
            $region219: #{ae1d_forward.1} parent=211 // pred_region
              %s5722 = sdiv.u32.pop %s5709, 63
              %s5723 = srem.u32.pop %s5709, 63
              // While loop
              $region221: #{ae1d_forward.1} parent=219 // loop_pre_header
                _
              $region222: #{ae1d_forward.1} parent=219 // loop_header
                %s5725 = sphi 0, %s5727
                %p5726 = scmp.ge.s32.totalorder %s5725, %s5722
                %s5730 = sphi 0, %s5861
                %s5731 = sphi %s4616, %s5864
                %s5732 = sphi %s5713, %s5865
              $region223: #{ae1d_forward.1} parent=219 // loop_header_branch
                %5729 = sbr.rel (%p5726) target = $region227
              $region224: #{ae1d_forward.1} parent=219 // loop_body
                %v5733 = vld [vmem:[%s5731] sm:$0xff]
                %5734 = vst [vmem:[%s5732] sm:$0xff] %v5733
                %v5735 = vld [vmem:[%s5731 + $0x8] sm:$0xff]
                %5736 = vst [vmem:[%s5732 + $0x8] sm:$0xff] %v5735
                %v5737 = vld [vmem:[%s5731 + $0x10] sm:$0xff]
                %5738 = vst [vmem:[%s5732 + $0x10] sm:$0xff] %v5737
                %v5739 = vld [vmem:[%s5731 + $0x18] sm:$0xff]
                %5740 = vst [vmem:[%s5732 + $0x18] sm:$0xff] %v5739
                %v5741 = vld [vmem:[%s5731 + $0x20] sm:$0xff]
                %5742 = vst [vmem:[%s5732 + $0x20] sm:$0xff] %v5741
                %v5743 = vld [vmem:[%s5731 + $0x28] sm:$0xff]
                %5744 = vst [vmem:[%s5732 + $0x28] sm:$0xff] %v5743
                %v5745 = vld [vmem:[%s5731 + $0x30] sm:$0xff]
                %5746 = vst [vmem:[%s5732 + $0x30] sm:$0xff] %v5745
                %v5747 = vld [vmem:[%s5731 + $0x38] sm:$0xff]
                %5748 = vst [vmem:[%s5732 + $0x38] sm:$0xff] %v5747
                %v5749 = vld [vmem:[%s5731 + $0x40] sm:$0xff]
                %5750 = vst [vmem:[%s5732 + $0x40] sm:$0xff] %v5749
                %v5751 = vld [vmem:[%s5731 + $0x48] sm:$0xff]
                %5752 = vst [vmem:[%s5732 + $0x48] sm:$0xff] %v5751
                %v5753 = vld [vmem:[%s5731 + $0x50] sm:$0xff]
                %5754 = vst [vmem:[%s5732 + $0x50] sm:$0xff] %v5753
                %v5755 = vld [vmem:[%s5731 + $0x58] sm:$0xff]
                %5756 = vst [vmem:[%s5732 + $0x58] sm:$0xff] %v5755
                %v5757 = vld [vmem:[%s5731 + $0x60] sm:$0xff]
                %5758 = vst [vmem:[%s5732 + $0x60] sm:$0xff] %v5757
                %v5759 = vld [vmem:[%s5731 + $0x68] sm:$0xff]
                %5760 = vst [vmem:[%s5732 + $0x68] sm:$0xff] %v5759
                %v5761 = vld [vmem:[%s5731 + $0x70] sm:$0xff]
                %5762 = vst [vmem:[%s5732 + $0x70] sm:$0xff] %v5761
                %v5763 = vld [vmem:[%s5731 + $0x78] sm:$0xff]
                %5764 = vst [vmem:[%s5732 + $0x78] sm:$0xff] %v5763
                %v5765 = vld [vmem:[%s5731 + $0x80] sm:$0xff]
                %5766 = vst [vmem:[%s5732 + $0x80] sm:$0xff] %v5765
                %v5767 = vld [vmem:[%s5731 + $0x88] sm:$0xff]
                %5768 = vst [vmem:[%s5732 + $0x88] sm:$0xff] %v5767
                %v5769 = vld [vmem:[%s5731 + $0x90] sm:$0xff]
                %5770 = vst [vmem:[%s5732 + $0x90] sm:$0xff] %v5769
                %v5771 = vld [vmem:[%s5731 + $0x98] sm:$0xff]
                %5772 = vst [vmem:[%s5732 + $0x98] sm:$0xff] %v5771
                %v5773 = vld [vmem:[%s5731 + $0xa0] sm:$0xff]
                %5774 = vst [vmem:[%s5732 + $0xa0] sm:$0xff] %v5773
                %v5775 = vld [vmem:[%s5731 + $0xa8] sm:$0xff]
                %5776 = vst [vmem:[%s5732 + $0xa8] sm:$0xff] %v5775
                %v5777 = vld [vmem:[%s5731 + $0xb0] sm:$0xff]
                %5778 = vst [vmem:[%s5732 + $0xb0] sm:$0xff] %v5777
                %v5779 = vld [vmem:[%s5731 + $0xb8] sm:$0xff]
                %5780 = vst [vmem:[%s5732 + $0xb8] sm:$0xff] %v5779
                %v5781 = vld [vmem:[%s5731 + $0xc0] sm:$0xff]
                %5782 = vst [vmem:[%s5732 + $0xc0] sm:$0xff] %v5781
                %v5783 = vld [vmem:[%s5731 + $0xc8] sm:$0xff]
                %5784 = vst [vmem:[%s5732 + $0xc8] sm:$0xff] %v5783
                %v5785 = vld [vmem:[%s5731 + $0xd0] sm:$0xff]
                %5786 = vst [vmem:[%s5732 + $0xd0] sm:$0xff] %v5785
                %v5787 = vld [vmem:[%s5731 + $0xd8] sm:$0xff]
                %5788 = vst [vmem:[%s5732 + $0xd8] sm:$0xff] %v5787
                %v5789 = vld [vmem:[%s5731 + $0xe0] sm:$0xff]
                %5790 = vst [vmem:[%s5732 + $0xe0] sm:$0xff] %v5789
                %v5791 = vld [vmem:[%s5731 + $0xe8] sm:$0xff]
                %5792 = vst [vmem:[%s5732 + $0xe8] sm:$0xff] %v5791
                %v5793 = vld [vmem:[%s5731 + $0xf0] sm:$0xff]
                %5794 = vst [vmem:[%s5732 + $0xf0] sm:$0xff] %v5793
                %v5795 = vld [vmem:[%s5731 + $0xf8] sm:$0xff]
                %5796 = vst [vmem:[%s5732 + $0xf8] sm:$0xff] %v5795
                %v5797 = vld [vmem:[%s5731 + $0x100] sm:$0xff]
                %5798 = vst [vmem:[%s5732 + $0x100] sm:$0xff] %v5797
                %v5799 = vld [vmem:[%s5731 + $0x108] sm:$0xff]
                %5800 = vst [vmem:[%s5732 + $0x108] sm:$0xff] %v5799
                %v5801 = vld [vmem:[%s5731 + $0x110] sm:$0xff]
                %5802 = vst [vmem:[%s5732 + $0x110] sm:$0xff] %v5801
                %v5803 = vld [vmem:[%s5731 + $0x118] sm:$0xff]
                %5804 = vst [vmem:[%s5732 + $0x118] sm:$0xff] %v5803
                %v5805 = vld [vmem:[%s5731 + $0x120] sm:$0xff]
                %5806 = vst [vmem:[%s5732 + $0x120] sm:$0xff] %v5805
                %v5807 = vld [vmem:[%s5731 + $0x128] sm:$0xff]
                %5808 = vst [vmem:[%s5732 + $0x128] sm:$0xff] %v5807
                %v5809 = vld [vmem:[%s5731 + $0x130] sm:$0xff]
                %5810 = vst [vmem:[%s5732 + $0x130] sm:$0xff] %v5809
                %v5811 = vld [vmem:[%s5731 + $0x138] sm:$0xff]
                %5812 = vst [vmem:[%s5732 + $0x138] sm:$0xff] %v5811
                %v5813 = vld [vmem:[%s5731 + $0x140] sm:$0xff]
                %5814 = vst [vmem:[%s5732 + $0x140] sm:$0xff] %v5813
                %v5815 = vld [vmem:[%s5731 + $0x148] sm:$0xff]
                %5816 = vst [vmem:[%s5732 + $0x148] sm:$0xff] %v5815
                %v5817 = vld [vmem:[%s5731 + $0x150] sm:$0xff]
                %5818 = vst [vmem:[%s5732 + $0x150] sm:$0xff] %v5817
                %v5819 = vld [vmem:[%s5731 + $0x158] sm:$0xff]
                %5820 = vst [vmem:[%s5732 + $0x158] sm:$0xff] %v5819
                %v5821 = vld [vmem:[%s5731 + $0x160] sm:$0xff]
                %5822 = vst [vmem:[%s5732 + $0x160] sm:$0xff] %v5821
                %v5823 = vld [vmem:[%s5731 + $0x168] sm:$0xff]
                %5824 = vst [vmem:[%s5732 + $0x168] sm:$0xff] %v5823
                %v5825 = vld [vmem:[%s5731 + $0x170] sm:$0xff]
                %5826 = vst [vmem:[%s5732 + $0x170] sm:$0xff] %v5825
                %v5827 = vld [vmem:[%s5731 + $0x178] sm:$0xff]
                %5828 = vst [vmem:[%s5732 + $0x178] sm:$0xff] %v5827
                %v5829 = vld [vmem:[%s5731 + $0x180] sm:$0xff]
                %5830 = vst [vmem:[%s5732 + $0x180] sm:$0xff] %v5829
                %v5831 = vld [vmem:[%s5731 + $0x188] sm:$0xff]
                %5832 = vst [vmem:[%s5732 + $0x188] sm:$0xff] %v5831
                %v5833 = vld [vmem:[%s5731 + $0x190] sm:$0xff]
                %5834 = vst [vmem:[%s5732 + $0x190] sm:$0xff] %v5833
                %v5835 = vld [vmem:[%s5731 + $0x198] sm:$0xff]
                %5836 = vst [vmem:[%s5732 + $0x198] sm:$0xff] %v5835
                %v5837 = vld [vmem:[%s5731 + $0x1a0] sm:$0xff]
                %5838 = vst [vmem:[%s5732 + $0x1a0] sm:$0xff] %v5837
                %v5839 = vld [vmem:[%s5731 + $0x1a8] sm:$0xff]
                %5840 = vst [vmem:[%s5732 + $0x1a8] sm:$0xff] %v5839
                %v5841 = vld [vmem:[%s5731 + $0x1b0] sm:$0xff]
                %5842 = vst [vmem:[%s5732 + $0x1b0] sm:$0xff] %v5841
                %v5843 = vld [vmem:[%s5731 + $0x1b8] sm:$0xff]
                %5844 = vst [vmem:[%s5732 + $0x1b8] sm:$0xff] %v5843
                %v5845 = vld [vmem:[%s5731 + $0x1c0] sm:$0xff]
                %5846 = vst [vmem:[%s5732 + $0x1c0] sm:$0xff] %v5845
                %v5847 = vld [vmem:[%s5731 + $0x1c8] sm:$0xff]
                %5848 = vst [vmem:[%s5732 + $0x1c8] sm:$0xff] %v5847
                %v5849 = vld [vmem:[%s5731 + $0x1d0] sm:$0xff]
                %5850 = vst [vmem:[%s5732 + $0x1d0] sm:$0xff] %v5849
                %v5851 = vld [vmem:[%s5731 + $0x1d8] sm:$0xff]
                %5852 = vst [vmem:[%s5732 + $0x1d8] sm:$0xff] %v5851
                %v5853 = vld [vmem:[%s5731 + $0x1e0] sm:$0xff]
                %5854 = vst [vmem:[%s5732 + $0x1e0] sm:$0xff] %v5853
                %v5855 = vld [vmem:[%s5731 + $0x1e8] sm:$0xff]
                %5856 = vst [vmem:[%s5732 + $0x1e8] sm:$0xff] %v5855
                %v5857 = vld [vmem:[%s5731 + $0x1f0] sm:$0xff]
                %5858 = vst [vmem:[%s5732 + $0x1f0] sm:$0xff] %v5857
                %s5859 = sadd.s32 1, %s5730
                %p5860 = scmp.ge.s32.totalorder %s5859, %s5722
                %s5861 = scalar_select %p5860, 0, %s5859
                %s5862 = smul.u32 %s5861, 504
                %s5863 = smul.u32 %s5861, 504
                %s5864 = scalar_lea.vmem %s4616, %s5862 [#allocation5]
                %s5865 = scalar_lea.vmem %s5713, %s5863
              $region225: #{ae1d_forward.1} parent=219 // loop_footer
                %s5727 = sadd.s32 %s5725, 1
              $region226: #{ae1d_forward.1} parent=219 // loop_footer_branch
                %5724 = sbr.rel target = $region222
              $region227: #{ae1d_forward.1} parent=219 // loop_exit
                _
              %s5866 = sdiv.u32.pop %s5709, 63
              %s5867 = srem.u32.pop %s5709, 63
              %s5868 = smul.u32 %s5866, 63
              %s5869 = smul.u32 8, %s5868
              %s5870 = scalar_lea.vmem %s4616, %s5869 [#allocation5]
              %s5871 = smul.u32 8, %s5868
              %s5872 = scalar_lea.vmem %s5713, %s5871
              // While loop
              $region228: #{ae1d_forward.1} parent=219 // loop_pre_header
                _
              $region229: #{ae1d_forward.1} parent=219 // loop_header
                %s5874 = sphi 0, %s5876
                %p5875 = scmp.ge.s32.totalorder %s5874, %s5867
                %s5879 = sphi 0, %s5886
                %s5880 = sphi %s5870, %s5889
                %s5881 = sphi %s5872, %s5890
              $region230: #{ae1d_forward.1} parent=219 // loop_header_branch
                %5878 = sbr.rel (%p5875) target = $region234
              $region231: #{ae1d_forward.1} parent=219 // loop_body
                %v5882 = vld [vmem:[%s5880] sm:$0xff]
                %5883 = vst [vmem:[%s5881] sm:$0xff] %v5882
                %s5884 = sadd.s32 1, %s5879
                %p5885 = scmp.ge.s32.totalorder %s5884, %s5867
                %s5886 = scalar_select %p5885, 0, %s5884
                %s5887 = smul.u32 %s5886, 8
                %s5888 = smul.u32 %s5886, 8
                %s5889 = scalar_lea.vmem %s5870, %s5887 [#allocation5]
                %s5890 = scalar_lea.vmem %s5872, %s5888
              $region232: #{ae1d_forward.1} parent=219 // loop_footer
                %s5876 = sadd.s32 %s5874, 1
              $region233: #{ae1d_forward.1} parent=219 // loop_footer_branch
                %5873 = sbr.rel target = $region229
              $region234: #{ae1d_forward.1} parent=219 // loop_exit
                _
            $region220: #{ae1d_forward.1} parent=211 // pred_fallthru
              _
          $region212: #{ae1d_forward.1} parent=207 // pred_fallthru
            _
          %6064 = vnop
        $region208: #{ae1d_forward.1} parent=47 // pred_fallthru
          _
      $region48: #{ae1d_forward.1} parent=5 // pred_fallthru
        _
      %p6065 = scmp.le.s32.totalorder 2, %s17
      // Predicated region
      $region257: #{ae1d_forward.1} parent=5 // pred_check
        %p6066 = pneg %p6065
      $region258: #{ae1d_forward.1} parent=5 // pred_check_branch
        %6068 = sbr.rel (%p6066) target = $region260
      $region259: #{ae1d_forward.1} parent=5 // pred_region
        %s6069 = ssub.s32 %s17, 2
        // Predicated region
        $region261: #{ae1d_forward.1} parent=259 // pred_check
          %p6070 = pneg %p203
        $region262: #{ae1d_forward.1} parent=259 // pred_check_branch
          %6072 = sbr.rel (%p6070) target = $region264
        $region263: #{ae1d_forward.1} parent=259 // pred_region
          %s6073 = sand.u32 %s188, 1
          %s6074 = sand.u32 %s188, 1
          %s6075 = smul.addr %s6074, 504
          %s6076 = scalar_lea.vmem [#allocation2], %s6075
        $region264: #{ae1d_forward.1} parent=259 // pred_fallthru
          _
        // Predicated region
        $region265: #{ae1d_forward.1} parent=259 // pred_check
          %p6077 = pneg %p229
        $region266: #{ae1d_forward.1} parent=259 // pred_check_branch
          %6079 = sbr.rel (%p6077) target = $region268
        $region267: #{ae1d_forward.1} parent=259 // pred_region
          %s6080 = sand.u32 %s214, 1
          %s6081 = sand.u32 %s214, 1
          %s6082 = smul.addr %s6081, 504
          %s6083 = scalar_lea.vmem [#allocation3], %s6082
        $region268: #{ae1d_forward.1} parent=259 // pred_fallthru
          _
        // Predicated region
        $region269: #{ae1d_forward.1} parent=259 // pred_check
          %p6084 = pneg %p255
        $region270: #{ae1d_forward.1} parent=259 // pred_check_branch
          %6086 = sbr.rel (%p6084) target = $region272
        $region271: #{ae1d_forward.1} parent=259 // pred_region
          %s6087 = sand.u32 %s240, 1
          %s6088 = sand.u32 %s240, 1
          %s6089 = smul.addr %s6088, 504
          %s6090 = scalar_lea.vmem [#allocation4], %s6089
        $region272: #{ae1d_forward.1} parent=259 // pred_fallthru
          _
        // Predicated region
        $region273: #{ae1d_forward.1} parent=259 // pred_check
          %p6091 = pneg %p281
        $region274: #{ae1d_forward.1} parent=259 // pred_check_branch
          %6093 = sbr.rel (%p6091) target = $region276
        $region275: #{ae1d_forward.1} parent=259 // pred_region
          %s6094 = sand.u32 %s266, 1
          %s6095 = sand.u32 %s266, 1
          %s6096 = smul.addr %s6095, 504
          %s6097 = scalar_lea.vmem [#allocation5], %s6096
        $region276: #{ae1d_forward.1} parent=259 // pred_fallthru
          _
      $region260: #{ae1d_forward.1} parent=5 // pred_fallthru
        _
    $region6: #{ae1d_forward.1} parent=1 // loop_footer
      %s21 = sadd.s32 1, %s17
    $region7: #{ae1d_forward.1} parent=1 // loop_footer_branch
      %16 = sbr.rel target = $region3
    $region8: #{ae1d_forward.1} parent=1 // loop_exit
      _

</llo_original>
